<compile_context>
chip_gen: v7x
topology: tpu7x:2x2x1
jax: 0.10.0
libtpu: 0.0.40
codegen_flags: <defaults>
</compile_context>

<pallas_src>
import math

import jax
import jax.numpy as jnp
from jax.experimental import pallas as pl
from jax.experimental.pallas import tpu as pltpu

_NEG_INF = -1e30  # finite "minus infinity" for masking padded class columns


# ---------------------------------------------------------------------------
# Kernels
# ---------------------------------------------------------------------------
def support1_kernel(x_ref, w_ref, out_ref):
    """support1[rows, :] = x[rows, :] @ W1   (stored bf16, f32 accumulate).

    x_ref  : (TM, F)     bf16 row tile
    w_ref  : (F, HPAD)   bf16, zero-padded columns
    out_ref: (TM, HPAD)  bf16
    """
    out_ref[...] = jnp.dot(
        x_ref[...], w_ref[...], preferred_element_type=jnp.float32
    ).astype(out_ref.dtype)


def agg_relu_matmul_kernel(adj_ref, s1_ref, w2_ref, b1_ref, out_ref):
    """support2[rows, :] = relu(adj[rows, :] @ support1 + b1) @ W2.

    adj_ref: (TM, N)      bf16 row tile
    s1_ref : (N, HPAD)    bf16, resident (same block every grid step)
    w2_ref : (HPAD, CPAD) bf16, zero-padded rows/cols
    b1_ref : (1, HPAD)    f32,  zero-padded columns
    out_ref: (TM, CPAD)   bf16
    """
    z = jnp.dot(adj_ref[...], s1_ref[...],
                preferred_element_type=jnp.float32) + b1_ref[...]
    # TODO(synk): dropout on H0 implemented in eval mode (identity); training
    # mode would mask h with pltpu.prng_seed / prng_random_bits here.
    h = jnp.maximum(z, 0.0).astype(jnp.bfloat16)
    out_ref[...] = jnp.dot(
        h, w2_ref[...], preferred_element_type=jnp.float32
    ).astype(out_ref.dtype)


def agg_logsoftmax_kernel(adj_ref, s2_ref, b2_ref, out_ref):
    """out[rows, :] = log_softmax(adj[rows, :] @ support2 + b2, axis=1).

    adj_ref: (TM, N)     bf16 row tile
    s2_ref : (N, CPAD)   bf16, resident
    b2_ref : (1, CPAD)   f32, padded class columns carry _NEG_INF
    out_ref: (TM, CPAD)  f32
    """
    z = jnp.dot(adj_ref[...], s2_ref[...],
                preferred_element_type=jnp.float32) + b2_ref[...]
    # Padded class columns are ~ -1e30 (from the padded bias), so they vanish
    # from the max / sum-exp and do not corrupt the LSE.
    m = jnp.max(z, axis=1, keepdims=True)
    shifted = z - m
    lse = jnp.log(jnp.sum(jnp.exp(shifted), axis=1, keepdims=True))
    out_ref[...] = shifted - lse


# ---------------------------------------------------------------------------
# Wrapper
# ---------------------------------------------------------------------------
def _round_up(x, m):
    return ((x + m - 1) // m) * m


def _row_tile(n):
    for tm in (256, 128):
        if n % tm == 0:
            return tm
    return n  # fall back to one full-height block


@jax.jit
def gcn_forward(x, adj, w1, b1, w2, b2):
    n, nfeat = x.shape
    nhid = w1.shape[1]
    nclass = w2.shape[1]
    hpad = _round_up(nhid, 128)
    cpad = _round_up(nclass, 128)
    tm = _row_tile(n)
    grid = (n // tm,)

    bf16 = jnp.bfloat16
    x_b = x.astype(bf16)
    adj_b = adj.astype(bf16)
    w1_b = jnp.pad(w1, ((0, 0), (0, hpad - nhid))).astype(bf16)
    b1_p = jnp.pad(b1.astype(jnp.float32), ((0, 0), (0, hpad - nhid)))
    w2_b = jnp.pad(w2, ((0, hpad - nhid), (0, cpad - nclass))).astype(bf16)
    b2_p = jnp.concatenate(
        [b2.astype(jnp.float32),
         jnp.full((1, cpad - nclass), _NEG_INF, jnp.float32)], axis=1)

    compiler_params = pltpu.CompilerParams(
        dimension_semantics=("parallel",),
        vmem_limit_bytes=32 * 1024 * 1024,
    )

    # ---- Stage 1: support1 = x @ W1 ---------------------------------------
    s1 = pl.pallas_call(
        support1_kernel,
        out_shape=jax.ShapeDtypeStruct((n, hpad), bf16),
        grid_spec=pltpu.PrefetchScalarGridSpec(
            num_scalar_prefetch=0,
            grid=grid,
            in_specs=[
                pl.BlockSpec((tm, nfeat), lambda i: (i, 0)),   # x row tile
                pl.BlockSpec((nfeat, hpad), lambda i: (0, 0)),  # W1 resident
            ],
            out_specs=pl.BlockSpec((tm, hpad), lambda i: (i, 0)),
        ),
        compiler_params=compiler_params,
        cost_estimate=pl.CostEstimate(
            flops=2 * n * nfeat * hpad,
            transcendentals=0,
            bytes_accessed=n * nfeat * 2 + nfeat * hpad * 2 + n * hpad * 2,
        ),
    )(x_b, w1_b)

    # ---- Stage 2: support2 = relu(adj @ support1 + b1) @ W2 ---------------
    s2 = pl.pallas_call(
        agg_relu_matmul_kernel,
        out_shape=jax.ShapeDtypeStruct((n, cpad), bf16),
        grid_spec=pltpu.PrefetchScalarGridSpec(
            num_scalar_prefetch=0,
            grid=grid,
            in_specs=[
                pl.BlockSpec((tm, n), lambda i: (i, 0)),        # adj row tile
                pl.BlockSpec((n, hpad), lambda i: (0, 0)),      # support1 resident
                pl.BlockSpec((hpad, cpad), lambda i: (0, 0)),   # W2 resident
                pl.BlockSpec((1, hpad), lambda i: (0, 0)),      # b1
            ],
            out_specs=pl.BlockSpec((tm, cpad), lambda i: (i, 0)),
        ),
        compiler_params=compiler_params,
        cost_estimate=pl.CostEstimate(
            flops=2 * (n * n * hpad + n * hpad * cpad),
            transcendentals=0,
            bytes_accessed=(n * n * 2 + n * hpad * 2 + hpad * cpad * 2
                            + hpad * 4 + n * cpad * 2),
        ),
    )(adj_b, s1, w2_b, b1_p)

    # ---- Stage 3: out = log_softmax(adj @ support2 + b2, axis=1) ----------
    out_padded = pl.pallas_call(
        agg_logsoftmax_kernel,
        out_shape=jax.ShapeDtypeStruct((n, cpad), jnp.float32),
        grid_spec=pltpu.PrefetchScalarGridSpec(
            num_scalar_prefetch=0,
            grid=grid,
            in_specs=[
                pl.BlockSpec((tm, n), lambda i: (i, 0)),        # adj row tile
                pl.BlockSpec((n, cpad), lambda i: (0, 0)),      # support2 resident
                pl.BlockSpec((1, cpad), lambda i: (0, 0)),      # b2 (padded)
            ],
            out_specs=pl.BlockSpec((tm, cpad), lambda i: (i, 0)),
        ),
        compiler_params=compiler_params,
        cost_estimate=pl.CostEstimate(
            flops=2 * n * n * cpad,
            transcendentals=n * cpad + n,
            bytes_accessed=(n * n * 2 + n * cpad * 2 + cpad * 4
                            + n * cpad * 4),
        ),
    )(adj_b, s2, b2_p)

    return out_padded[:, :nclass]


# ---------------------------------------------------------------------------
# Parameter init & references
# ---------------------------------------------------------------------------
def init_params(key, nfeat, nhid, nclass):
    """uniform(-1/sqrt(out_features), 1/sqrt(out_features)) like reset_parameters."""
    k1, k2, k3, k4 = jax.random.split(key, 4)
    std1 = 1.0 / math.sqrt(nhid)
    std2 = 1.0 / math.sqrt(nclass)
    w1 = jax.random.uniform(k1, (nfeat, nhid), jnp.float32, -std1, std1)
    b1 = jax.random.uniform(k2, (1, nhid), jnp.float32, -std1, std1)
    w2 = jax.random.uniform(k3, (nhid, nclass), jnp.float32, -std2, std2)
    b2 = jax.random.uniform(k4, (1, nclass), jnp.float32, -std2, std2)
    return w1, b1, w2, b2


def reference_forward_f32(x, adj, w1, b1, w2, b2):
    """Pure f32 reference (matches the PyTorch module exactly, eval mode)."""
    z0 = adj @ (x @ w1) + b1
    h0 = jnp.maximum(z0, 0.0)
    z1 = adj @ (h0 @ w2) + b2
    return jax.nn.log_softmax(z1, axis=1)


def reference_forward_bf16(x, adj, w1, b1, w2, b2):
    """Reference with the same bf16-operand / f32-accumulate scheme as the kernels."""
    bf = jnp.bfloat16
    s1 = jnp.dot(x.astype(bf), w1.astype(bf),
                 preferred_element_type=jnp.float32).astype(bf)
    z0 = jnp.dot(adj.astype(bf), s1, preferred_element_type=jnp.float32) + b1
    h0 = jnp.maximum(z0, 0.0).astype(bf)
    s2 = jnp.dot(h0, w2.astype(bf),
                 preferred_element_type=jnp.float32).astype(bf)
    z1 = jnp.dot(adj.astype(bf), s2, preferred_element_type=jnp.float32) + b2
    return jax.nn.log_softmax(z1, axis=1)


# ---------------------------------------------------------------------------
# Demo / self-check
# ---------------------------------------------------------------------------
if __name__ == "__main__":
    # Small GCN-consistent shapes: N nodes, nfeat -> nhid -> nclass.
    # N=512 with TM=256 exercises a 2-step pipelined grid.
    N, NFEAT, NHID, NCLASS = 512, 64, 16, 8

    key = jax.random.PRNGKey(0)
    kx, kadj, kp = jax.random.split(key, 3)

    x = jax.random.normal(kx, (N, NFEAT), jnp.float32)

    # Symmetric, row-normalized dense adjacency (A_hat = D^-1 (A + I)).
    a = (jax.random.uniform(kadj, (N, N)) < 0.1).astype(jnp.float32)
    a = jnp.maximum(a, a.T) + jnp.eye(N, dtype=jnp.float32)
    adj = a / jnp.sum(a, axis=1, keepdims=True)

    w1, b1, w2, b2 = init_params(kp, NFEAT, NHID, NCLASS)

    out = gcn_forward(x, adj, w1, b1, w2, b2)
    out = jax.block_until_ready(out)
    assert out.shape == (N, NCLASS)

    ref_bf16 = reference_forward_bf16(x, adj, w1, b1, w2, b2)
    ref_f32 = reference_forward_f32(x, adj, w1, b1, w2, b2)
    assert jnp.allclose(out, ref_bf16, atol=1e-3, rtol=1e-3), \
        "mismatch vs bf16-matched reference"
    assert jnp.allclose(out, ref_f32, atol=5e-2, rtol=5e-2), \
        "mismatch vs f32 reference"

    print("KERNEL_OK")
</pallas_src>

<mosaic_0001>
module attributes {stable_mosaic.version = 11 : i64} {
  func.func @agg_logsoftmax_kernel(%arg0: i32, %arg1: memref<256x512xbf16, #tpu.memory_space<vmem>>, %arg2: memref<512x128xbf16, #tpu.memory_space<vmem>>, %arg3: memref<1x128xf32, #tpu.memory_space<vmem>>, %arg4: memref<256x128xf32, #tpu.memory_space<vmem>>) attributes {dimension_semantics = [#tpu.dimension_semantics<parallel>], iteration_bounds = array<i64: 2>, scalar_prefetch = 0 : i64, scratch_operands = 0 : i64, tpu.core_type = #tpu.core_type<tc>, window_params = [{transform_indices = @transform_0, window_bounds = array<i64: 256, 512>}, {pipeline_mode = #tpu.pipeline_mode<synchronous>, transform_indices = @transform_1, window_bounds = array<i64: 512, 128>}, {pipeline_mode = #tpu.pipeline_mode<synchronous>, transform_indices = @transform_2, window_bounds = array<i64: 1, 128>}, {transform_indices = @transform_3, window_bounds = array<i64: 256, 128>}]} {
    %c0 = arith.constant 0 : index
    %c0_0 = arith.constant 0 : index
    %0 = vector.load %arg1[%c0, %c0_0] : memref<256x512xbf16, #tpu.memory_space<vmem>>, vector<256x512xbf16>
    %c0_1 = arith.constant 0 : index
    %c0_2 = arith.constant 0 : index
    %1 = vector.load %arg2[%c0_1, %c0_2] : memref<512x128xbf16, #tpu.memory_space<vmem>>, vector<512x128xbf16>
    %cst = arith.constant dense<0.000000e+00> : vector<256x128xf32>
    %2 = tpu.matmul %0, %1, %cst {dimension_numbers = #tpu.dot_dimension_numbers<[1], [0], [0], [1], [0, 0, 1, 1], [], []>} : vector<256x512xbf16>, vector<512x128xbf16>, vector<256x128xf32> -> vector<256x128xf32>
    %c0_3 = arith.constant 0 : index
    %c0_4 = arith.constant 0 : index
    %3 = vector.load %arg3[%c0_3, %c0_4] : memref<1x128xf32, #tpu.memory_space<vmem>>, vector<1x128xf32>
    %4 = vector.broadcast %3 : vector<1x128xf32> to vector<256x128xf32>
    %5 = arith.addf %2, %4 : vector<256x128xf32>
    %cst_5 = arith.constant dense<0xFF800000> : vector<256xf32>
    %6 = vector.multi_reduction <maximumf>, %5, %cst_5 [1] : vector<256x128xf32> to vector<256xf32>
    %7 = vector.shape_cast %6 : vector<256xf32> to vector<256x1xf32>
    %8 = vector.broadcast %7 : vector<256x1xf32> to vector<256x128xf32>
    %9 = arith.subf %5, %8 : vector<256x128xf32>
    %10 = math.exp %9 : vector<256x128xf32>
    %cst_6 = arith.constant dense<0.000000e+00> : vector<256xf32>
    %11 = vector.multi_reduction <add>, %10, %cst_6 [1] : vector<256x128xf32> to vector<256xf32>
    %12 = vector.shape_cast %11 : vector<256xf32> to vector<256x1xf32>
    %13 = math.log %12 : vector<256x1xf32>
    %14 = vector.broadcast %13 : vector<256x1xf32> to vector<256x128xf32>
    %15 = arith.subf %9, %14 : vector<256x128xf32>
    %c0_7 = arith.constant 0 : index
    %c0_8 = arith.constant 0 : index
    %16 = vector.load %arg4[%c0_7, %c0_8] : memref<256x128xf32, #tpu.memory_space<vmem>>, vector<256x128xf32>
    tpu.vector_store %arg4[%c0_7, %c0_8], %15 {strides = array<i32>} : memref<256x128xf32, #tpu.memory_space<vmem>>, vector<256x128xf32>,
    return
  }
  func.func @transform_0(%arg0: i32) -> (i32, i32) {
    %c0_i32 = arith.constant 0 : i32
    %c0_i32_0 = arith.constant 0 : i32
    return %arg0, %c0_i32 : i32, i32
  }
  func.func @transform_1(%arg0: i32) -> (i32, i32) {
    %c0_i32 = arith.constant 0 : i32
    %c0_i32_0 = arith.constant 0 : i32
    %c0_i32_1 = arith.constant 0 : i32
    return %c0_i32, %c0_i32_0 : i32, i32
  }
  func.func @transform_2(%arg0: i32) -> (i32, i32) {
    %c0_i32 = arith.constant 0 : i32
    %c0_i32_0 = arith.constant 0 : i32
    %c0_i32_1 = arith.constant 0 : i32
    return %c0_i32, %c0_i32_0 : i32, i32
  }
  func.func @transform_3(%arg0: i32) -> (i32, i32) {
    %c0_i32 = arith.constant 0 : i32
    %c0_i32_0 = arith.constant 0 : i32
    return %arg0, %c0_i32 : i32, i32
  }
}

module attributes {stable_mosaic.version = 11 : i64} {
  func.func @support1_kernel(%arg0: i32, %arg1: memref<256x64xbf16, #tpu.memory_space<vmem>>, %arg2: memref<64x128xbf16, #tpu.memory_space<vmem>>, %arg3: memref<256x128xbf16, #tpu.memory_space<vmem>>) attributes {dimension_semantics = [#tpu.dimension_semantics<parallel>], iteration_bounds = array<i64: 2>, scalar_prefetch = 0 : i64, scratch_operands = 0 : i64, tpu.core_type = #tpu.core_type<tc>, window_params = [{transform_indices = @transform_0, window_bounds = array<i64: 256, 64>}, {pipeline_mode = #tpu.pipeline_mode<synchronous>, transform_indices = @transform_1, window_bounds = array<i64: 64, 128>}, {transform_indices = @transform_2, window_bounds = array<i64: 256, 128>}]} {
    %c0 = arith.constant 0 : index
    %c0_0 = arith.constant 0 : index
    %0 = vector.load %arg1[%c0, %c0_0] : memref<256x64xbf16, #tpu.memory_space<vmem>>, vector<256x64xbf16>
    %c0_1 = arith.constant 0 : index
    %c0_2 = arith.constant 0 : index
    %1 = vector.load %arg2[%c0_1, %c0_2] : memref<64x128xbf16, #tpu.memory_space<vmem>>, vector<64x128xbf16>
    %cst = arith.constant dense<0.000000e+00> : vector<256x128xf32>
    %2 = tpu.matmul %0, %1, %cst {dimension_numbers = #tpu.dot_dimension_numbers<[1], [0], [0], [1], [0, 0, 1, 1], [], []>} : vector<256x64xbf16>, vector<64x128xbf16>, vector<256x128xf32> -> vector<256x128xf32>
    %3 = arith.truncf %2 : vector<256x128xf32> to vector<256x128xbf16>
    %c0_3 = arith.constant 0 : index
    %c0_4 = arith.constant 0 : index
    %4 = vector.load %arg3[%c0_3, %c0_4] : memref<256x128xbf16, #tpu.memory_space<vmem>>, vector<256x128xbf16>
    tpu.vector_store %arg3[%c0_3, %c0_4], %3 {strides = array<i32>} : memref<256x128xbf16, #tpu.memory_space<vmem>>, vector<256x128xbf16>,
    return
  }
  func.func @transform_0(%arg0: i32) -> (i32, i32) {
    %c0_i32 = arith.constant 0 : i32
    %c0_i32_0 = arith.constant 0 : i32
    return %arg0, %c0_i32 : i32, i32
  }
  func.func @transform_1(%arg0: i32) -> (i32, i32) {
    %c0_i32 = arith.constant 0 : i32
    %c0_i32_0 = arith.constant 0 : i32
    %c0_i32_1 = arith.constant 0 : i32
    return %c0_i32, %c0_i32_0 : i32, i32
  }
  func.func @transform_2(%arg0: i32) -> (i32, i32) {
    %c0_i32 = arith.constant 0 : i32
    %c0_i32_0 = arith.constant 0 : i32
    return %arg0, %c0_i32 : i32, i32
  }
}

module attributes {stable_mosaic.version = 11 : i64} {
  func.func @agg_relu_matmul_kernel(%arg0: i32, %arg1: memref<256x512xbf16, #tpu.memory_space<vmem>>, %arg2: memref<512x128xbf16, #tpu.memory_space<vmem>>, %arg3: memref<128x128xbf16, #tpu.memory_space<vmem>>, %arg4: memref<1x128xf32, #tpu.memory_space<vmem>>, %arg5: memref<256x128xbf16, #tpu.memory_space<vmem>>) attributes {dimension_semantics = [#tpu.dimension_semantics<parallel>], iteration_bounds = array<i64: 2>, scalar_prefetch = 0 : i64, scratch_operands = 0 : i64, tpu.core_type = #tpu.core_type<tc>, window_params = [{transform_indices = @transform_0, window_bounds = array<i64: 256, 512>}, {pipeline_mode = #tpu.pipeline_mode<synchronous>, transform_indices = @transform_1, window_bounds = array<i64: 512, 128>}, {pipeline_mode = #tpu.pipeline_mode<synchronous>, transform_indices = @transform_2, window_bounds = array<i64: 128, 128>}, {pipeline_mode = #tpu.pipeline_mode<synchronous>, transform_indices = @transform_3, window_bounds = array<i64: 1, 128>}, {transform_indices = @transform_4, window_bounds = array<i64: 256, 128>}]} {
    %c0 = arith.constant 0 : index
    %c0_0 = arith.constant 0 : index
    %0 = vector.load %arg1[%c0, %c0_0] : memref<256x512xbf16, #tpu.memory_space<vmem>>, vector<256x512xbf16>
    %c0_1 = arith.constant 0 : index
    %c0_2 = arith.constant 0 : index
    %1 = vector.load %arg2[%c0_1, %c0_2] : memref<512x128xbf16, #tpu.memory_space<vmem>>, vector<512x128xbf16>
    %cst = arith.constant dense<0.000000e+00> : vector<256x128xf32>
    %2 = tpu.matmul %0, %1, %cst {dimension_numbers = #tpu.dot_dimension_numbers<[1], [0], [0], [1], [0, 0, 1, 1], [], []>} : vector<256x512xbf16>, vector<512x128xbf16>, vector<256x128xf32> -> vector<256x128xf32>
    %c0_3 = arith.constant 0 : index
    %c0_4 = arith.constant 0 : index
    %3 = vector.load %arg4[%c0_3, %c0_4] : memref<1x128xf32, #tpu.memory_space<vmem>>, vector<1x128xf32>
    %4 = vector.broadcast %3 : vector<1x128xf32> to vector<256x128xf32>
    %5 = arith.addf %2, %4 : vector<256x128xf32>
    %cst_5 = arith.constant 0.000000e+00 : f32
    %6 = vector.broadcast %cst_5 : f32 to vector<256x128xf32>
    %7 = arith.maximumf %5, %6 : vector<256x128xf32>
    %8 = arith.truncf %7 : vector<256x128xf32> to vector<256x128xbf16>
    %c0_6 = arith.constant 0 : index
    %c0_7 = arith.constant 0 : index
    %9 = vector.load %arg3[%c0_6, %c0_7] : memref<128x128xbf16, #tpu.memory_space<vmem>>, vector<128x128xbf16>
    %cst_8 = arith.constant dense<0.000000e+00> : vector<256x128xf32>
    %10 = tpu.matmul %8, %9, %cst_8 {dimension_numbers = #tpu.dot_dimension_numbers<[1], [0], [0], [1], [0, 0, 1, 1], [], []>} : vector<256x128xbf16>, vector<128x128xbf16>, vector<256x128xf32> -> vector<256x128xf32>
    %11 = arith.truncf %10 : vector<256x128xf32> to vector<256x128xbf16>
    %c0_9 = arith.constant 0 : index
    %c0_10 = arith.constant 0 : index
    %12 = vector.load %arg5[%c0_9, %c0_10] : memref<256x128xbf16, #tpu.memory_space<vmem>>, vector<256x128xbf16>
    tpu.vector_store %arg5[%c0_9, %c0_10], %11 {strides = array<i32>} : memref<256x128xbf16, #tpu.memory_space<vmem>>, vector<256x128xbf16>,
    return
  }
  func.func @transform_0(%arg0: i32) -> (i32, i32) {
    %c0_i32 = arith.constant 0 : i32
    %c0_i32_0 = arith.constant 0 : i32
    return %arg0, %c0_i32 : i32, i32
  }
  func.func @transform_1(%arg0: i32) -> (i32, i32) {
    %c0_i32 = arith.constant 0 : i32
    %c0_i32_0 = arith.constant 0 : i32
    %c0_i32_1 = arith.constant 0 : i32
    return %c0_i32, %c0_i32_0 : i32, i32
  }
  func.func @transform_2(%arg0: i32) -> (i32, i32) {
    %c0_i32 = arith.constant 0 : i32
    %c0_i32_0 = arith.constant 0 : i32
    %c0_i32_1 = arith.constant 0 : i32
    return %c0_i32, %c0_i32_0 : i32, i32
  }
  func.func @transform_3(%arg0: i32) -> (i32, i32) {
    %c0_i32 = arith.constant 0 : i32
    %c0_i32_0 = arith.constant 0 : i32
    %c0_i32_1 = arith.constant 0 : i32
    return %c0_i32, %c0_i32_0 : i32, i32
  }
  func.func @transform_4(%arg0: i32) -> (i32, i32) {
    %c0_i32 = arith.constant 0 : i32
    %c0_i32_0 = arith.constant 0 : i32
    return %arg0, %c0_i32 : i32, i32
  }
}

</mosaic_0001>

<llo_original>
// kernel: gcn_forward.3
$region0: #{gcn_forward.3}
  #allocation0 [shape = 'u32[]', space=smem, size = 0x4, offset = 0x4, fixed_abs, tag = 'smem constant byte address 0x4 - core index']
  #allocation1 [shape = 'u32[144,128]{1,0:T(1,128)}', space=vmem, size = 0x12000, scoped, tag = 'internal scratch']
  %s0 = inlined_call_operand.vmem [shape: bf16[512,64], index: 0, kind: input, shape index: {}]
  %s1 = inlined_call_operand.vmem [shape: bf16[64,128], index: 1, kind: input, shape index: {}]
  %s2 = inlined_call_operand.vmem [shape: bf16[512,128], index: 2, kind: output, shape index: {}]
  %s3 = sld [smem:[#allocation0]]
  $region41: #{gcn_forward.3} parent=0
    _
  %s5 = ssub.s32 1, %s3
  %s6 = scalar_select 0, %s5, %s3
  loop: start=0, step=1, limit=4
  $region2: #{gcn_forward.3} parent=0 // loop_pre_header
    _
  $region3: #{gcn_forward.3} parent=0 // loop_header
    %s8 = sphi 0, %s12
    %p9 = scmp.ge.s32.totalorder %s8, 4
    %s18 = sphi 0, %s20
    %s21 = sphi 0, %s18
    %s22 = sphi 0, %s21
    %s38 = sphi 0, %s22
    %s42 = sphi 0, %s42
    %s44 = sphi 0, %s42
    %s45 = sphi 0, %s44
    %s59 = sphi 0, %s45
    %s65 = sphi 0, %s67
    %s68 = sphi 0, %s65
    %s69 = sphi 0, %s68
    %s85 = sphi 0, %s69
  $region4: #{gcn_forward.3} parent=0 // loop_header_branch
    %11 = sbr.rel (%p9) target = $region8
  $region5: #{gcn_forward.3} parent=0 // loop_body
    %s13 = ssub.s32 %s8, 1
    %s14 = ssub.s32 %s8, 2
    %s15 = sadd.s32 %s8, 1
    %s16 = ssub.s32 %s8, %s15
    %p17 = scmp.eq.s32.totalorder %s16, 0
    %s19 = sadd.s32 %s18, 1
    %s20 = scalar_select %p17, %s18, %s19
    %p23 = pneg %p17
    %p24 = scmp.eq.s32.totalorder %s8, 1
    %p25 = por %p23, %p24
    %p26 = scmp.ne.s32.totalorder %s18, %s21
    %p27 = scmp.eq.s32.totalorder %s8, 0
    %p28 = por %p26, %p27
    %p29 = scmp.ne.s32.totalorder %s18, %s21
    %p30 = scmp.eq.s32.totalorder %s13, 1
    %p31 = por %p29, %p30
    %p32 = scmp.ne.s32.totalorder %s21, %s22
    %p33 = scmp.eq.s32.totalorder %s13, 0
    %p34 = por %p32, %p33
    %p35 = scmp.ne.s32.totalorder %s21, %s22
    %p36 = scmp.eq.s32.totalorder %s14, 1
    %p37 = por %p35, %p36
    %p39 = scmp.ne.s32.totalorder %s22, %s38
    %p40 = scmp.eq.s32.totalorder %s14, 0
    %p41 = por %p39, %p40
    %s43 = sadd.s32 %s42, 1
    %p46 = scmp.eq.s32.totalorder %s8, 1
    %p47 = scmp.ne.s32.totalorder %s42, %s44
    %p48 = scmp.eq.s32.totalorder %s8, 0
    %p49 = por %p47, %p48
    %p50 = scmp.ne.s32.totalorder %s42, %s44
    %p51 = scmp.eq.s32.totalorder %s13, 1
    %p52 = por %p50, %p51
    %p53 = scmp.ne.s32.totalorder %s44, %s45
    %p54 = scmp.eq.s32.totalorder %s13, 0
    %p55 = por %p53, %p54
    %p56 = scmp.ne.s32.totalorder %s44, %s45
    %p57 = scmp.eq.s32.totalorder %s14, 1
    %p58 = por %p56, %p57
    %p60 = scmp.ne.s32.totalorder %s45, %s59
    %p61 = scmp.eq.s32.totalorder %s14, 0
    %p62 = por %p60, %p61
    %s63 = ssub.s32 %s8, %s15
    %p64 = scmp.eq.s32.totalorder %s63, 0
    %s66 = sadd.s32 %s65, 1
    %s67 = scalar_select %p64, %s65, %s66
    %p70 = pneg %p64
    %p71 = scmp.eq.s32.totalorder %s8, 1
    %p72 = por %p70, %p71
    %p73 = scmp.ne.s32.totalorder %s65, %s68
    %p74 = scmp.eq.s32.totalorder %s8, 0
    %p75 = por %p73, %p74
    %p76 = scmp.ne.s32.totalorder %s65, %s68
    %p77 = scmp.eq.s32.totalorder %s13, 1
    %p78 = por %p76, %p77
    %p79 = scmp.ne.s32.totalorder %s68, %s69
    %p80 = scmp.eq.s32.totalorder %s13, 0
    %p81 = por %p79, %p80
    %p82 = scmp.ne.s32.totalorder %s68, %s69
    %p83 = scmp.eq.s32.totalorder %s14, 1
    %p84 = por %p82, %p83
    %p86 = scmp.ne.s32.totalorder %s69, %s85
    %p87 = scmp.eq.s32.totalorder %s14, 0
    %p88 = por %p86, %p87
    %p89 = scmp.le.s32.totalorder 1, %s8
    %p90 = scmp.lt.s32.totalorder %s8, 3
    %p91 = pnand %p89, %p90
    %p92 = pneg %p91
    // Predicated region
    $region9: #{gcn_forward.3} parent=5 // pred_check
      _
    $region10: #{gcn_forward.3} parent=5 // pred_check_branch
      %94 = sbr.rel (%p91) target = $region12
    $region11: #{gcn_forward.3} parent=5 // pred_region
      %s95 = ssub.s32 %s8, 1
      // Predicated region
      $region13: #{gcn_forward.3} parent=11 // pred_check
        %p96 = pneg %p55
      $region14: #{gcn_forward.3} parent=11 // pred_check_branch
        %98 = sbr.rel (%p96) target = $region16
      $region15: #{gcn_forward.3} parent=11 // pred_region
        _
      $region16: #{gcn_forward.3} parent=11 // pred_fallthru
        _
    $region12: #{gcn_forward.3} parent=5 // pred_fallthru
      _
    %p99 = scmp.lt.s32.totalorder %s8, 2
    // Predicated region
    $region17: #{gcn_forward.3} parent=5 // pred_check
      %p100 = pneg %p99
    $region18: #{gcn_forward.3} parent=5 // pred_check_branch
      %102 = sbr.rel (%p100) target = $region20
    $region19: #{gcn_forward.3} parent=5 // pred_region
      // Predicated region
      $region21: #{gcn_forward.3} parent=19 // pred_check
        %p103 = pneg %p28
      $region22: #{gcn_forward.3} parent=19 // pred_check_branch
        %105 = sbr.rel (%p103) target = $region24
      $region23: #{gcn_forward.3} parent=19 // pred_region
        %s106 = smul.u32 32, %s8
        %p107 = scmp.lt.s32.totalorder %s106, 63
        %s108 = scalar_select %p107, %s106, 63
        %s109 = smul.addr %s108, 4
        %s110 = scalar_lea.vmem %s0, %s109
        %s111 = smul.u32 32, %s8
      $region24: #{gcn_forward.3} parent=19 // pred_fallthru
        _
    $region20: #{gcn_forward.3} parent=5 // pred_fallthru
      _
    %p112 = scmp.le.s32.totalorder 1, %s8
    %p113 = scmp.lt.s32.totalorder %s8, 3
    %p114 = pnand %p112, %p113
    %p115 = pneg %p114
    // Predicated region
    $region25: #{gcn_forward.3} parent=5 // pred_check
      _
    $region26: #{gcn_forward.3} parent=5 // pred_check_branch
      %117 = sbr.rel (%p114) target = $region28
    $region27: #{gcn_forward.3} parent=5 // pred_region
      %s118 = ssub.s32 %s8, 1
      %s119 = smul.u32 32, %s13
      %p120 = scmp.lt.s32.totalorder %s119, 63
      %s121 = scalar_select %p120, %s119, 63
      %s122 = smul.addr %s121, 4
      %s123 = scalar_lea.vmem %s0, %s122
      %p124 = pneg %p34
      %p125 = pneg %p31
      %p126 = pneg %p55
      %p127 = pneg %p52
      %p128 = pneg %p81
      %p129 = pneg %p78
      %s130 = smul.u32 32, %s13
      %p131 = scmp.lt.s32.totalorder %s130, 63
      %s132 = scalar_select %p131, %s130, 63
      %s133 = smul.addr %s132, 4
      %s134 = scalar_lea.vmem %s2, %s133
      %s135 = smul.u32 32, %s13
      %p136 = scmp.lt.s32.totalorder %s135, 63
      %s137 = scalar_select %p136, %s135, 63
      %s138 = smul.addr %s137, 4
      %s139 = scalar_lea.vmem %s0, %s138
      %s140 = smul.u32 32, %s13
      %s141 = smul.u32 32, %s13
      %p142 = scmp.lt.s32.totalorder %s141, 63
      %s143 = scalar_select %p142, %s141, 63
      %s144 = smul.addr %s143, 4
      %s145 = scalar_lea.vmem %s2, %s144
      %s146 = smul.u32 32, %s13
      %v148 = vld [vmem:[%s139] sm:$0xf]
      %v149 = vld [vmem:[%s139 + $0x4] sm:$0xf]
      %v150 = vld [vmem:[%s139 + $0x8] sm:$0xf]
      %v151 = vld [vmem:[%s139 + $0xc] sm:$0xf]
      %v152 = vld [vmem:[%s139 + $0x10] sm:$0xf]
      %v153 = vld [vmem:[%s139 + $0x14] sm:$0xf]
      %v154 = vld [vmem:[%s139 + $0x18] sm:$0xf]
      %v155 = vld [vmem:[%s139 + $0x1c] sm:$0xf]
      %v156 = vld [vmem:[%s139 + $0x20] sm:$0xf]
      %v157 = vld [vmem:[%s139 + $0x24] sm:$0xf]
      %v158 = vld [vmem:[%s139 + $0x28] sm:$0xf]
      %v159 = vld [vmem:[%s139 + $0x2c] sm:$0xf]
      %v160 = vld [vmem:[%s139 + $0x30] sm:$0xf]
      %v161 = vld [vmem:[%s139 + $0x34] sm:$0xf]
      %v162 = vld [vmem:[%s139 + $0x38] sm:$0xf]
      %v163 = vld [vmem:[%s139 + $0x3c] sm:$0xf]
      %v164 = vld [vmem:[%s139 + $0x40] sm:$0xf]
      %v165 = vld [vmem:[%s139 + $0x44] sm:$0xf]
      %v166 = vld [vmem:[%s139 + $0x48] sm:$0xf]
      %v167 = vld [vmem:[%s139 + $0x4c] sm:$0xf]
      %v168 = vld [vmem:[%s139 + $0x50] sm:$0xf]
      %v169 = vld [vmem:[%s139 + $0x54] sm:$0xf]
      %v170 = vld [vmem:[%s139 + $0x58] sm:$0xf]
      %v171 = vld [vmem:[%s139 + $0x5c] sm:$0xf]
      %v172 = vld [vmem:[%s139 + $0x60] sm:$0xf]
      %v173 = vld [vmem:[%s139 + $0x64] sm:$0xf]
      %v174 = vld [vmem:[%s139 + $0x68] sm:$0xf]
      %v175 = vld [vmem:[%s139 + $0x6c] sm:$0xf]
      %v176 = vld [vmem:[%s139 + $0x70] sm:$0xf]
      %v177 = vld [vmem:[%s139 + $0x74] sm:$0xf]
      %v178 = vld [vmem:[%s139 + $0x78] sm:$0xf]
      %v179 = vld [vmem:[%s139 + $0x7c] sm:$0xf]
      %v180 = vld [vmem:[%s1] sm:$0xf]
      %v181 = vld [vmem:[%s1 + $0x4] sm:$0xf]
      %v182 = vld [vmem:[%s1 + $0x8] sm:$0xf]
      %v183 = vld [vmem:[%s1 + $0xc] sm:$0xf]
      %v184 = vld [vmem:[%s1 + $0x10] sm:$0xf]
      %v185 = vld [vmem:[%s1 + $0x14] sm:$0xf]
      %v186 = vld [vmem:[%s1 + $0x18] sm:$0xf]
      %v187 = vld [vmem:[%s1 + $0x1c] sm:$0xf]
      %v220 = vunpack.c.l.b16 %v148
      %v221 = vunpack.c.l.b16 %v149
      %v222 = vunpack.c.l.b16 %v150
      %v223 = vunpack.c.l.b16 %v151
      %v224 = vunpack.c.l.b16 %v152
      %v225 = vunpack.c.l.b16 %v153
      %v226 = vunpack.c.l.b16 %v154
      %v227 = vunpack.c.l.b16 %v155
      %v228 = vunpack.c.l.b16 %v156
      %v229 = vunpack.c.l.b16 %v157
      %v230 = vunpack.c.l.b16 %v158
      %v231 = vunpack.c.l.b16 %v159
      %v232 = vunpack.c.l.b16 %v160
      %v233 = vunpack.c.l.b16 %v161
      %v234 = vunpack.c.l.b16 %v162
      %v235 = vunpack.c.l.b16 %v163
      %v236 = vunpack.c.l.b16 %v164
      %v237 = vunpack.c.l.b16 %v165
      %v238 = vunpack.c.l.b16 %v166
      %v239 = vunpack.c.l.b16 %v167
      %v240 = vunpack.c.l.b16 %v168
      %v241 = vunpack.c.l.b16 %v169
      %v242 = vunpack.c.l.b16 %v170
      %v243 = vunpack.c.l.b16 %v171
      %v244 = vunpack.c.l.b16 %v172
      %v245 = vunpack.c.l.b16 %v173
      %v246 = vunpack.c.l.b16 %v174
      %v247 = vunpack.c.l.b16 %v175
      %v248 = vunpack.c.l.b16 %v176
      %v249 = vunpack.c.l.b16 %v177
      %v250 = vunpack.c.l.b16 %v178
      %v251 = vunpack.c.l.b16 %v179
      %v252 = vpack.c.b16 %v221, %v220
      %v253 = vpack.c.b16 %v223, %v222
      %v254 = vpack.c.b16 %v225, %v224
      %v255 = vpack.c.b16 %v227, %v226
      %v256 = vpack.c.b16 %v229, %v228
      %v257 = vpack.c.b16 %v231, %v230
      %v258 = vpack.c.b16 %v233, %v232
      %v259 = vpack.c.b16 %v235, %v234
      %v260 = vpack.c.b16 %v237, %v236
      %v261 = vpack.c.b16 %v239, %v238
      %v262 = vpack.c.b16 %v241, %v240
      %v263 = vpack.c.b16 %v243, %v242
      %v264 = vpack.c.b16 %v245, %v244
      %v265 = vpack.c.b16 %v247, %v246
      %v266 = vpack.c.b16 %v249, %v248
      %v267 = vpack.c.b16 %v251, %v250
      %v276 = vunpack.c.l.b16 %v180
      %v277 = vunpack.c.l.b16 %v181
      %v278 = vunpack.c.l.b16 %v182
      %v279 = vunpack.c.l.b16 %v183
      %v280 = vunpack.c.l.b16 %v184
      %v281 = vunpack.c.l.b16 %v185
      %v282 = vunpack.c.l.b16 %v186
      %v283 = vunpack.c.l.b16 %v187
      %v284 = vpack.c.b16 %v277, %v276
      %v285 = vpack.c.b16 %v279, %v278
      %v286 = vpack.c.b16 %v281, %v280
      %v287 = vpack.c.b16 %v283, %v282
      %vm292 = vcmask 523264
      %v294 = vsel %vm292, %v252, 0
      %v297 = vsel %vm292, %v253, 0
      %v300 = vsel %vm292, %v254, 0
      %v303 = vsel %vm292, %v255, 0
      %v306 = vsel %vm292, %v256, 0
      %v309 = vsel %vm292, %v257, 0
      %v312 = vsel %vm292, %v258, 0
      %v315 = vsel %vm292, %v259, 0
      %v318 = vsel %vm292, %v260, 0
      %v321 = vsel %vm292, %v261, 0
      %v324 = vsel %vm292, %v262, 0
      %v327 = vsel %vm292, %v263, 0
      %v330 = vsel %vm292, %v264, 0
      %v333 = vsel %vm292, %v265, 0
      %v336 = vsel %vm292, %v266, 0
      %v339 = vsel %vm292, %v267, 0
      %341 = vmatprep.subr.bf16.mxu0 0
      %342 = vmatpush1.bf16.msra.mxu0 %v284
      %343 = vmatprep.subr.bf16.mxu0 0
      %344 = vmatpush1.bf16.msra.mxu0 %v285
      %345 = vmatprep.subr.bf16.mxu0 0
      %346 = vmatpush1.bf16.msra.mxu0 %v286
      %347 = vmatprep.subr.bf16.mxu0 0
      %348 = vmatpush1.bf16.msra.mxu0 %v287
      %349 = vmatprep.subr.bf16.mxu0 0
      %350 = vmatpush1.bf16.msra.mxu0 0
      %351 = vmatprep.subr.bf16.mxu0 0
      %352 = vmatpush1.bf16.msra.mxu0 0
      %353 = vmatprep.subr.bf16.mxu0 0
      %354 = vmatpush1.bf16.msra.mxu0 0
      %355 = vmatprep.subr.bf16.mxu0 0
      %356 = vmatpush1.bf16.msra.mxu0 0
      %357 = vmatprep.subr.bf16.mxu0 0
      %358 = vmatpush1.bf16.msra.mxu0 0
      %359 = vmatprep.subr.bf16.mxu0 0
      %360 = vmatpush1.bf16.msra.mxu0 0
      %361 = vmatprep.subr.bf16.mxu0 0
      %362 = vmatpush1.bf16.msra.mxu0 0
      %363 = vmatprep.subr.bf16.mxu0 0
      %364 = vmatpush1.bf16.msra.mxu0 0
      %365 = vmatprep.subr.bf16.mxu0 0
      %366 = vmatpush1.bf16.msra.mxu0 0
      %367 = vmatprep.subr.bf16.mxu0 0
      %368 = vmatpush1.bf16.msra.mxu0 0
      %369 = vmatprep.subr.bf16.mxu0 0
      %370 = vmatpush1.bf16.msra.mxu0 0
      %371 = vmatprep.subr.bf16.mxu0 0
      %372 = vmatpush1.bf16.msra.mxu0 0
      %373 = vmatprep.mubr.bf16.mxu0 0
      %374 = vmatmul.mubr.bf16.gmra.mrb[0].mxu0 %v294
      %v375 = vpop.f32.mrb[0].mxu0
      %v376 = vadd.f32 0.0, %v375
      %v377 = vpop.f32.mrb[0].mxu0
      %v378 = vpop.f32.mrb[0].mxu0
      %v379 = vadd.f32 0.0, %v378
      %v380 = vpop.f32.mrb[0].mxu0
      %381 = vmatprep.mubr.bf16.mxu0 0
      %382 = vmatmul.mubr.bf16.gmra.mrb[0].mxu0 %v297
      %v383 = vpop.f32.mrb[0].mxu0
      %v384 = vadd.f32 0.0, %v383
      %v385 = vpop.f32.mrb[0].mxu0
      %v386 = vpop.f32.mrb[0].mxu0
      %v387 = vadd.f32 0.0, %v386
      %v388 = vpop.f32.mrb[0].mxu0
      %389 = vmatprep.mubr.bf16.mxu0 0
      %390 = vmatmul.mubr.bf16.gmra.mrb[0].mxu0 %v300
      %v391 = vpop.f32.mrb[0].mxu0
      %v392 = vadd.f32 0.0, %v391
      %v393 = vpop.f32.mrb[0].mxu0
      %v394 = vpop.f32.mrb[0].mxu0
      %v395 = vadd.f32 0.0, %v394
      %v396 = vpop.f32.mrb[0].mxu0
      %397 = vmatprep.mubr.bf16.mxu0 0
      %398 = vmatmul.mubr.bf16.gmra.mrb[0].mxu0 %v303
      %v399 = vpop.f32.mrb[0].mxu0
      %v400 = vadd.f32 0.0, %v399
      %v401 = vpop.f32.mrb[0].mxu0
      %v402 = vpop.f32.mrb[0].mxu0
      %v403 = vadd.f32 0.0, %v402
      %v404 = vpop.f32.mrb[0].mxu0
      %405 = vmatprep.mubr.bf16.mxu0 0
      %406 = vmatmul.mubr.bf16.gmra.mrb[0].mxu0 %v306
      %v407 = vpop.f32.mrb[0].mxu0
      %v408 = vadd.f32 0.0, %v407
      %v409 = vpop.f32.mrb[0].mxu0
      %v410 = vpop.f32.mrb[0].mxu0
      %v411 = vadd.f32 0.0, %v410
      %v412 = vpop.f32.mrb[0].mxu0
      %413 = vmatprep.mubr.bf16.mxu0 0
      %414 = vmatmul.mubr.bf16.gmra.mrb[0].mxu0 %v309
      %v415 = vpop.f32.mrb[0].mxu0
      %v416 = vadd.f32 0.0, %v415
      %v417 = vpop.f32.mrb[0].mxu0
      %v418 = vpop.f32.mrb[0].mxu0
      %v419 = vadd.f32 0.0, %v418
      %v420 = vpop.f32.mrb[0].mxu0
      %421 = vmatprep.mubr.bf16.mxu0 0
      %422 = vmatmul.mubr.bf16.gmra.mrb[0].mxu0 %v312
      %v423 = vpop.f32.mrb[0].mxu0
      %v424 = vadd.f32 0.0, %v423
      %v425 = vpop.f32.mrb[0].mxu0
      %v426 = vpop.f32.mrb[0].mxu0
      %v427 = vadd.f32 0.0, %v426
      %v428 = vpop.f32.mrb[0].mxu0
      %429 = vmatprep.mubr.bf16.mxu0 0
      %430 = vmatmul.mubr.bf16.gmra.mrb[0].mxu0 %v315
      %v431 = vpop.f32.mrb[0].mxu0
      %v432 = vadd.f32 0.0, %v431
      %v433 = vpop.f32.mrb[0].mxu0
      %v434 = vpop.f32.mrb[0].mxu0
      %v435 = vadd.f32 0.0, %v434
      %v436 = vpop.f32.mrb[0].mxu0
      %437 = vmatprep.mubr.bf16.mxu0 0
      %438 = vmatmul.mubr.bf16.gmra.mrb[0].mxu0 %v318
      %v439 = vpop.f32.mrb[0].mxu0
      %v440 = vadd.f32 0.0, %v439
      %v441 = vpop.f32.mrb[0].mxu0
      %v442 = vpop.f32.mrb[0].mxu0
      %v443 = vadd.f32 0.0, %v442
      %v444 = vpop.f32.mrb[0].mxu0
      %445 = vmatprep.mubr.bf16.mxu0 0
      %446 = vmatmul.mubr.bf16.gmra.mrb[0].mxu0 %v321
      %v447 = vpop.f32.mrb[0].mxu0
      %v448 = vadd.f32 0.0, %v447
      %v449 = vpop.f32.mrb[0].mxu0
      %v450 = vpop.f32.mrb[0].mxu0
      %v451 = vadd.f32 0.0, %v450
      %v452 = vpop.f32.mrb[0].mxu0
      %453 = vmatprep.mubr.bf16.mxu0 0
      %454 = vmatmul.mubr.bf16.gmra.mrb[0].mxu0 %v324
      %v455 = vpop.f32.mrb[0].mxu0
      %v456 = vadd.f32 0.0, %v455
      %v457 = vpop.f32.mrb[0].mxu0
      %v458 = vpop.f32.mrb[0].mxu0
      %v459 = vadd.f32 0.0, %v458
      %v460 = vpop.f32.mrb[0].mxu0
      %461 = vmatprep.mubr.bf16.mxu0 0
      %462 = vmatmul.mubr.bf16.gmra.mrb[0].mxu0 %v327
      %v463 = vpop.f32.mrb[0].mxu0
      %v464 = vadd.f32 0.0, %v463
      %v465 = vpop.f32.mrb[0].mxu0
      %v466 = vpop.f32.mrb[0].mxu0
      %v467 = vadd.f32 0.0, %v466
      %v468 = vpop.f32.mrb[0].mxu0
      %469 = vmatprep.mubr.bf16.mxu0 0
      %470 = vmatmul.mubr.bf16.gmra.mrb[0].mxu0 %v330
      %v471 = vpop.f32.mrb[0].mxu0
      %v472 = vadd.f32 0.0, %v471
      %v473 = vpop.f32.mrb[0].mxu0
      %v474 = vpop.f32.mrb[0].mxu0
      %v475 = vadd.f32 0.0, %v474
      %v476 = vpop.f32.mrb[0].mxu0
      %477 = vmatprep.mubr.bf16.mxu0 0
      %478 = vmatmul.mubr.bf16.gmra.mrb[0].mxu0 %v333
      %v479 = vpop.f32.mrb[0].mxu0
      %v480 = vadd.f32 0.0, %v479
      %v481 = vpop.f32.mrb[0].mxu0
      %v482 = vpop.f32.mrb[0].mxu0
      %v483 = vadd.f32 0.0, %v482
      %v484 = vpop.f32.mrb[0].mxu0
      %485 = vmatprep.mubr.bf16.mxu0 0
      %486 = vmatmul.mubr.bf16.gmra.mrb[0].mxu0 %v336
      %v487 = vpop.f32.mrb[0].mxu0
      %v488 = vadd.f32 0.0, %v487
      %v489 = vpop.f32.mrb[0].mxu0
      %v490 = vpop.f32.mrb[0].mxu0
      %v491 = vadd.f32 0.0, %v490
      %v492 = vpop.f32.mrb[0].mxu0
      %493 = vmatprep.mubr.bf16.mxu0 0
      %494 = vmatmul.mubr.bf16.gmra.mrb[0].mxu0 %v339
      %v495 = vpop.f32.mrb[0].mxu0
      %v496 = vadd.f32 0.0, %v495
      %v497 = vpop.f32.mrb[0].mxu0
      %v498 = vpop.f32.mrb[0].mxu0
      %v499 = vadd.f32 0.0, %v498
      %v500 = vpop.f32.mrb[0].mxu0
      %501 = vdwg.mxu0
      %v502 = vpack.c.bf16 %v379, %v376
      %v503 = vpack.c.bf16 %v387, %v384
      %v504 = vpack.c.bf16 %v395, %v392
      %v505 = vpack.c.bf16 %v403, %v400
      %v506 = vpack.c.bf16 %v411, %v408
      %v507 = vpack.c.bf16 %v419, %v416
      %v508 = vpack.c.bf16 %v427, %v424
      %v509 = vpack.c.bf16 %v435, %v432
      %v510 = vpack.c.bf16 %v443, %v440
      %v511 = vpack.c.bf16 %v451, %v448
      %v512 = vpack.c.bf16 %v459, %v456
      %v513 = vpack.c.bf16 %v467, %v464
      %v514 = vpack.c.bf16 %v475, %v472
      %v515 = vpack.c.bf16 %v483, %v480
      %v516 = vpack.c.bf16 %v491, %v488
      %v517 = vpack.c.bf16 %v499, %v496
      %v534 = vunpack.c.l.b16 %v502
      %v535 = vunpack.c.h.b16 %v502
      %v536 = vunpack.c.l.b16 %v503
      %v537 = vunpack.c.h.b16 %v503
      %v538 = vunpack.c.l.b16 %v504
      %v539 = vunpack.c.h.b16 %v504
      %v540 = vunpack.c.l.b16 %v505
      %v541 = vunpack.c.h.b16 %v505
      %v542 = vunpack.c.l.b16 %v506
      %v543 = vunpack.c.h.b16 %v506
      %v544 = vunpack.c.l.b16 %v507
      %v545 = vunpack.c.h.b16 %v507
      %v546 = vunpack.c.l.b16 %v508
      %v547 = vunpack.c.h.b16 %v508
      %v548 = vunpack.c.l.b16 %v509
      %v549 = vunpack.c.h.b16 %v509
      %v550 = vunpack.c.l.b16 %v510
      %v551 = vunpack.c.h.b16 %v510
      %v552 = vunpack.c.l.b16 %v511
      %v553 = vunpack.c.h.b16 %v511
      %v554 = vunpack.c.l.b16 %v512
      %v555 = vunpack.c.h.b16 %v512
      %v556 = vunpack.c.l.b16 %v513
      %v557 = vunpack.c.h.b16 %v513
      %v558 = vunpack.c.l.b16 %v514
      %v559 = vunpack.c.h.b16 %v514
      %v560 = vunpack.c.l.b16 %v515
      %v561 = vunpack.c.h.b16 %v515
      %v562 = vunpack.c.l.b16 %v516
      %v563 = vunpack.c.h.b16 %v516
      %v564 = vunpack.c.l.b16 %v517
      %v565 = vunpack.c.h.b16 %v517
      %v566 = vpack.c.b16 %v534, %v534
      %v567 = vpack.c.b16 %v535, %v535
      %v568 = vpack.c.b16 %v536, %v536
      %v569 = vpack.c.b16 %v537, %v537
      %v570 = vpack.c.b16 %v538, %v538
      %v571 = vpack.c.b16 %v539, %v539
      %v572 = vpack.c.b16 %v540, %v540
      %v573 = vpack.c.b16 %v541, %v541
      %v574 = vpack.c.b16 %v542, %v542
      %v575 = vpack.c.b16 %v543, %v543
      %v576 = vpack.c.b16 %v544, %v544
      %v577 = vpack.c.b16 %v545, %v545
      %v578 = vpack.c.b16 %v546, %v546
      %v579 = vpack.c.b16 %v547, %v547
      %v580 = vpack.c.b16 %v548, %v548
      %v581 = vpack.c.b16 %v549, %v549
      %v582 = vpack.c.b16 %v550, %v550
      %v583 = vpack.c.b16 %v551, %v551
      %v584 = vpack.c.b16 %v552, %v552
      %v585 = vpack.c.b16 %v553, %v553
      %v586 = vpack.c.b16 %v554, %v554
      %v587 = vpack.c.b16 %v555, %v555
      %v588 = vpack.c.b16 %v556, %v556
      %v589 = vpack.c.b16 %v557, %v557
      %v590 = vpack.c.b16 %v558, %v558
      %v591 = vpack.c.b16 %v559, %v559
      %v592 = vpack.c.b16 %v560, %v560
      %v593 = vpack.c.b16 %v561, %v561
      %v594 = vpack.c.b16 %v562, %v562
      %v595 = vpack.c.b16 %v563, %v563
      %v596 = vpack.c.b16 %v564, %v564
      %v597 = vpack.c.b16 %v565, %v565
      %630 = vst [vmem:[%s145] sm:$0xf] %v566
      %631 = vst [vmem:[%s145 + $0x4] sm:$0xf] %v567
      %632 = vst [vmem:[%s145 + $0x8] sm:$0xf] %v568
      %633 = vst [vmem:[%s145 + $0xc] sm:$0xf] %v569
      %634 = vst [vmem:[%s145 + $0x10] sm:$0xf] %v570
      %635 = vst [vmem:[%s145 + $0x14] sm:$0xf] %v571
      %636 = vst [vmem:[%s145 + $0x18] sm:$0xf] %v572
      %637 = vst [vmem:[%s145 + $0x1c] sm:$0xf] %v573
      %638 = vst [vmem:[%s145 + $0x20] sm:$0xf] %v574
      %639 = vst [vmem:[%s145 + $0x24] sm:$0xf] %v575
      %640 = vst [vmem:[%s145 + $0x28] sm:$0xf] %v576
      %641 = vst [vmem:[%s145 + $0x2c] sm:$0xf] %v577
      %642 = vst [vmem:[%s145 + $0x30] sm:$0xf] %v578
      %643 = vst [vmem:[%s145 + $0x34] sm:$0xf] %v579
      %644 = vst [vmem:[%s145 + $0x38] sm:$0xf] %v580
      %645 = vst [vmem:[%s145 + $0x3c] sm:$0xf] %v581
      %646 = vst [vmem:[%s145 + $0x40] sm:$0xf] %v582
      %647 = vst [vmem:[%s145 + $0x44] sm:$0xf] %v583
      %648 = vst [vmem:[%s145 + $0x48] sm:$0xf] %v584
      %649 = vst [vmem:[%s145 + $0x4c] sm:$0xf] %v585
      %650 = vst [vmem:[%s145 + $0x50] sm:$0xf] %v586
      %651 = vst [vmem:[%s145 + $0x54] sm:$0xf] %v587
      %652 = vst [vmem:[%s145 + $0x58] sm:$0xf] %v588
      %653 = vst [vmem:[%s145 + $0x5c] sm:$0xf] %v589
      %654 = vst [vmem:[%s145 + $0x60] sm:$0xf] %v590
      %655 = vst [vmem:[%s145 + $0x64] sm:$0xf] %v591
      %656 = vst [vmem:[%s145 + $0x68] sm:$0xf] %v592
      %657 = vst [vmem:[%s145 + $0x6c] sm:$0xf] %v593
      %658 = vst [vmem:[%s145 + $0x70] sm:$0xf] %v594
      %659 = vst [vmem:[%s145 + $0x74] sm:$0xf] %v595
      %660 = vst [vmem:[%s145 + $0x78] sm:$0xf] %v596
      %661 = vst [vmem:[%s145 + $0x7c] sm:$0xf] %v597
      %s662 = smul.u32 32, %s13
      %p663 = scmp.lt.s32.totalorder %s662, 63
      %s664 = scalar_select %p663, %s662, 63
      %s665 = smul.addr %s664, 4
      %s666 = scalar_lea.vmem %s2, %s665
      // Predicated region
      $region29: #{gcn_forward.3} parent=27 // pred_check
        %p667 = pneg %p78
      $region30: #{gcn_forward.3} parent=27 // pred_check_branch
        %669 = sbr.rel (%p667) target = $region32
      $region31: #{gcn_forward.3} parent=27 // pred_region
        %s670 = smul.u32 32, %s13
      $region32: #{gcn_forward.3} parent=27 // pred_fallthru
        _
    $region28: #{gcn_forward.3} parent=5 // pred_fallthru
      _
    %p671 = scmp.le.s32.totalorder 2, %s8
    // Predicated region
    $region33: #{gcn_forward.3} parent=5 // pred_check
      %p672 = pneg %p671
    $region34: #{gcn_forward.3} parent=5 // pred_check_branch
      %674 = sbr.rel (%p672) target = $region36
    $region35: #{gcn_forward.3} parent=5 // pred_region
      %s675 = ssub.s32 %s8, 2
      // Predicated region
      $region37: #{gcn_forward.3} parent=35 // pred_check
        %p676 = pneg %p84
      $region38: #{gcn_forward.3} parent=35 // pred_check_branch
        %678 = sbr.rel (%p676) target = $region40
      $region39: #{gcn_forward.3} parent=35 // pred_region
        %s679 = smul.u32 32, %s14
        %p680 = scmp.lt.s32.totalorder %s679, 63
        %s681 = scalar_select %p680, %s679, 63
        %s682 = smul.addr %s681, 4
        %s683 = scalar_lea.vmem %s2, %s682
      $region40: #{gcn_forward.3} parent=35 // pred_fallthru
        _
    $region36: #{gcn_forward.3} parent=5 // pred_fallthru
      _
  $region6: #{gcn_forward.3} parent=0 // loop_footer
    %s12 = sadd.s32 1, %s8
  $region7: #{gcn_forward.3} parent=0 // loop_footer_branch
    %7 = sbr.rel target = $region3
  $region8: #{gcn_forward.3} parent=0 // loop_exit
    _

// kernel: gcn_forward.5
$region0: #{gcn_forward.5}
  #allocation0 [shape = 'u32[]', space=smem, size = 0x4, offset = 0x4, fixed_abs, tag = 'smem constant byte address 0x4 - core index']
  #allocation1 [shape = 'u32[144,128]{1,0:T(1,128)}', space=vmem, size = 0x12000, scoped, tag = 'internal scratch']
  %s0 = inlined_call_operand.vmem [shape: bf16[512,512], index: 0, kind: input, shape index: {}]
  %s1 = inlined_call_operand.vmem [shape: bf16[512,128], index: 1, kind: input, shape index: {}]
  %s2 = inlined_call_operand.vmem [shape: f32[1,128], index: 2, kind: input, shape index: {}]
  %s3 = inlined_call_operand.vmem [shape: f32[512,128], index: 3, kind: output, shape index: {}]
  %s4 = sld [smem:[#allocation0]]
  $region45: #{gcn_forward.5} parent=0
    _
  %s6 = ssub.s32 1, %s4
  %s7 = scalar_select 0, %s6, %s4
  loop: start=0, step=1, limit=4
  $region2: #{gcn_forward.5} parent=0 // loop_pre_header
    _
  $region3: #{gcn_forward.5} parent=0 // loop_header
    %s9 = sphi 0, %s13
    %p10 = scmp.ge.s32.totalorder %s9, 4
    %s19 = sphi 0, %s21
    %s22 = sphi 0, %s19
    %s23 = sphi 0, %s22
    %s39 = sphi 0, %s23
    %s43 = sphi 0, %s43
    %s45 = sphi 0, %s43
    %s46 = sphi 0, %s45
    %s60 = sphi 0, %s46
    %s64 = sphi 0, %s64
    %s66 = sphi 0, %s64
    %s67 = sphi 0, %s66
    %s81 = sphi 0, %s67
    %s87 = sphi 0, %s89
    %s90 = sphi 0, %s87
    %s91 = sphi 0, %s90
    %s107 = sphi 0, %s91
  $region4: #{gcn_forward.5} parent=0 // loop_header_branch
    %12 = sbr.rel (%p10) target = $region8
  $region5: #{gcn_forward.5} parent=0 // loop_body
    %s14 = ssub.s32 %s9, 1
    %s15 = ssub.s32 %s9, 2
    %s16 = sadd.s32 %s9, 1
    %s17 = ssub.s32 %s9, %s16
    %p18 = scmp.eq.s32.totalorder %s17, 0
    %s20 = sadd.s32 %s19, 1
    %s21 = scalar_select %p18, %s19, %s20
    %p24 = pneg %p18
    %p25 = scmp.eq.s32.totalorder %s9, 1
    %p26 = por %p24, %p25
    %p27 = scmp.ne.s32.totalorder %s19, %s22
    %p28 = scmp.eq.s32.totalorder %s9, 0
    %p29 = por %p27, %p28
    %p30 = scmp.ne.s32.totalorder %s19, %s22
    %p31 = scmp.eq.s32.totalorder %s14, 1
    %p32 = por %p30, %p31
    %p33 = scmp.ne.s32.totalorder %s22, %s23
    %p34 = scmp.eq.s32.totalorder %s14, 0
    %p35 = por %p33, %p34
    %p36 = scmp.ne.s32.totalorder %s22, %s23
    %p37 = scmp.eq.s32.totalorder %s15, 1
    %p38 = por %p36, %p37
    %p40 = scmp.ne.s32.totalorder %s23, %s39
    %p41 = scmp.eq.s32.totalorder %s15, 0
    %p42 = por %p40, %p41
    %s44 = sadd.s32 %s43, 1
    %p47 = scmp.eq.s32.totalorder %s9, 1
    %p48 = scmp.ne.s32.totalorder %s43, %s45
    %p49 = scmp.eq.s32.totalorder %s9, 0
    %p50 = por %p48, %p49
    %p51 = scmp.ne.s32.totalorder %s43, %s45
    %p52 = scmp.eq.s32.totalorder %s14, 1
    %p53 = por %p51, %p52
    %p54 = scmp.ne.s32.totalorder %s45, %s46
    %p55 = scmp.eq.s32.totalorder %s14, 0
    %p56 = por %p54, %p55
    %p57 = scmp.ne.s32.totalorder %s45, %s46
    %p58 = scmp.eq.s32.totalorder %s15, 1
    %p59 = por %p57, %p58
    %p61 = scmp.ne.s32.totalorder %s46, %s60
    %p62 = scmp.eq.s32.totalorder %s15, 0
    %p63 = por %p61, %p62
    %s65 = sadd.s32 %s64, 1
    %p68 = scmp.eq.s32.totalorder %s9, 1
    %p69 = scmp.ne.s32.totalorder %s64, %s66
    %p70 = scmp.eq.s32.totalorder %s9, 0
    %p71 = por %p69, %p70
    %p72 = scmp.ne.s32.totalorder %s64, %s66
    %p73 = scmp.eq.s32.totalorder %s14, 1
    %p74 = por %p72, %p73
    %p75 = scmp.ne.s32.totalorder %s66, %s67
    %p76 = scmp.eq.s32.totalorder %s14, 0
    %p77 = por %p75, %p76
    %p78 = scmp.ne.s32.totalorder %s66, %s67
    %p79 = scmp.eq.s32.totalorder %s15, 1
    %p80 = por %p78, %p79
    %p82 = scmp.ne.s32.totalorder %s67, %s81
    %p83 = scmp.eq.s32.totalorder %s15, 0
    %p84 = por %p82, %p83
    %s85 = ssub.s32 %s9, %s16
    %p86 = scmp.eq.s32.totalorder %s85, 0
    %s88 = sadd.s32 %s87, 1
    %s89 = scalar_select %p86, %s87, %s88
    %p92 = pneg %p86
    %p93 = scmp.eq.s32.totalorder %s9, 1
    %p94 = por %p92, %p93
    %p95 = scmp.ne.s32.totalorder %s87, %s90
    %p96 = scmp.eq.s32.totalorder %s9, 0
    %p97 = por %p95, %p96
    %p98 = scmp.ne.s32.totalorder %s87, %s90
    %p99 = scmp.eq.s32.totalorder %s14, 1
    %p100 = por %p98, %p99
    %p101 = scmp.ne.s32.totalorder %s90, %s91
    %p102 = scmp.eq.s32.totalorder %s14, 0
    %p103 = por %p101, %p102
    %p104 = scmp.ne.s32.totalorder %s90, %s91
    %p105 = scmp.eq.s32.totalorder %s15, 1
    %p106 = por %p104, %p105
    %p108 = scmp.ne.s32.totalorder %s91, %s107
    %p109 = scmp.eq.s32.totalorder %s15, 0
    %p110 = por %p108, %p109
    %p111 = scmp.le.s32.totalorder 1, %s9
    %p112 = scmp.lt.s32.totalorder %s9, 3
    %p113 = pnand %p111, %p112
    %p114 = pneg %p113
    // Predicated region
    $region9: #{gcn_forward.5} parent=5 // pred_check
      _
    $region10: #{gcn_forward.5} parent=5 // pred_check_branch
      %116 = sbr.rel (%p113) target = $region12
    $region11: #{gcn_forward.5} parent=5 // pred_region
      %s117 = ssub.s32 %s9, 1
      // Predicated region
      $region13: #{gcn_forward.5} parent=11 // pred_check
        %p118 = pneg %p56
      $region14: #{gcn_forward.5} parent=11 // pred_check_branch
        %120 = sbr.rel (%p118) target = $region16
      $region15: #{gcn_forward.5} parent=11 // pred_region
        _
      $region16: #{gcn_forward.5} parent=11 // pred_fallthru
        _
      // Predicated region
      $region17: #{gcn_forward.5} parent=11 // pred_check
        %p121 = pneg %p77
      $region18: #{gcn_forward.5} parent=11 // pred_check_branch
        %123 = sbr.rel (%p121) target = $region20
      $region19: #{gcn_forward.5} parent=11 // pred_region
        _
      $region20: #{gcn_forward.5} parent=11 // pred_fallthru
        _
    $region12: #{gcn_forward.5} parent=5 // pred_fallthru
      _
    %p124 = scmp.lt.s32.totalorder %s9, 2
    // Predicated region
    $region21: #{gcn_forward.5} parent=5 // pred_check
      %p125 = pneg %p124
    $region22: #{gcn_forward.5} parent=5 // pred_check_branch
      %127 = sbr.rel (%p125) target = $region24
    $region23: #{gcn_forward.5} parent=5 // pred_region
      // Predicated region
      $region25: #{gcn_forward.5} parent=23 // pred_check
        %p128 = pneg %p29
      $region26: #{gcn_forward.5} parent=23 // pred_check_branch
        %130 = sbr.rel (%p128) target = $region28
      $region27: #{gcn_forward.5} parent=23 // pred_region
        %s131 = smul.u32 32, %s9
        %p132 = scmp.lt.s32.totalorder %s131, 63
        %s133 = scalar_select %p132, %s131, 63
        %s134 = smul.addr %s133, 4
        %s135 = smul.addr %s134, 4
        %s136 = scalar_lea.vmem %s0, %s135
        %s137 = smul.u32 32, %s9
      $region28: #{gcn_forward.5} parent=23 // pred_fallthru
        _
    $region24: #{gcn_forward.5} parent=5 // pred_fallthru
      _
    %p138 = scmp.le.s32.totalorder 1, %s9
    %p139 = scmp.lt.s32.totalorder %s9, 3
    %p140 = pnand %p138, %p139
    %p141 = pneg %p140
    // Predicated region
    $region29: #{gcn_forward.5} parent=5 // pred_check
      _
    $region30: #{gcn_forward.5} parent=5 // pred_check_branch
      %143 = sbr.rel (%p140) target = $region32
    $region31: #{gcn_forward.5} parent=5 // pred_region
      %s144 = ssub.s32 %s9, 1
      %s145 = smul.u32 32, %s14
      %p146 = scmp.lt.s32.totalorder %s145, 63
      %s147 = scalar_select %p146, %s145, 63
      %s148 = smul.addr %s147, 4
      %s149 = smul.addr %s148, 4
      %s150 = scalar_lea.vmem %s0, %s149
      %p151 = pneg %p35
      %p152 = pneg %p32
      %p153 = pneg %p56
      %p154 = pneg %p53
      %p155 = pneg %p77
      %p156 = pneg %p74
      %p157 = pneg %p103
      %p158 = pneg %p100
      %s159 = smul.u32 32, %s14
      %p160 = scmp.lt.s32.totalorder %s159, 63
      %s161 = scalar_select %p160, %s159, 63
      %s162 = smul.addr %s161, 8
      %s163 = scalar_lea.vmem %s3, %s162
      %s164 = smul.u32 32, %s14
      %p165 = scmp.lt.s32.totalorder %s164, 63
      %s166 = scalar_select %p165, %s164, 63
      %s167 = smul.addr %s166, 4
      %s168 = smul.addr %s167, 4
      %s169 = scalar_lea.vmem %s0, %s168
      %s170 = smul.u32 32, %s14
      %s171 = smul.u32 32, %s14
      %p172 = scmp.lt.s32.totalorder %s171, 63
      %s173 = scalar_select %p172, %s171, 63
      %s174 = smul.addr %s173, 8
      %s175 = scalar_lea.vmem %s3, %s174
      %s176 = smul.u32 32, %s14
      %v178 = vld [vmem:[%s169] sm:$0xff]
      %v179 = vld [vmem:[%s169 + $0x8] sm:$0xff]
      %v180 = vld [vmem:[%s169 + $0x10] sm:$0xff]
      %v181 = vld [vmem:[%s169 + $0x18] sm:$0xff]
      %v182 = vld [vmem:[%s169 + $0x20] sm:$0xff]
      %v183 = vld [vmem:[%s169 + $0x28] sm:$0xff]
      %v184 = vld [vmem:[%s169 + $0x30] sm:$0xff]
      %v185 = vld [vmem:[%s169 + $0x38] sm:$0xff]
      %v186 = vld [vmem:[%s169 + $0x40] sm:$0xff]
      %v187 = vld [vmem:[%s169 + $0x48] sm:$0xff]
      %v188 = vld [vmem:[%s169 + $0x50] sm:$0xff]
      %v189 = vld [vmem:[%s169 + $0x58] sm:$0xff]
      %v190 = vld [vmem:[%s169 + $0x60] sm:$0xff]
      %v191 = vld [vmem:[%s169 + $0x68] sm:$0xff]
      %v192 = vld [vmem:[%s169 + $0x70] sm:$0xff]
      %v193 = vld [vmem:[%s169 + $0x78] sm:$0xff]
      %v194 = vld [vmem:[%s169 + $0x80] sm:$0xff]
      %v195 = vld [vmem:[%s169 + $0x88] sm:$0xff]
      %v196 = vld [vmem:[%s169 + $0x90] sm:$0xff]
      %v197 = vld [vmem:[%s169 + $0x98] sm:$0xff]
      %v198 = vld [vmem:[%s169 + $0xa0] sm:$0xff]
      %v199 = vld [vmem:[%s169 + $0xa8] sm:$0xff]
      %v200 = vld [vmem:[%s169 + $0xb0] sm:$0xff]
      %v201 = vld [vmem:[%s169 + $0xb8] sm:$0xff]
      %v202 = vld [vmem:[%s169 + $0xc0] sm:$0xff]
      %v203 = vld [vmem:[%s169 + $0xc8] sm:$0xff]
      %v204 = vld [vmem:[%s169 + $0xd0] sm:$0xff]
      %v205 = vld [vmem:[%s169 + $0xd8] sm:$0xff]
      %v206 = vld [vmem:[%s169 + $0xe0] sm:$0xff]
      %v207 = vld [vmem:[%s169 + $0xe8] sm:$0xff]
      %v208 = vld [vmem:[%s169 + $0xf0] sm:$0xff]
      %v209 = vld [vmem:[%s169 + $0xf8] sm:$0xff]
      %v210 = vld [vmem:[%s169 + $0x100] sm:$0xff]
      %v211 = vld [vmem:[%s169 + $0x108] sm:$0xff]
      %v212 = vld [vmem:[%s169 + $0x110] sm:$0xff]
      %v213 = vld [vmem:[%s169 + $0x118] sm:$0xff]
      %v214 = vld [vmem:[%s169 + $0x120] sm:$0xff]
      %v215 = vld [vmem:[%s169 + $0x128] sm:$0xff]
      %v216 = vld [vmem:[%s169 + $0x130] sm:$0xff]
      %v217 = vld [vmem:[%s169 + $0x138] sm:$0xff]
      %v218 = vld [vmem:[%s169 + $0x140] sm:$0xff]
      %v219 = vld [vmem:[%s169 + $0x148] sm:$0xff]
      %v220 = vld [vmem:[%s169 + $0x150] sm:$0xff]
      %v221 = vld [vmem:[%s169 + $0x158] sm:$0xff]
      %v222 = vld [vmem:[%s169 + $0x160] sm:$0xff]
      %v223 = vld [vmem:[%s169 + $0x168] sm:$0xff]
      %v224 = vld [vmem:[%s169 + $0x170] sm:$0xff]
      %v225 = vld [vmem:[%s169 + $0x178] sm:$0xff]
      %v226 = vld [vmem:[%s169 + $0x180] sm:$0xff]
      %v227 = vld [vmem:[%s169 + $0x188] sm:$0xff]
      %v228 = vld [vmem:[%s169 + $0x190] sm:$0xff]
      %v229 = vld [vmem:[%s169 + $0x198] sm:$0xff]
      %v230 = vld [vmem:[%s169 + $0x1a0] sm:$0xff]
      %v231 = vld [vmem:[%s169 + $0x1a8] sm:$0xff]
      %v232 = vld [vmem:[%s169 + $0x1b0] sm:$0xff]
      %v233 = vld [vmem:[%s169 + $0x1b8] sm:$0xff]
      %v234 = vld [vmem:[%s169 + $0x1c0] sm:$0xff]
      %v235 = vld [vmem:[%s169 + $0x1c8] sm:$0xff]
      %v236 = vld [vmem:[%s169 + $0x1d0] sm:$0xff]
      %v237 = vld [vmem:[%s169 + $0x1d8] sm:$0xff]
      %v238 = vld [vmem:[%s169 + $0x1e0] sm:$0xff]
      %v239 = vld [vmem:[%s169 + $0x1e8] sm:$0xff]
      %v240 = vld [vmem:[%s169 + $0x1f0] sm:$0xff]
      %v241 = vld [vmem:[%s169 + $0x1f8] sm:$0xff]
      %v242 = vld [vmem:[%s1] sm:$0xf]
      %v243 = vld [vmem:[%s1 + $0x4] sm:$0xf]
      %v244 = vld [vmem:[%s1 + $0x8] sm:$0xf]
      %v245 = vld [vmem:[%s1 + $0xc] sm:$0xf]
      %v246 = vld [vmem:[%s1 + $0x10] sm:$0xf]
      %v247 = vld [vmem:[%s1 + $0x14] sm:$0xf]
      %v248 = vld [vmem:[%s1 + $0x18] sm:$0xf]
      %v249 = vld [vmem:[%s1 + $0x1c] sm:$0xf]
      %v250 = vld [vmem:[%s1 + $0x20] sm:$0xf]
      %v251 = vld [vmem:[%s1 + $0x24] sm:$0xf]
      %v252 = vld [vmem:[%s1 + $0x28] sm:$0xf]
      %v253 = vld [vmem:[%s1 + $0x2c] sm:$0xf]
      %v254 = vld [vmem:[%s1 + $0x30] sm:$0xf]
      %v255 = vld [vmem:[%s1 + $0x34] sm:$0xf]
      %v256 = vld [vmem:[%s1 + $0x38] sm:$0xf]
      %v257 = vld [vmem:[%s1 + $0x3c] sm:$0xf]
      %v258 = vld [vmem:[%s1 + $0x40] sm:$0xf]
      %v259 = vld [vmem:[%s1 + $0x44] sm:$0xf]
      %v260 = vld [vmem:[%s1 + $0x48] sm:$0xf]
      %v261 = vld [vmem:[%s1 + $0x4c] sm:$0xf]
      %v262 = vld [vmem:[%s1 + $0x50] sm:$0xf]
      %v263 = vld [vmem:[%s1 + $0x54] sm:$0xf]
      %v264 = vld [vmem:[%s1 + $0x58] sm:$0xf]
      %v265 = vld [vmem:[%s1 + $0x5c] sm:$0xf]
      %v266 = vld [vmem:[%s1 + $0x60] sm:$0xf]
      %v267 = vld [vmem:[%s1 + $0x64] sm:$0xf]
      %v268 = vld [vmem:[%s1 + $0x68] sm:$0xf]
      %v269 = vld [vmem:[%s1 + $0x6c] sm:$0xf]
      %v270 = vld [vmem:[%s1 + $0x70] sm:$0xf]
      %v271 = vld [vmem:[%s1 + $0x74] sm:$0xf]
      %v272 = vld [vmem:[%s1 + $0x78] sm:$0xf]
      %v273 = vld [vmem:[%s1 + $0x7c] sm:$0xf]
      %v274 = vld [vmem:[%s1 + $0x80] sm:$0xf]
      %v275 = vld [vmem:[%s1 + $0x84] sm:$0xf]
      %v276 = vld [vmem:[%s1 + $0x88] sm:$0xf]
      %v277 = vld [vmem:[%s1 + $0x8c] sm:$0xf]
      %v278 = vld [vmem:[%s1 + $0x90] sm:$0xf]
      %v279 = vld [vmem:[%s1 + $0x94] sm:$0xf]
      %v280 = vld [vmem:[%s1 + $0x98] sm:$0xf]
      %v281 = vld [vmem:[%s1 + $0x9c] sm:$0xf]
      %v282 = vld [vmem:[%s1 + $0xa0] sm:$0xf]
      %v283 = vld [vmem:[%s1 + $0xa4] sm:$0xf]
      %v284 = vld [vmem:[%s1 + $0xa8] sm:$0xf]
      %v285 = vld [vmem:[%s1 + $0xac] sm:$0xf]
      %v286 = vld [vmem:[%s1 + $0xb0] sm:$0xf]
      %v287 = vld [vmem:[%s1 + $0xb4] sm:$0xf]
      %v288 = vld [vmem:[%s1 + $0xb8] sm:$0xf]
      %v289 = vld [vmem:[%s1 + $0xbc] sm:$0xf]
      %v290 = vld [vmem:[%s1 + $0xc0] sm:$0xf]
      %v291 = vld [vmem:[%s1 + $0xc4] sm:$0xf]
      %v292 = vld [vmem:[%s1 + $0xc8] sm:$0xf]
      %v293 = vld [vmem:[%s1 + $0xcc] sm:$0xf]
      %v294 = vld [vmem:[%s1 + $0xd0] sm:$0xf]
      %v295 = vld [vmem:[%s1 + $0xd4] sm:$0xf]
      %v296 = vld [vmem:[%s1 + $0xd8] sm:$0xf]
      %v297 = vld [vmem:[%s1 + $0xdc] sm:$0xf]
      %v298 = vld [vmem:[%s1 + $0xe0] sm:$0xf]
      %v299 = vld [vmem:[%s1 + $0xe4] sm:$0xf]
      %v300 = vld [vmem:[%s1 + $0xe8] sm:$0xf]
      %v301 = vld [vmem:[%s1 + $0xec] sm:$0xf]
      %v302 = vld [vmem:[%s1 + $0xf0] sm:$0xf]
      %v303 = vld [vmem:[%s1 + $0xf4] sm:$0xf]
      %v304 = vld [vmem:[%s1 + $0xf8] sm:$0xf]
      %v305 = vld [vmem:[%s1 + $0xfc] sm:$0xf]
      %v306 = vld [vmem:[%s2] sm:$0x1]
      %v308 = vlaneseq
      %v309 = vshrl.u32 %v308, 7
      %v310 = vsub.s32 0, %v309
      %v311 = vrot.slane %v306, %v310
      %v377 = vunpack.c.l.b16 %v178
      %v378 = vunpack.c.h.b16 %v178
      %v379 = vunpack.c.l.b16 %v179
      %v380 = vunpack.c.h.b16 %v179
      %v381 = vunpack.c.l.b16 %v180
      %v382 = vunpack.c.h.b16 %v180
      %v383 = vunpack.c.l.b16 %v181
      %v384 = vunpack.c.h.b16 %v181
      %v385 = vunpack.c.l.b16 %v182
      %v386 = vunpack.c.h.b16 %v182
      %v387 = vunpack.c.l.b16 %v183
      %v388 = vunpack.c.h.b16 %v183
      %v389 = vunpack.c.l.b16 %v184
      %v390 = vunpack.c.h.b16 %v184
      %v391 = vunpack.c.l.b16 %v185
      %v392 = vunpack.c.h.b16 %v185
      %v393 = vunpack.c.l.b16 %v186
      %v394 = vunpack.c.h.b16 %v186
      %v395 = vunpack.c.l.b16 %v187
      %v396 = vunpack.c.h.b16 %v187
      %v397 = vunpack.c.l.b16 %v188
      %v398 = vunpack.c.h.b16 %v188
      %v399 = vunpack.c.l.b16 %v189
      %v400 = vunpack.c.h.b16 %v189
      %v401 = vunpack.c.l.b16 %v190
      %v402 = vunpack.c.h.b16 %v190
      %v403 = vunpack.c.l.b16 %v191
      %v404 = vunpack.c.h.b16 %v191
      %v405 = vunpack.c.l.b16 %v192
      %v406 = vunpack.c.h.b16 %v192
      %v407 = vunpack.c.l.b16 %v193
      %v408 = vunpack.c.h.b16 %v193
      %v409 = vunpack.c.l.b16 %v194
      %v410 = vunpack.c.h.b16 %v194
      %v411 = vunpack.c.l.b16 %v195
      %v412 = vunpack.c.h.b16 %v195
      %v413 = vunpack.c.l.b16 %v196
      %v414 = vunpack.c.h.b16 %v196
      %v415 = vunpack.c.l.b16 %v197
      %v416 = vunpack.c.h.b16 %v197
      %v417 = vunpack.c.l.b16 %v198
      %v418 = vunpack.c.h.b16 %v198
      %v419 = vunpack.c.l.b16 %v199
      %v420 = vunpack.c.h.b16 %v199
      %v421 = vunpack.c.l.b16 %v200
      %v422 = vunpack.c.h.b16 %v200
      %v423 = vunpack.c.l.b16 %v201
      %v424 = vunpack.c.h.b16 %v201
      %v425 = vunpack.c.l.b16 %v202
      %v426 = vunpack.c.h.b16 %v202
      %v427 = vunpack.c.l.b16 %v203
      %v428 = vunpack.c.h.b16 %v203
      %v429 = vunpack.c.l.b16 %v204
      %v430 = vunpack.c.h.b16 %v204
      %v431 = vunpack.c.l.b16 %v205
      %v432 = vunpack.c.h.b16 %v205
      %v433 = vunpack.c.l.b16 %v206
      %v434 = vunpack.c.h.b16 %v206
      %v435 = vunpack.c.l.b16 %v207
      %v436 = vunpack.c.h.b16 %v207
      %v437 = vunpack.c.l.b16 %v208
      %v438 = vunpack.c.h.b16 %v208
      %v439 = vunpack.c.l.b16 %v209
      %v440 = vunpack.c.h.b16 %v209
      %v441 = vunpack.c.l.b16 %v210
      %v442 = vunpack.c.h.b16 %v210
      %v443 = vunpack.c.l.b16 %v211
      %v444 = vunpack.c.h.b16 %v211
      %v445 = vunpack.c.l.b16 %v212
      %v446 = vunpack.c.h.b16 %v212
      %v447 = vunpack.c.l.b16 %v213
      %v448 = vunpack.c.h.b16 %v213
      %v449 = vunpack.c.l.b16 %v214
      %v450 = vunpack.c.h.b16 %v214
      %v451 = vunpack.c.l.b16 %v215
      %v452 = vunpack.c.h.b16 %v215
      %v453 = vunpack.c.l.b16 %v216
      %v454 = vunpack.c.h.b16 %v216
      %v455 = vunpack.c.l.b16 %v217
      %v456 = vunpack.c.h.b16 %v217
      %v457 = vunpack.c.l.b16 %v218
      %v458 = vunpack.c.h.b16 %v218
      %v459 = vunpack.c.l.b16 %v219
      %v460 = vunpack.c.h.b16 %v219
      %v461 = vunpack.c.l.b16 %v220
      %v462 = vunpack.c.h.b16 %v220
      %v463 = vunpack.c.l.b16 %v221
      %v464 = vunpack.c.h.b16 %v221
      %v465 = vunpack.c.l.b16 %v222
      %v466 = vunpack.c.h.b16 %v222
      %v467 = vunpack.c.l.b16 %v223
      %v468 = vunpack.c.h.b16 %v223
      %v469 = vunpack.c.l.b16 %v224
      %v470 = vunpack.c.h.b16 %v224
      %v471 = vunpack.c.l.b16 %v225
      %v472 = vunpack.c.h.b16 %v225
      %v473 = vunpack.c.l.b16 %v226
      %v474 = vunpack.c.h.b16 %v226
      %v475 = vunpack.c.l.b16 %v227
      %v476 = vunpack.c.h.b16 %v227
      %v477 = vunpack.c.l.b16 %v228
      %v478 = vunpack.c.h.b16 %v228
      %v479 = vunpack.c.l.b16 %v229
      %v480 = vunpack.c.h.b16 %v229
      %v481 = vunpack.c.l.b16 %v230
      %v482 = vunpack.c.h.b16 %v230
      %v483 = vunpack.c.l.b16 %v231
      %v484 = vunpack.c.h.b16 %v231
      %v485 = vunpack.c.l.b16 %v232
      %v486 = vunpack.c.h.b16 %v232
      %v487 = vunpack.c.l.b16 %v233
      %v488 = vunpack.c.h.b16 %v233
      %v489 = vunpack.c.l.b16 %v234
      %v490 = vunpack.c.h.b16 %v234
      %v491 = vunpack.c.l.b16 %v235
      %v492 = vunpack.c.h.b16 %v235
      %v493 = vunpack.c.l.b16 %v236
      %v494 = vunpack.c.h.b16 %v236
      %v495 = vunpack.c.l.b16 %v237
      %v496 = vunpack.c.h.b16 %v237
      %v497 = vunpack.c.l.b16 %v238
      %v498 = vunpack.c.h.b16 %v238
      %v499 = vunpack.c.l.b16 %v239
      %v500 = vunpack.c.h.b16 %v239
      %v501 = vunpack.c.l.b16 %v240
      %v502 = vunpack.c.h.b16 %v240
      %v503 = vunpack.c.l.b16 %v241
      %v504 = vunpack.c.h.b16 %v241
      %v505 = vpack.c.b16 %v381, %v377
      %v506 = vpack.c.b16 %v382, %v378
      %v507 = vpack.c.b16 %v383, %v379
      %v508 = vpack.c.b16 %v384, %v380
      %v509 = vpack.c.b16 %v389, %v385
      %v510 = vpack.c.b16 %v390, %v386
      %v511 = vpack.c.b16 %v391, %v387
      %v512 = vpack.c.b16 %v392, %v388
      %v513 = vpack.c.b16 %v397, %v393
      %v514 = vpack.c.b16 %v398, %v394
      %v515 = vpack.c.b16 %v399, %v395
      %v516 = vpack.c.b16 %v400, %v396
      %v517 = vpack.c.b16 %v405, %v401
      %v518 = vpack.c.b16 %v406, %v402
      %v519 = vpack.c.b16 %v407, %v403
      %v520 = vpack.c.b16 %v408, %v404
      %v521 = vpack.c.b16 %v413, %v409
      %v522 = vpack.c.b16 %v414, %v410
      %v523 = vpack.c.b16 %v415, %v411
      %v524 = vpack.c.b16 %v416, %v412
      %v525 = vpack.c.b16 %v421, %v417
      %v526 = vpack.c.b16 %v422, %v418
      %v527 = vpack.c.b16 %v423, %v419
      %v528 = vpack.c.b16 %v424, %v420
      %v529 = vpack.c.b16 %v429, %v425
      %v530 = vpack.c.b16 %v430, %v426
      %v531 = vpack.c.b16 %v431, %v427
      %v532 = vpack.c.b16 %v432, %v428
      %v533 = vpack.c.b16 %v437, %v433
      %v534 = vpack.c.b16 %v438, %v434
      %v535 = vpack.c.b16 %v439, %v435
      %v536 = vpack.c.b16 %v440, %v436
      %v537 = vpack.c.b16 %v445, %v441
      %v538 = vpack.c.b16 %v446, %v442
      %v539 = vpack.c.b16 %v447, %v443
      %v540 = vpack.c.b16 %v448, %v444
      %v541 = vpack.c.b16 %v453, %v449
      %v542 = vpack.c.b16 %v454, %v450
      %v543 = vpack.c.b16 %v455, %v451
      %v544 = vpack.c.b16 %v456, %v452
      %v545 = vpack.c.b16 %v461, %v457
      %v546 = vpack.c.b16 %v462, %v458
      %v547 = vpack.c.b16 %v463, %v459
      %v548 = vpack.c.b16 %v464, %v460
      %v549 = vpack.c.b16 %v469, %v465
      %v550 = vpack.c.b16 %v470, %v466
      %v551 = vpack.c.b16 %v471, %v467
      %v552 = vpack.c.b16 %v472, %v468
      %v553 = vpack.c.b16 %v477, %v473
      %v554 = vpack.c.b16 %v478, %v474
      %v555 = vpack.c.b16 %v479, %v475
      %v556 = vpack.c.b16 %v480, %v476
      %v557 = vpack.c.b16 %v485, %v481
      %v558 = vpack.c.b16 %v486, %v482
      %v559 = vpack.c.b16 %v487, %v483
      %v560 = vpack.c.b16 %v488, %v484
      %v561 = vpack.c.b16 %v493, %v489
      %v562 = vpack.c.b16 %v494, %v490
      %v563 = vpack.c.b16 %v495, %v491
      %v564 = vpack.c.b16 %v496, %v492
      %v565 = vpack.c.b16 %v501, %v497
      %v566 = vpack.c.b16 %v502, %v498
      %v567 = vpack.c.b16 %v503, %v499
      %v568 = vpack.c.b16 %v504, %v500
      %v697 = vunpack.c.l.b16 %v242
      %v698 = vunpack.c.l.b16 %v243
      %v699 = vunpack.c.l.b16 %v244
      %v700 = vunpack.c.l.b16 %v245
      %v701 = vunpack.c.l.b16 %v246
      %v702 = vunpack.c.l.b16 %v247
      %v703 = vunpack.c.l.b16 %v248
      %v704 = vunpack.c.l.b16 %v249
      %v705 = vunpack.c.l.b16 %v250
      %v706 = vunpack.c.l.b16 %v251
      %v707 = vunpack.c.l.b16 %v252
      %v708 = vunpack.c.l.b16 %v253
      %v709 = vunpack.c.l.b16 %v254
      %v710 = vunpack.c.l.b16 %v255
      %v711 = vunpack.c.l.b16 %v256
      %v712 = vunpack.c.l.b16 %v257
      %v713 = vunpack.c.l.b16 %v258
      %v714 = vunpack.c.l.b16 %v259
      %v715 = vunpack.c.l.b16 %v260
      %v716 = vunpack.c.l.b16 %v261
      %v717 = vunpack.c.l.b16 %v262
      %v718 = vunpack.c.l.b16 %v263
      %v719 = vunpack.c.l.b16 %v264
      %v720 = vunpack.c.l.b16 %v265
      %v721 = vunpack.c.l.b16 %v266
      %v722 = vunpack.c.l.b16 %v267
      %v723 = vunpack.c.l.b16 %v268
      %v724 = vunpack.c.l.b16 %v269
      %v725 = vunpack.c.l.b16 %v270
      %v726 = vunpack.c.l.b16 %v271
      %v727 = vunpack.c.l.b16 %v272
      %v728 = vunpack.c.l.b16 %v273
      %v729 = vunpack.c.l.b16 %v274
      %v730 = vunpack.c.l.b16 %v275
      %v731 = vunpack.c.l.b16 %v276
      %v732 = vunpack.c.l.b16 %v277
      %v733 = vunpack.c.l.b16 %v278
      %v734 = vunpack.c.l.b16 %v279
      %v735 = vunpack.c.l.b16 %v280
      %v736 = vunpack.c.l.b16 %v281
      %v737 = vunpack.c.l.b16 %v282
      %v738 = vunpack.c.l.b16 %v283
      %v739 = vunpack.c.l.b16 %v284
      %v740 = vunpack.c.l.b16 %v285
      %v741 = vunpack.c.l.b16 %v286
      %v742 = vunpack.c.l.b16 %v287
      %v743 = vunpack.c.l.b16 %v288
      %v744 = vunpack.c.l.b16 %v289
      %v745 = vunpack.c.l.b16 %v290
      %v746 = vunpack.c.l.b16 %v291
      %v747 = vunpack.c.l.b16 %v292
      %v748 = vunpack.c.l.b16 %v293
      %v749 = vunpack.c.l.b16 %v294
      %v750 = vunpack.c.l.b16 %v295
      %v751 = vunpack.c.l.b16 %v296
      %v752 = vunpack.c.l.b16 %v297
      %v753 = vunpack.c.l.b16 %v298
      %v754 = vunpack.c.l.b16 %v299
      %v755 = vunpack.c.l.b16 %v300
      %v756 = vunpack.c.l.b16 %v301
      %v757 = vunpack.c.l.b16 %v302
      %v758 = vunpack.c.l.b16 %v303
      %v759 = vunpack.c.l.b16 %v304
      %v760 = vunpack.c.l.b16 %v305
      %v761 = vpack.c.b16 %v698, %v697
      %v762 = vpack.c.b16 %v700, %v699
      %v763 = vpack.c.b16 %v702, %v701
      %v764 = vpack.c.b16 %v704, %v703
      %v765 = vpack.c.b16 %v706, %v705
      %v766 = vpack.c.b16 %v708, %v707
      %v767 = vpack.c.b16 %v710, %v709
      %v768 = vpack.c.b16 %v712, %v711
      %v769 = vpack.c.b16 %v714, %v713
      %v770 = vpack.c.b16 %v716, %v715
      %v771 = vpack.c.b16 %v718, %v717
      %v772 = vpack.c.b16 %v720, %v719
      %v773 = vpack.c.b16 %v722, %v721
      %v774 = vpack.c.b16 %v724, %v723
      %v775 = vpack.c.b16 %v726, %v725
      %v776 = vpack.c.b16 %v728, %v727
      %v777 = vpack.c.b16 %v730, %v729
      %v778 = vpack.c.b16 %v732, %v731
      %v779 = vpack.c.b16 %v734, %v733
      %v780 = vpack.c.b16 %v736, %v735
      %v781 = vpack.c.b16 %v738, %v737
      %v782 = vpack.c.b16 %v740, %v739
      %v783 = vpack.c.b16 %v742, %v741
      %v784 = vpack.c.b16 %v744, %v743
      %v785 = vpack.c.b16 %v746, %v745
      %v786 = vpack.c.b16 %v748, %v747
      %v787 = vpack.c.b16 %v750, %v749
      %v788 = vpack.c.b16 %v752, %v751
      %v789 = vpack.c.b16 %v754, %v753
      %v790 = vpack.c.b16 %v756, %v755
      %v791 = vpack.c.b16 %v758, %v757
      %v792 = vpack.c.b16 %v760, %v759
      %825 = vmatprep.subr.bf16.mxu0 0
      %826 = vmatpush1.bf16.msra.mxu0 %v761
      %827 = vmatprep.subr.bf16.mxu0 0
      %828 = vmatpush1.bf16.msra.mxu0 %v762
      %829 = vmatprep.subr.bf16.mxu0 0
      %830 = vmatpush1.bf16.msra.mxu0 %v763
      %831 = vmatprep.subr.bf16.mxu0 0
      %832 = vmatpush1.bf16.msra.mxu0 %v764
      %833 = vmatprep.subr.bf16.mxu0 0
      %834 = vmatpush1.bf16.msra.mxu0 %v765
      %835 = vmatprep.subr.bf16.mxu0 0
      %836 = vmatpush1.bf16.msra.mxu0 %v766
      %837 = vmatprep.subr.bf16.mxu0 0
      %838 = vmatpush1.bf16.msra.mxu0 %v767
      %839 = vmatprep.subr.bf16.mxu0 0
      %840 = vmatpush1.bf16.msra.mxu0 %v768
      %841 = vmatprep.subr.bf16.mxu0 0
      %842 = vmatpush1.bf16.msra.mxu0 %v769
      %843 = vmatprep.subr.bf16.mxu0 0
      %844 = vmatpush1.bf16.msra.mxu0 %v770
      %845 = vmatprep.subr.bf16.mxu0 0
      %846 = vmatpush1.bf16.msra.mxu0 %v771
      %847 = vmatprep.subr.bf16.mxu0 0
      %848 = vmatpush1.bf16.msra.mxu0 %v772
      %849 = vmatprep.subr.bf16.mxu0 0
      %850 = vmatpush1.bf16.msra.mxu0 %v773
      %851 = vmatprep.subr.bf16.mxu0 0
      %852 = vmatpush1.bf16.msra.mxu0 %v774
      %853 = vmatprep.subr.bf16.mxu0 0
      %854 = vmatpush1.bf16.msra.mxu0 %v775
      %855 = vmatprep.subr.bf16.mxu0 0
      %856 = vmatpush1.bf16.msra.mxu0 %v776
      %857 = vmatprep.mubr.bf16.mxu0 %v506
      %858 = vmatmul.mubr.bf16.gmra.mrb[0].mxu0 %v505
      %v859 = vpop.f32.mrb[0].mxu0
      %v860 = vadd.f32 %v311, %v859
      %v861 = vpop.f32.mrb[0].mxu0
      %v862 = vpop.f32.mrb[0].mxu0
      %v863 = vadd.f32 %v311, %v862
      %v864 = vpop.f32.mrb[0].mxu0
      %865 = vmatprep.mubr.bf16.mxu0 %v510
      %866 = vmatmul.mubr.bf16.gmra.mrb[0].mxu0 %v509
      %v867 = vpop.f32.mrb[0].mxu0
      %v868 = vadd.f32 %v311, %v867
      %v869 = vpop.f32.mrb[0].mxu0
      %v870 = vpop.f32.mrb[0].mxu0
      %v871 = vadd.f32 %v311, %v870
      %v872 = vpop.f32.mrb[0].mxu0
      %873 = vmatprep.mubr.bf16.mxu0 %v514
      %874 = vmatmul.mubr.bf16.gmra.mrb[0].mxu0 %v513
      %v875 = vpop.f32.mrb[0].mxu0
      %v876 = vadd.f32 %v311, %v875
      %v877 = vpop.f32.mrb[0].mxu0
      %v878 = vpop.f32.mrb[0].mxu0
      %v879 = vadd.f32 %v311, %v878
      %v880 = vpop.f32.mrb[0].mxu0
      %881 = vmatprep.mubr.bf16.mxu0 %v518
      %882 = vmatmul.mubr.bf16.gmra.mrb[0].mxu0 %v517
      %v883 = vpop.f32.mrb[0].mxu0
      %v884 = vadd.f32 %v311, %v883
      %v885 = vpop.f32.mrb[0].mxu0
      %v886 = vpop.f32.mrb[0].mxu0
      %v887 = vadd.f32 %v311, %v886
      %v888 = vpop.f32.mrb[0].mxu0
      %889 = vmatprep.mubr.bf16.mxu0 %v522
      %890 = vmatmul.mubr.bf16.gmra.mrb[0].mxu0 %v521
      %v891 = vpop.f32.mrb[0].mxu0
      %v892 = vadd.f32 %v311, %v891
      %v893 = vpop.f32.mrb[0].mxu0
      %v894 = vpop.f32.mrb[0].mxu0
      %v895 = vadd.f32 %v311, %v894
      %v896 = vpop.f32.mrb[0].mxu0
      %897 = vmatprep.mubr.bf16.mxu0 %v526
      %898 = vmatmul.mubr.bf16.gmra.mrb[0].mxu0 %v525
      %v899 = vpop.f32.mrb[0].mxu0
      %v900 = vadd.f32 %v311, %v899
      %v901 = vpop.f32.mrb[0].mxu0
      %v902 = vpop.f32.mrb[0].mxu0
      %v903 = vadd.f32 %v311, %v902
      %v904 = vpop.f32.mrb[0].mxu0
      %905 = vmatprep.mubr.bf16.mxu0 %v530
      %906 = vmatmul.mubr.bf16.gmra.mrb[0].mxu0 %v529
      %v907 = vpop.f32.mrb[0].mxu0
      %v908 = vadd.f32 %v311, %v907
      %v909 = vpop.f32.mrb[0].mxu0
      %v910 = vpop.f32.mrb[0].mxu0
      %v911 = vadd.f32 %v311, %v910
      %v912 = vpop.f32.mrb[0].mxu0
      %913 = vmatprep.mubr.bf16.mxu0 %v534
      %914 = vmatmul.mubr.bf16.gmra.mrb[0].mxu0 %v533
      %v915 = vpop.f32.mrb[0].mxu0
      %v916 = vadd.f32 %v311, %v915
      %v917 = vpop.f32.mrb[0].mxu0
      %v918 = vpop.f32.mrb[0].mxu0
      %v919 = vadd.f32 %v311, %v918
      %v920 = vpop.f32.mrb[0].mxu0
      %921 = vmatprep.mubr.bf16.mxu0 %v538
      %922 = vmatmul.mubr.bf16.gmra.mrb[0].mxu0 %v537
      %v923 = vpop.f32.mrb[0].mxu0
      %v924 = vadd.f32 %v311, %v923
      %v925 = vpop.f32.mrb[0].mxu0
      %v926 = vpop.f32.mrb[0].mxu0
      %v927 = vadd.f32 %v311, %v926
      %v928 = vpop.f32.mrb[0].mxu0
      %929 = vmatprep.mubr.bf16.mxu0 %v542
      %930 = vmatmul.mubr.bf16.gmra.mrb[0].mxu0 %v541
      %v931 = vpop.f32.mrb[0].mxu0
      %v932 = vadd.f32 %v311, %v931
      %v933 = vpop.f32.mrb[0].mxu0
      %v934 = vpop.f32.mrb[0].mxu0
      %v935 = vadd.f32 %v311, %v934
      %v936 = vpop.f32.mrb[0].mxu0
      %937 = vmatprep.mubr.bf16.mxu0 %v546
      %938 = vmatmul.mubr.bf16.gmra.mrb[0].mxu0 %v545
      %v939 = vpop.f32.mrb[0].mxu0
      %v940 = vadd.f32 %v311, %v939
      %v941 = vpop.f32.mrb[0].mxu0
      %v942 = vpop.f32.mrb[0].mxu0
      %v943 = vadd.f32 %v311, %v942
      %v944 = vpop.f32.mrb[0].mxu0
      %945 = vmatprep.mubr.bf16.mxu0 %v550
      %946 = vmatmul.mubr.bf16.gmra.mrb[0].mxu0 %v549
      %v947 = vpop.f32.mrb[0].mxu0
      %v948 = vadd.f32 %v311, %v947
      %v949 = vpop.f32.mrb[0].mxu0
      %v950 = vpop.f32.mrb[0].mxu0
      %v951 = vadd.f32 %v311, %v950
      %v952 = vpop.f32.mrb[0].mxu0
      %953 = vmatprep.mubr.bf16.mxu0 %v554
      %954 = vmatmul.mubr.bf16.gmra.mrb[0].mxu0 %v553
      %v955 = vpop.f32.mrb[0].mxu0
      %v956 = vadd.f32 %v311, %v955
      %v957 = vpop.f32.mrb[0].mxu0
      %v958 = vpop.f32.mrb[0].mxu0
      %v959 = vadd.f32 %v311, %v958
      %v960 = vpop.f32.mrb[0].mxu0
      %961 = vmatprep.mubr.bf16.mxu0 %v558
      %962 = vmatmul.mubr.bf16.gmra.mrb[0].mxu0 %v557
      %v963 = vpop.f32.mrb[0].mxu0
      %v964 = vadd.f32 %v311, %v963
      %v965 = vpop.f32.mrb[0].mxu0
      %v966 = vpop.f32.mrb[0].mxu0
      %v967 = vadd.f32 %v311, %v966
      %v968 = vpop.f32.mrb[0].mxu0
      %969 = vmatprep.mubr.bf16.mxu0 %v562
      %970 = vmatmul.mubr.bf16.gmra.mrb[0].mxu0 %v561
      %v971 = vpop.f32.mrb[0].mxu0
      %v972 = vadd.f32 %v311, %v971
      %v973 = vpop.f32.mrb[0].mxu0
      %v974 = vpop.f32.mrb[0].mxu0
      %v975 = vadd.f32 %v311, %v974
      %v976 = vpop.f32.mrb[0].mxu0
      %977 = vmatprep.mubr.bf16.mxu0 %v566
      %978 = vmatmul.mubr.bf16.gmra.mrb[0].mxu0 %v565
      %v979 = vpop.f32.mrb[0].mxu0
      %v980 = vadd.f32 %v311, %v979
      %v981 = vpop.f32.mrb[0].mxu0
      %v982 = vpop.f32.mrb[0].mxu0
      %v983 = vadd.f32 %v311, %v982
      %v984 = vpop.f32.mrb[0].mxu0
      %985 = vdwg.mxu0
      %986 = vmatprep.subr.bf16.mxu0 0
      %987 = vmatpush1.bf16.msra.mxu0 %v777
      %988 = vmatprep.subr.bf16.mxu0 0
      %989 = vmatpush1.bf16.msra.mxu0 %v778
      %990 = vmatprep.subr.bf16.mxu0 0
      %991 = vmatpush1.bf16.msra.mxu0 %v779
      %992 = vmatprep.subr.bf16.mxu0 0
      %993 = vmatpush1.bf16.msra.mxu0 %v780
      %994 = vmatprep.subr.bf16.mxu0 0
      %995 = vmatpush1.bf16.msra.mxu0 %v781
      %996 = vmatprep.subr.bf16.mxu0 0
      %997 = vmatpush1.bf16.msra.mxu0 %v782
      %998 = vmatprep.subr.bf16.mxu0 0
      %999 = vmatpush1.bf16.msra.mxu0 %v783
      %1000 = vmatprep.subr.bf16.mxu0 0
      %1001 = vmatpush1.bf16.msra.mxu0 %v784
      %1002 = vmatprep.subr.bf16.mxu0 0
      %1003 = vmatpush1.bf16.msra.mxu0 %v785
      %1004 = vmatprep.subr.bf16.mxu0 0
      %1005 = vmatpush1.bf16.msra.mxu0 %v786
      %1006 = vmatprep.subr.bf16.mxu0 0
      %1007 = vmatpush1.bf16.msra.mxu0 %v787
      %1008 = vmatprep.subr.bf16.mxu0 0
      %1009 = vmatpush1.bf16.msra.mxu0 %v788
      %1010 = vmatprep.subr.bf16.mxu0 0
      %1011 = vmatpush1.bf16.msra.mxu0 %v789
      %1012 = vmatprep.subr.bf16.mxu0 0
      %1013 = vmatpush1.bf16.msra.mxu0 %v790
      %1014 = vmatprep.subr.bf16.mxu0 0
      %1015 = vmatpush1.bf16.msra.mxu0 %v791
      %1016 = vmatprep.subr.bf16.mxu0 0
      %1017 = vmatpush1.bf16.msra.mxu0 %v792
      %1018 = vmatprep.mubr.bf16.mxu0 %v508
      %1019 = vmatmul.mubr.bf16.gmra.mrb[0].mxu0 %v507
      %v1020 = vpop.f32.mrb[0].mxu0
      %v1021 = vadd.f32 %v860, %v1020
      %v1022 = vpop.f32.mrb[0].mxu0
      %v1023 = vpop.f32.mrb[0].mxu0
      %v1024 = vadd.f32 %v863, %v1023
      %v1025 = vpop.f32.mrb[0].mxu0
      %1026 = vmatprep.mubr.bf16.mxu0 %v512
      %1027 = vmatmul.mubr.bf16.gmra.mrb[0].mxu0 %v511
      %v1028 = vpop.f32.mrb[0].mxu0
      %v1029 = vadd.f32 %v868, %v1028
      %v1030 = vpop.f32.mrb[0].mxu0
      %v1031 = vpop.f32.mrb[0].mxu0
      %v1032 = vadd.f32 %v871, %v1031
      %v1033 = vpop.f32.mrb[0].mxu0
      %1034 = vmatprep.mubr.bf16.mxu0 %v516
      %1035 = vmatmul.mubr.bf16.gmra.mrb[0].mxu0 %v515
      %v1036 = vpop.f32.mrb[0].mxu0
      %v1037 = vadd.f32 %v876, %v1036
      %v1038 = vpop.f32.mrb[0].mxu0
      %v1039 = vpop.f32.mrb[0].mxu0
      %v1040 = vadd.f32 %v879, %v1039
      %v1041 = vpop.f32.mrb[0].mxu0
      %1042 = vmatprep.mubr.bf16.mxu0 %v520
      %1043 = vmatmul.mubr.bf16.gmra.mrb[0].mxu0 %v519
      %v1044 = vpop.f32.mrb[0].mxu0
      %v1045 = vadd.f32 %v884, %v1044
      %v1046 = vpop.f32.mrb[0].mxu0
      %v1047 = vpop.f32.mrb[0].mxu0
      %v1048 = vadd.f32 %v887, %v1047
      %v1049 = vpop.f32.mrb[0].mxu0
      %1050 = vmatprep.mubr.bf16.mxu0 %v524
      %1051 = vmatmul.mubr.bf16.gmra.mrb[0].mxu0 %v523
      %v1052 = vpop.f32.mrb[0].mxu0
      %v1053 = vadd.f32 %v892, %v1052
      %v1054 = vpop.f32.mrb[0].mxu0
      %v1055 = vpop.f32.mrb[0].mxu0
      %v1056 = vadd.f32 %v895, %v1055
      %v1057 = vpop.f32.mrb[0].mxu0
      %1058 = vmatprep.mubr.bf16.mxu0 %v528
      %1059 = vmatmul.mubr.bf16.gmra.mrb[0].mxu0 %v527
      %v1060 = vpop.f32.mrb[0].mxu0
      %v1061 = vadd.f32 %v900, %v1060
      %v1062 = vpop.f32.mrb[0].mxu0
      %v1063 = vpop.f32.mrb[0].mxu0
      %v1064 = vadd.f32 %v903, %v1063
      %v1065 = vpop.f32.mrb[0].mxu0
      %1066 = vmatprep.mubr.bf16.mxu0 %v532
      %1067 = vmatmul.mubr.bf16.gmra.mrb[0].mxu0 %v531
      %v1068 = vpop.f32.mrb[0].mxu0
      %v1069 = vadd.f32 %v908, %v1068
      %v1070 = vpop.f32.mrb[0].mxu0
      %v1071 = vpop.f32.mrb[0].mxu0
      %v1072 = vadd.f32 %v911, %v1071
      %v1073 = vpop.f32.mrb[0].mxu0
      %1074 = vmatprep.mubr.bf16.mxu0 %v536
      %1075 = vmatmul.mubr.bf16.gmra.mrb[0].mxu0 %v535
      %v1076 = vpop.f32.mrb[0].mxu0
      %v1077 = vadd.f32 %v916, %v1076
      %v1078 = vpop.f32.mrb[0].mxu0
      %v1079 = vpop.f32.mrb[0].mxu0
      %v1080 = vadd.f32 %v919, %v1079
      %v1081 = vpop.f32.mrb[0].mxu0
      %1082 = vmatprep.mubr.bf16.mxu0 %v540
      %1083 = vmatmul.mubr.bf16.gmra.mrb[0].mxu0 %v539
      %v1084 = vpop.f32.mrb[0].mxu0
      %v1085 = vadd.f32 %v924, %v1084
      %v1086 = vpop.f32.mrb[0].mxu0
      %v1087 = vpop.f32.mrb[0].mxu0
      %v1088 = vadd.f32 %v927, %v1087
      %v1089 = vpop.f32.mrb[0].mxu0
      %1090 = vmatprep.mubr.bf16.mxu0 %v544
      %1091 = vmatmul.mubr.bf16.gmra.mrb[0].mxu0 %v543
      %v1092 = vpop.f32.mrb[0].mxu0
      %v1093 = vadd.f32 %v932, %v1092
      %v1094 = vpop.f32.mrb[0].mxu0
      %v1095 = vpop.f32.mrb[0].mxu0
      %v1096 = vadd.f32 %v935, %v1095
      %v1097 = vpop.f32.mrb[0].mxu0
      %1098 = vmatprep.mubr.bf16.mxu0 %v548
      %1099 = vmatmul.mubr.bf16.gmra.mrb[0].mxu0 %v547
      %v1100 = vpop.f32.mrb[0].mxu0
      %v1101 = vadd.f32 %v940, %v1100
      %v1102 = vpop.f32.mrb[0].mxu0
      %v1103 = vpop.f32.mrb[0].mxu0
      %v1104 = vadd.f32 %v943, %v1103
      %v1105 = vpop.f32.mrb[0].mxu0
      %1106 = vmatprep.mubr.bf16.mxu0 %v552
      %1107 = vmatmul.mubr.bf16.gmra.mrb[0].mxu0 %v551
      %v1108 = vpop.f32.mrb[0].mxu0
      %v1109 = vadd.f32 %v948, %v1108
      %v1110 = vpop.f32.mrb[0].mxu0
      %v1111 = vpop.f32.mrb[0].mxu0
      %v1112 = vadd.f32 %v951, %v1111
      %v1113 = vpop.f32.mrb[0].mxu0
      %1114 = vmatprep.mubr.bf16.mxu0 %v556
      %1115 = vmatmul.mubr.bf16.gmra.mrb[0].mxu0 %v555
      %v1116 = vpop.f32.mrb[0].mxu0
      %v1117 = vadd.f32 %v956, %v1116
      %v1118 = vpop.f32.mrb[0].mxu0
      %v1119 = vpop.f32.mrb[0].mxu0
      %v1120 = vadd.f32 %v959, %v1119
      %v1121 = vpop.f32.mrb[0].mxu0
      %1122 = vmatprep.mubr.bf16.mxu0 %v560
      %1123 = vmatmul.mubr.bf16.gmra.mrb[0].mxu0 %v559
      %v1124 = vpop.f32.mrb[0].mxu0
      %v1125 = vadd.f32 %v964, %v1124
      %v1126 = vpop.f32.mrb[0].mxu0
      %v1127 = vpop.f32.mrb[0].mxu0
      %v1128 = vadd.f32 %v967, %v1127
      %v1129 = vpop.f32.mrb[0].mxu0
      %1130 = vmatprep.mubr.bf16.mxu0 %v564
      %1131 = vmatmul.mubr.bf16.gmra.mrb[0].mxu0 %v563
      %v1132 = vpop.f32.mrb[0].mxu0
      %v1133 = vadd.f32 %v972, %v1132
      %v1134 = vpop.f32.mrb[0].mxu0
      %v1135 = vpop.f32.mrb[0].mxu0
      %v1136 = vadd.f32 %v975, %v1135
      %v1137 = vpop.f32.mrb[0].mxu0
      %1138 = vmatprep.mubr.bf16.mxu0 %v568
      %1139 = vmatmul.mubr.bf16.gmra.mrb[0].mxu0 %v567
      %v1140 = vpop.f32.mrb[0].mxu0
      %v1141 = vadd.f32 %v980, %v1140
      %v1142 = vpop.f32.mrb[0].mxu0
      %v1143 = vpop.f32.mrb[0].mxu0
      %v1144 = vadd.f32 %v983, %v1143
      %v1145 = vpop.f32.mrb[0].mxu0
      %1146 = vdwg.mxu0
      %1147 = vmax.xlane.f32.xlu0 %v1021
      %v1148 = vpop.xlane.xlu0 %1147
      %1149 = vmax.xlane.f32.xlu0 %v1024
      %v1150 = vpop.xlane.xlu0 %1149
      %1151 = vmax.xlane.f32.xlu0 %v1029
      %v1152 = vpop.xlane.xlu0 %1151
      %1153 = vmax.xlane.f32.xlu0 %v1032
      %v1154 = vpop.xlane.xlu0 %1153
      %1155 = vmax.xlane.f32.xlu0 %v1037
      %v1156 = vpop.xlane.xlu0 %1155
      %1157 = vmax.xlane.f32.xlu0 %v1040
      %v1158 = vpop.xlane.xlu0 %1157
      %1159 = vmax.xlane.f32.xlu0 %v1045
      %v1160 = vpop.xlane.xlu0 %1159
      %1161 = vmax.xlane.f32.xlu0 %v1048
      %v1162 = vpop.xlane.xlu0 %1161
      %1163 = vmax.xlane.f32.xlu0 %v1053
      %v1164 = vpop.xlane.xlu0 %1163
      %1165 = vmax.xlane.f32.xlu0 %v1056
      %v1166 = vpop.xlane.xlu0 %1165
      %1167 = vmax.xlane.f32.xlu0 %v1061
      %v1168 = vpop.xlane.xlu0 %1167
      %1169 = vmax.xlane.f32.xlu0 %v1064
      %v1170 = vpop.xlane.xlu0 %1169
      %1171 = vmax.xlane.f32.xlu0 %v1069
      %v1172 = vpop.xlane.xlu0 %1171
      %1173 = vmax.xlane.f32.xlu0 %v1072
      %v1174 = vpop.xlane.xlu0 %1173
      %1175 = vmax.xlane.f32.xlu0 %v1077
      %v1176 = vpop.xlane.xlu0 %1175
      %1177 = vmax.xlane.f32.xlu0 %v1080
      %v1178 = vpop.xlane.xlu0 %1177
      %1179 = vmax.xlane.f32.xlu0 %v1085
      %v1180 = vpop.xlane.xlu0 %1179
      %1181 = vmax.xlane.f32.xlu0 %v1088
      %v1182 = vpop.xlane.xlu0 %1181
      %1183 = vmax.xlane.f32.xlu0 %v1093
      %v1184 = vpop.xlane.xlu0 %1183
      %1185 = vmax.xlane.f32.xlu0 %v1096
      %v1186 = vpop.xlane.xlu0 %1185
      %1187 = vmax.xlane.f32.xlu0 %v1101
      %v1188 = vpop.xlane.xlu0 %1187
      %1189 = vmax.xlane.f32.xlu0 %v1104
      %v1190 = vpop.xlane.xlu0 %1189
      %1191 = vmax.xlane.f32.xlu0 %v1109
      %v1192 = vpop.xlane.xlu0 %1191
      %1193 = vmax.xlane.f32.xlu0 %v1112
      %v1194 = vpop.xlane.xlu0 %1193
      %1195 = vmax.xlane.f32.xlu0 %v1117
      %v1196 = vpop.xlane.xlu0 %1195
      %1197 = vmax.xlane.f32.xlu0 %v1120
      %v1198 = vpop.xlane.xlu0 %1197
      %1199 = vmax.xlane.f32.xlu0 %v1125
      %v1200 = vpop.xlane.xlu0 %1199
      %1201 = vmax.xlane.f32.xlu0 %v1128
      %v1202 = vpop.xlane.xlu0 %1201
      %1203 = vmax.xlane.f32.xlu0 %v1133
      %v1204 = vpop.xlane.xlu0 %1203
      %1205 = vmax.xlane.f32.xlu0 %v1136
      %v1206 = vpop.xlane.xlu0 %1205
      %1207 = vmax.xlane.f32.xlu0 %v1141
      %v1208 = vpop.xlane.xlu0 %1207
      %1209 = vmax.xlane.f32.xlu0 %v1144
      %v1210 = vpop.xlane.xlu0 %1209
      %v1211 = vsub.f32 %v1021, %v1148
      %v1212 = vsub.f32 %v1024, %v1150
      %v1213 = vsub.f32 %v1029, %v1152
      %v1214 = vsub.f32 %v1032, %v1154
      %v1215 = vsub.f32 %v1037, %v1156
      %v1216 = vsub.f32 %v1040, %v1158
      %v1217 = vsub.f32 %v1045, %v1160
      %v1218 = vsub.f32 %v1048, %v1162
      %v1219 = vsub.f32 %v1053, %v1164
      %v1220 = vsub.f32 %v1056, %v1166
      %v1221 = vsub.f32 %v1061, %v1168
      %v1222 = vsub.f32 %v1064, %v1170
      %v1223 = vsub.f32 %v1069, %v1172
      %v1224 = vsub.f32 %v1072, %v1174
      %v1225 = vsub.f32 %v1077, %v1176
      %v1226 = vsub.f32 %v1080, %v1178
      %v1227 = vsub.f32 %v1085, %v1180
      %v1228 = vsub.f32 %v1088, %v1182
      %v1229 = vsub.f32 %v1093, %v1184
      %v1230 = vsub.f32 %v1096, %v1186
      %v1231 = vsub.f32 %v1101, %v1188
      %v1232 = vsub.f32 %v1104, %v1190
      %v1233 = vsub.f32 %v1109, %v1192
      %v1234 = vsub.f32 %v1112, %v1194
      %v1235 = vsub.f32 %v1117, %v1196
      %v1236 = vsub.f32 %v1120, %v1198
      %v1237 = vsub.f32 %v1125, %v1200
      %v1238 = vsub.f32 %v1128, %v1202
      %v1239 = vsub.f32 %v1133, %v1204
      %v1240 = vsub.f32 %v1136, %v1206
      %v1241 = vsub.f32 %v1141, %v1208
      %v1242 = vsub.f32 %v1144, %v1210
      %v1243 = vmul.f32 %v1211, 1.442695
      %v1244 = vpow.pop %v1243
      %v1245 = vmul.f32 %v1212, 1.442695
      %v1246 = vpow.pop %v1245
      %v1247 = vmul.f32 %v1213, 1.442695
      %v1248 = vpow.pop %v1247
      %v1249 = vmul.f32 %v1214, 1.442695
      %v1250 = vpow.pop %v1249
      %v1251 = vmul.f32 %v1215, 1.442695
      %v1252 = vpow.pop %v1251
      %v1253 = vmul.f32 %v1216, 1.442695
      %v1254 = vpow.pop %v1253
      %v1255 = vmul.f32 %v1217, 1.442695
      %v1256 = vpow.pop %v1255
      %v1257 = vmul.f32 %v1218, 1.442695
      %v1258 = vpow.pop %v1257
      %v1259 = vmul.f32 %v1219, 1.442695
      %v1260 = vpow.pop %v1259
      %v1261 = vmul.f32 %v1220, 1.442695
      %v1262 = vpow.pop %v1261
      %v1263 = vmul.f32 %v1221, 1.442695
      %v1264 = vpow.pop %v1263
      %v1265 = vmul.f32 %v1222, 1.442695
      %v1266 = vpow.pop %v1265
      %v1267 = vmul.f32 %v1223, 1.442695
      %v1268 = vpow.pop %v1267
      %v1269 = vmul.f32 %v1224, 1.442695
      %v1270 = vpow.pop %v1269
      %v1271 = vmul.f32 %v1225, 1.442695
      %v1272 = vpow.pop %v1271
      %v1273 = vmul.f32 %v1226, 1.442695
      %v1274 = vpow.pop %v1273
      %v1275 = vmul.f32 %v1227, 1.442695
      %v1276 = vpow.pop %v1275
      %v1277 = vmul.f32 %v1228, 1.442695
      %v1278 = vpow.pop %v1277
      %v1279 = vmul.f32 %v1229, 1.442695
      %v1280 = vpow.pop %v1279
      %v1281 = vmul.f32 %v1230, 1.442695
      %v1282 = vpow.pop %v1281
      %v1283 = vmul.f32 %v1231, 1.442695
      %v1284 = vpow.pop %v1283
      %v1285 = vmul.f32 %v1232, 1.442695
      %v1286 = vpow.pop %v1285
      %v1287 = vmul.f32 %v1233, 1.442695
      %v1288 = vpow.pop %v1287
      %v1289 = vmul.f32 %v1234, 1.442695
      %v1290 = vpow.pop %v1289
      %v1291 = vmul.f32 %v1235, 1.442695
      %v1292 = vpow.pop %v1291
      %v1293 = vmul.f32 %v1236, 1.442695
      %v1294 = vpow.pop %v1293
      %v1295 = vmul.f32 %v1237, 1.442695
      %v1296 = vpow.pop %v1295
      %v1297 = vmul.f32 %v1238, 1.442695
      %v1298 = vpow.pop %v1297
      %v1299 = vmul.f32 %v1239, 1.442695
      %v1300 = vpow.pop %v1299
      %v1301 = vmul.f32 %v1240, 1.442695
      %v1302 = vpow.pop %v1301
      %v1303 = vmul.f32 %v1241, 1.442695
      %v1304 = vpow.pop %v1303
      %v1305 = vmul.f32 %v1242, 1.442695
      %v1306 = vpow.pop %v1305
      %1307 = vadd.xlane.f32.xlu0 %v1244
      %v1308 = vpop.xlane.xlu0 %1307
      %1309 = vadd.xlane.f32.xlu0 %v1246
      %v1310 = vpop.xlane.xlu0 %1309
      %1311 = vadd.xlane.f32.xlu0 %v1248
      %v1312 = vpop.xlane.xlu0 %1311
      %1313 = vadd.xlane.f32.xlu0 %v1250
      %v1314 = vpop.xlane.xlu0 %1313
      %1315 = vadd.xlane.f32.xlu0 %v1252
      %v1316 = vpop.xlane.xlu0 %1315
      %1317 = vadd.xlane.f32.xlu0 %v1254
      %v1318 = vpop.xlane.xlu0 %1317
      %1319 = vadd.xlane.f32.xlu0 %v1256
      %v1320 = vpop.xlane.xlu0 %1319
      %1321 = vadd.xlane.f32.xlu0 %v1258
      %v1322 = vpop.xlane.xlu0 %1321
      %1323 = vadd.xlane.f32.xlu0 %v1260
      %v1324 = vpop.xlane.xlu0 %1323
      %1325 = vadd.xlane.f32.xlu0 %v1262
      %v1326 = vpop.xlane.xlu0 %1325
      %1327 = vadd.xlane.f32.xlu0 %v1264
      %v1328 = vpop.xlane.xlu0 %1327
      %1329 = vadd.xlane.f32.xlu0 %v1266
      %v1330 = vpop.xlane.xlu0 %1329
      %1331 = vadd.xlane.f32.xlu0 %v1268
      %v1332 = vpop.xlane.xlu0 %1331
      %1333 = vadd.xlane.f32.xlu0 %v1270
      %v1334 = vpop.xlane.xlu0 %1333
      %1335 = vadd.xlane.f32.xlu0 %v1272
      %v1336 = vpop.xlane.xlu0 %1335
      %1337 = vadd.xlane.f32.xlu0 %v1274
      %v1338 = vpop.xlane.xlu0 %1337
      %1339 = vadd.xlane.f32.xlu0 %v1276
      %v1340 = vpop.xlane.xlu0 %1339
      %1341 = vadd.xlane.f32.xlu0 %v1278
      %v1342 = vpop.xlane.xlu0 %1341
      %1343 = vadd.xlane.f32.xlu0 %v1280
      %v1344 = vpop.xlane.xlu0 %1343
      %1345 = vadd.xlane.f32.xlu0 %v1282
      %v1346 = vpop.xlane.xlu0 %1345
      %1347 = vadd.xlane.f32.xlu0 %v1284
      %v1348 = vpop.xlane.xlu0 %1347
      %1349 = vadd.xlane.f32.xlu0 %v1286
      %v1350 = vpop.xlane.xlu0 %1349
      %1351 = vadd.xlane.f32.xlu0 %v1288
      %v1352 = vpop.xlane.xlu0 %1351
      %1353 = vadd.xlane.f32.xlu0 %v1290
      %v1354 = vpop.xlane.xlu0 %1353
      %1355 = vadd.xlane.f32.xlu0 %v1292
      %v1356 = vpop.xlane.xlu0 %1355
      %1357 = vadd.xlane.f32.xlu0 %v1294
      %v1358 = vpop.xlane.xlu0 %1357
      %1359 = vadd.xlane.f32.xlu0 %v1296
      %v1360 = vpop.xlane.xlu0 %1359
      %1361 = vadd.xlane.f32.xlu0 %v1298
      %v1362 = vpop.xlane.xlu0 %1361
      %1363 = vadd.xlane.f32.xlu0 %v1300
      %v1364 = vpop.xlane.xlu0 %1363
      %1365 = vadd.xlane.f32.xlu0 %v1302
      %v1366 = vpop.xlane.xlu0 %1365
      %1367 = vadd.xlane.f32.xlu0 %v1304
      %v1368 = vpop.xlane.xlu0 %1367
      %1369 = vadd.xlane.f32.xlu0 %v1306
      %v1370 = vpop.xlane.xlu0 %1369
      %v1371 = vlog2.pop %v1308
      %v1372 = vmul.f32 %v1371, 0.6931472
      %v1373 = vlog2.pop %v1310
      %v1374 = vmul.f32 %v1373, 0.6931472
      %v1375 = vlog2.pop %v1312
      %v1376 = vmul.f32 %v1375, 0.6931472
      %v1377 = vlog2.pop %v1314
      %v1378 = vmul.f32 %v1377, 0.6931472
      %v1379 = vlog2.pop %v1316
      %v1380 = vmul.f32 %v1379, 0.6931472
      %v1381 = vlog2.pop %v1318
      %v1382 = vmul.f32 %v1381, 0.6931472
      %v1383 = vlog2.pop %v1320
      %v1384 = vmul.f32 %v1383, 0.6931472
      %v1385 = vlog2.pop %v1322
      %v1386 = vmul.f32 %v1385, 0.6931472
      %v1387 = vlog2.pop %v1324
      %v1388 = vmul.f32 %v1387, 0.6931472
      %v1389 = vlog2.pop %v1326
      %v1390 = vmul.f32 %v1389, 0.6931472
      %v1391 = vlog2.pop %v1328
      %v1392 = vmul.f32 %v1391, 0.6931472
      %v1393 = vlog2.pop %v1330
      %v1394 = vmul.f32 %v1393, 0.6931472
      %v1395 = vlog2.pop %v1332
      %v1396 = vmul.f32 %v1395, 0.6931472
      %v1397 = vlog2.pop %v1334
      %v1398 = vmul.f32 %v1397, 0.6931472
      %v1399 = vlog2.pop %v1336
      %v1400 = vmul.f32 %v1399, 0.6931472
      %v1401 = vlog2.pop %v1338
      %v1402 = vmul.f32 %v1401, 0.6931472
      %v1403 = vlog2.pop %v1340
      %v1404 = vmul.f32 %v1403, 0.6931472
      %v1405 = vlog2.pop %v1342
      %v1406 = vmul.f32 %v1405, 0.6931472
      %v1407 = vlog2.pop %v1344
      %v1408 = vmul.f32 %v1407, 0.6931472
      %v1409 = vlog2.pop %v1346
      %v1410 = vmul.f32 %v1409, 0.6931472
      %v1411 = vlog2.pop %v1348
      %v1412 = vmul.f32 %v1411, 0.6931472
      %v1413 = vlog2.pop %v1350
      %v1414 = vmul.f32 %v1413, 0.6931472
      %v1415 = vlog2.pop %v1352
      %v1416 = vmul.f32 %v1415, 0.6931472
      %v1417 = vlog2.pop %v1354
      %v1418 = vmul.f32 %v1417, 0.6931472
      %v1419 = vlog2.pop %v1356
      %v1420 = vmul.f32 %v1419, 0.6931472
      %v1421 = vlog2.pop %v1358
      %v1422 = vmul.f32 %v1421, 0.6931472
      %v1423 = vlog2.pop %v1360
      %v1424 = vmul.f32 %v1423, 0.6931472
      %v1425 = vlog2.pop %v1362
      %v1426 = vmul.f32 %v1425, 0.6931472
      %v1427 = vlog2.pop %v1364
      %v1428 = vmul.f32 %v1427, 0.6931472
      %v1429 = vlog2.pop %v1366
      %v1430 = vmul.f32 %v1429, 0.6931472
      %v1431 = vlog2.pop %v1368
      %v1432 = vmul.f32 %v1431, 0.6931472
      %v1433 = vlog2.pop %v1370
      %v1434 = vmul.f32 %v1433, 0.6931472
      %v1435 = vsub.f32 %v1211, %v1372
      %v1436 = vsub.f32 %v1212, %v1374
      %v1437 = vsub.f32 %v1213, %v1376
      %v1438 = vsub.f32 %v1214, %v1378
      %v1439 = vsub.f32 %v1215, %v1380
      %v1440 = vsub.f32 %v1216, %v1382
      %v1441 = vsub.f32 %v1217, %v1384
      %v1442 = vsub.f32 %v1218, %v1386
      %v1443 = vsub.f32 %v1219, %v1388
      %v1444 = vsub.f32 %v1220, %v1390
      %v1445 = vsub.f32 %v1221, %v1392
      %v1446 = vsub.f32 %v1222, %v1394
      %v1447 = vsub.f32 %v1223, %v1396
      %v1448 = vsub.f32 %v1224, %v1398
      %v1449 = vsub.f32 %v1225, %v1400
      %v1450 = vsub.f32 %v1226, %v1402
      %v1451 = vsub.f32 %v1227, %v1404
      %v1452 = vsub.f32 %v1228, %v1406
      %v1453 = vsub.f32 %v1229, %v1408
      %v1454 = vsub.f32 %v1230, %v1410
      %v1455 = vsub.f32 %v1231, %v1412
      %v1456 = vsub.f32 %v1232, %v1414
      %v1457 = vsub.f32 %v1233, %v1416
      %v1458 = vsub.f32 %v1234, %v1418
      %v1459 = vsub.f32 %v1235, %v1420
      %v1460 = vsub.f32 %v1236, %v1422
      %v1461 = vsub.f32 %v1237, %v1424
      %v1462 = vsub.f32 %v1238, %v1426
      %v1463 = vsub.f32 %v1239, %v1428
      %v1464 = vsub.f32 %v1240, %v1430
      %v1465 = vsub.f32 %v1241, %v1432
      %v1466 = vsub.f32 %v1242, %v1434
      %1467 = vst [vmem:[%s175] sm:$0xff] %v1435
      %1468 = vst [vmem:[%s175 + $0x8] sm:$0xff] %v1436
      %1469 = vst [vmem:[%s175 + $0x10] sm:$0xff] %v1437
      %1470 = vst [vmem:[%s175 + $0x18] sm:$0xff] %v1438
      %1471 = vst [vmem:[%s175 + $0x20] sm:$0xff] %v1439
      %1472 = vst [vmem:[%s175 + $0x28] sm:$0xff] %v1440
      %1473 = vst [vmem:[%s175 + $0x30] sm:$0xff] %v1441
      %1474 = vst [vmem:[%s175 + $0x38] sm:$0xff] %v1442
      %1475 = vst [vmem:[%s175 + $0x40] sm:$0xff] %v1443
      %1476 = vst [vmem:[%s175 + $0x48] sm:$0xff] %v1444
      %1477 = vst [vmem:[%s175 + $0x50] sm:$0xff] %v1445
      %1478 = vst [vmem:[%s175 + $0x58] sm:$0xff] %v1446
      %1479 = vst [vmem:[%s175 + $0x60] sm:$0xff] %v1447
      %1480 = vst [vmem:[%s175 + $0x68] sm:$0xff] %v1448
      %1481 = vst [vmem:[%s175 + $0x70] sm:$0xff] %v1449
      %1482 = vst [vmem:[%s175 + $0x78] sm:$0xff] %v1450
      %1483 = vst [vmem:[%s175 + $0x80] sm:$0xff] %v1451
      %1484 = vst [vmem:[%s175 + $0x88] sm:$0xff] %v1452
      %1485 = vst [vmem:[%s175 + $0x90] sm:$0xff] %v1453
      %1486 = vst [vmem:[%s175 + $0x98] sm:$0xff] %v1454
      %1487 = vst [vmem:[%s175 + $0xa0] sm:$0xff] %v1455
      %1488 = vst [vmem:[%s175 + $0xa8] sm:$0xff] %v1456
      %1489 = vst [vmem:[%s175 + $0xb0] sm:$0xff] %v1457
      %1490 = vst [vmem:[%s175 + $0xb8] sm:$0xff] %v1458
      %1491 = vst [vmem:[%s175 + $0xc0] sm:$0xff] %v1459
      %1492 = vst [vmem:[%s175 + $0xc8] sm:$0xff] %v1460
      %1493 = vst [vmem:[%s175 + $0xd0] sm:$0xff] %v1461
      %1494 = vst [vmem:[%s175 + $0xd8] sm:$0xff] %v1462
      %1495 = vst [vmem:[%s175 + $0xe0] sm:$0xff] %v1463
      %1496 = vst [vmem:[%s175 + $0xe8] sm:$0xff] %v1464
      %1497 = vst [vmem:[%s175 + $0xf0] sm:$0xff] %v1465
      %1498 = vst [vmem:[%s175 + $0xf8] sm:$0xff] %v1466
      %s1499 = smul.u32 32, %s14
      %p1500 = scmp.lt.s32.totalorder %s1499, 63
      %s1501 = scalar_select %p1500, %s1499, 63
      %s1502 = smul.addr %s1501, 8
      %s1503 = scalar_lea.vmem %s3, %s1502
      // Predicated region
      $region33: #{gcn_forward.5} parent=31 // pred_check
        %p1504 = pneg %p100
      $region34: #{gcn_forward.5} parent=31 // pred_check_branch
        %1506 = sbr.rel (%p1504) target = $region36
      $region35: #{gcn_forward.5} parent=31 // pred_region
        %s1507 = smul.u32 32, %s14
      $region36: #{gcn_forward.5} parent=31 // pred_fallthru
        _
    $region32: #{gcn_forward.5} parent=5 // pred_fallthru
      _
    %p1508 = scmp.le.s32.totalorder 2, %s9
    // Predicated region
    $region37: #{gcn_forward.5} parent=5 // pred_check
      %p1509 = pneg %p1508
    $region38: #{gcn_forward.5} parent=5 // pred_check_branch
      %1511 = sbr.rel (%p1509) target = $region40
    $region39: #{gcn_forward.5} parent=5 // pred_region
      %s1512 = ssub.s32 %s9, 2
      // Predicated region
      $region41: #{gcn_forward.5} parent=39 // pred_check
        %p1513 = pneg %p106
      $region42: #{gcn_forward.5} parent=39 // pred_check_branch
        %1515 = sbr.rel (%p1513) target = $region44
      $region43: #{gcn_forward.5} parent=39 // pred_region
        %s1516 = smul.u32 32, %s15
        %p1517 = scmp.lt.s32.totalorder %s1516, 63
        %s1518 = scalar_select %p1517, %s1516, 63
        %s1519 = smul.addr %s1518, 8
        %s1520 = scalar_lea.vmem %s3, %s1519
      $region44: #{gcn_forward.5} parent=39 // pred_fallthru
        _
    $region40: #{gcn_forward.5} parent=5 // pred_fallthru
      _
  $region6: #{gcn_forward.5} parent=0 // loop_footer
    %s13 = sadd.s32 1, %s9
  $region7: #{gcn_forward.5} parent=0 // loop_footer_branch
    %8 = sbr.rel target = $region3
  $region8: #{gcn_forward.5} parent=0 // loop_exit
    _

// kernel: gcn_forward.4
$region0: #{gcn_forward.4}
  #allocation0 [shape = 'u32[]', space=smem, size = 0x4, offset = 0x4, fixed_abs, tag = 'smem constant byte address 0x4 - core index']
  #allocation1 [shape = 'u32[144,128]{1,0:T(1,128)}', space=vmem, size = 0x12000, scoped, tag = 'internal scratch']
  %s0 = inlined_call_operand.vmem [shape: bf16[512,512], index: 0, kind: input, shape index: {}]
  %s1 = inlined_call_operand.vmem [shape: bf16[512,128], index: 1, kind: input, shape index: {}]
  %s2 = inlined_call_operand.vmem [shape: bf16[128,128], index: 2, kind: input, shape index: {}]
  %s3 = inlined_call_operand.vmem [shape: f32[1,128], index: 3, kind: input, shape index: {}]
  %s4 = inlined_call_operand.vmem [shape: bf16[512,128], index: 4, kind: output, shape index: {}]
  %s5 = sld [smem:[#allocation0]]
  $region49: #{gcn_forward.4} parent=0
    _
  %s7 = ssub.s32 1, %s5
  %s8 = scalar_select 0, %s7, %s5
  loop: start=0, step=1, limit=4
  $region2: #{gcn_forward.4} parent=0 // loop_pre_header
    _
  $region3: #{gcn_forward.4} parent=0 // loop_header
    %s10 = sphi 0, %s14
    %p11 = scmp.ge.s32.totalorder %s10, 4
    %s20 = sphi 0, %s22
    %s23 = sphi 0, %s20
    %s24 = sphi 0, %s23
    %s40 = sphi 0, %s24
    %s44 = sphi 0, %s44
    %s46 = sphi 0, %s44
    %s47 = sphi 0, %s46
    %s61 = sphi 0, %s47
    %s65 = sphi 0, %s65
    %s67 = sphi 0, %s65
    %s68 = sphi 0, %s67
    %s82 = sphi 0, %s68
    %s86 = sphi 0, %s86
    %s88 = sphi 0, %s86
    %s89 = sphi 0, %s88
    %s103 = sphi 0, %s89
    %s109 = sphi 0, %s111
    %s112 = sphi 0, %s109
    %s113 = sphi 0, %s112
    %s129 = sphi 0, %s113
  $region4: #{gcn_forward.4} parent=0 // loop_header_branch
    %13 = sbr.rel (%p11) target = $region8
  $region5: #{gcn_forward.4} parent=0 // loop_body
    %s15 = ssub.s32 %s10, 1
    %s16 = ssub.s32 %s10, 2
    %s17 = sadd.s32 %s10, 1
    %s18 = ssub.s32 %s10, %s17
    %p19 = scmp.eq.s32.totalorder %s18, 0
    %s21 = sadd.s32 %s20, 1
    %s22 = scalar_select %p19, %s20, %s21
    %p25 = pneg %p19
    %p26 = scmp.eq.s32.totalorder %s10, 1
    %p27 = por %p25, %p26
    %p28 = scmp.ne.s32.totalorder %s20, %s23
    %p29 = scmp.eq.s32.totalorder %s10, 0
    %p30 = por %p28, %p29
    %p31 = scmp.ne.s32.totalorder %s20, %s23
    %p32 = scmp.eq.s32.totalorder %s15, 1
    %p33 = por %p31, %p32
    %p34 = scmp.ne.s32.totalorder %s23, %s24
    %p35 = scmp.eq.s32.totalorder %s15, 0
    %p36 = por %p34, %p35
    %p37 = scmp.ne.s32.totalorder %s23, %s24
    %p38 = scmp.eq.s32.totalorder %s16, 1
    %p39 = por %p37, %p38
    %p41 = scmp.ne.s32.totalorder %s24, %s40
    %p42 = scmp.eq.s32.totalorder %s16, 0
    %p43 = por %p41, %p42
    %s45 = sadd.s32 %s44, 1
    %p48 = scmp.eq.s32.totalorder %s10, 1
    %p49 = scmp.ne.s32.totalorder %s44, %s46
    %p50 = scmp.eq.s32.totalorder %s10, 0
    %p51 = por %p49, %p50
    %p52 = scmp.ne.s32.totalorder %s44, %s46
    %p53 = scmp.eq.s32.totalorder %s15, 1
    %p54 = por %p52, %p53
    %p55 = scmp.ne.s32.totalorder %s46, %s47
    %p56 = scmp.eq.s32.totalorder %s15, 0
    %p57 = por %p55, %p56
    %p58 = scmp.ne.s32.totalorder %s46, %s47
    %p59 = scmp.eq.s32.totalorder %s16, 1
    %p60 = por %p58, %p59
    %p62 = scmp.ne.s32.totalorder %s47, %s61
    %p63 = scmp.eq.s32.totalorder %s16, 0
    %p64 = por %p62, %p63
    %s66 = sadd.s32 %s65, 1
    %p69 = scmp.eq.s32.totalorder %s10, 1
    %p70 = scmp.ne.s32.totalorder %s65, %s67
    %p71 = scmp.eq.s32.totalorder %s10, 0
    %p72 = por %p70, %p71
    %p73 = scmp.ne.s32.totalorder %s65, %s67
    %p74 = scmp.eq.s32.totalorder %s15, 1
    %p75 = por %p73, %p74
    %p76 = scmp.ne.s32.totalorder %s67, %s68
    %p77 = scmp.eq.s32.totalorder %s15, 0
    %p78 = por %p76, %p77
    %p79 = scmp.ne.s32.totalorder %s67, %s68
    %p80 = scmp.eq.s32.totalorder %s16, 1
    %p81 = por %p79, %p80
    %p83 = scmp.ne.s32.totalorder %s68, %s82
    %p84 = scmp.eq.s32.totalorder %s16, 0
    %p85 = por %p83, %p84
    %s87 = sadd.s32 %s86, 1
    %p90 = scmp.eq.s32.totalorder %s10, 1
    %p91 = scmp.ne.s32.totalorder %s86, %s88
    %p92 = scmp.eq.s32.totalorder %s10, 0
    %p93 = por %p91, %p92
    %p94 = scmp.ne.s32.totalorder %s86, %s88
    %p95 = scmp.eq.s32.totalorder %s15, 1
    %p96 = por %p94, %p95
    %p97 = scmp.ne.s32.totalorder %s88, %s89
    %p98 = scmp.eq.s32.totalorder %s15, 0
    %p99 = por %p97, %p98
    %p100 = scmp.ne.s32.totalorder %s88, %s89
    %p101 = scmp.eq.s32.totalorder %s16, 1
    %p102 = por %p100, %p101
    %p104 = scmp.ne.s32.totalorder %s89, %s103
    %p105 = scmp.eq.s32.totalorder %s16, 0
    %p106 = por %p104, %p105
    %s107 = ssub.s32 %s10, %s17
    %p108 = scmp.eq.s32.totalorder %s107, 0
    %s110 = sadd.s32 %s109, 1
    %s111 = scalar_select %p108, %s109, %s110
    %p114 = pneg %p108
    %p115 = scmp.eq.s32.totalorder %s10, 1
    %p116 = por %p114, %p115
    %p117 = scmp.ne.s32.totalorder %s109, %s112
    %p118 = scmp.eq.s32.totalorder %s10, 0
    %p119 = por %p117, %p118
    %p120 = scmp.ne.s32.totalorder %s109, %s112
    %p121 = scmp.eq.s32.totalorder %s15, 1
    %p122 = por %p120, %p121
    %p123 = scmp.ne.s32.totalorder %s112, %s113
    %p124 = scmp.eq.s32.totalorder %s15, 0
    %p125 = por %p123, %p124
    %p126 = scmp.ne.s32.totalorder %s112, %s113
    %p127 = scmp.eq.s32.totalorder %s16, 1
    %p128 = por %p126, %p127
    %p130 = scmp.ne.s32.totalorder %s113, %s129
    %p131 = scmp.eq.s32.totalorder %s16, 0
    %p132 = por %p130, %p131
    %p133 = scmp.le.s32.totalorder 1, %s10
    %p134 = scmp.lt.s32.totalorder %s10, 3
    %p135 = pnand %p133, %p134
    %p136 = pneg %p135
    // Predicated region
    $region9: #{gcn_forward.4} parent=5 // pred_check
      _
    $region10: #{gcn_forward.4} parent=5 // pred_check_branch
      %138 = sbr.rel (%p135) target = $region12
    $region11: #{gcn_forward.4} parent=5 // pred_region
      %s139 = ssub.s32 %s10, 1
      // Predicated region
      $region13: #{gcn_forward.4} parent=11 // pred_check
        %p140 = pneg %p57
      $region14: #{gcn_forward.4} parent=11 // pred_check_branch
        %142 = sbr.rel (%p140) target = $region16
      $region15: #{gcn_forward.4} parent=11 // pred_region
        _
      $region16: #{gcn_forward.4} parent=11 // pred_fallthru
        _
      // Predicated region
      $region17: #{gcn_forward.4} parent=11 // pred_check
        %p143 = pneg %p78
      $region18: #{gcn_forward.4} parent=11 // pred_check_branch
        %145 = sbr.rel (%p143) target = $region20
      $region19: #{gcn_forward.4} parent=11 // pred_region
        _
      $region20: #{gcn_forward.4} parent=11 // pred_fallthru
        _
      // Predicated region
      $region21: #{gcn_forward.4} parent=11 // pred_check
        %p146 = pneg %p99
      $region22: #{gcn_forward.4} parent=11 // pred_check_branch
        %148 = sbr.rel (%p146) target = $region24
      $region23: #{gcn_forward.4} parent=11 // pred_region
        _
      $region24: #{gcn_forward.4} parent=11 // pred_fallthru
        _
    $region12: #{gcn_forward.4} parent=5 // pred_fallthru
      _
    %p149 = scmp.lt.s32.totalorder %s10, 2
    // Predicated region
    $region25: #{gcn_forward.4} parent=5 // pred_check
      %p150 = pneg %p149
    $region26: #{gcn_forward.4} parent=5 // pred_check_branch
      %152 = sbr.rel (%p150) target = $region28
    $region27: #{gcn_forward.4} parent=5 // pred_region
      // Predicated region
      $region29: #{gcn_forward.4} parent=27 // pred_check
        %p153 = pneg %p30
      $region30: #{gcn_forward.4} parent=27 // pred_check_branch
        %155 = sbr.rel (%p153) target = $region32
      $region31: #{gcn_forward.4} parent=27 // pred_region
        %s156 = smul.u32 32, %s10
        %p157 = scmp.lt.s32.totalorder %s156, 63
        %s158 = scalar_select %p157, %s156, 63
        %s159 = smul.addr %s158, 4
        %s160 = smul.addr %s159, 4
        %s161 = scalar_lea.vmem %s0, %s160
        %s162 = smul.u32 32, %s10
      $region32: #{gcn_forward.4} parent=27 // pred_fallthru
        _
    $region28: #{gcn_forward.4} parent=5 // pred_fallthru
      _
    %p163 = scmp.le.s32.totalorder 1, %s10
    %p164 = scmp.lt.s32.totalorder %s10, 3
    %p165 = pnand %p163, %p164
    %p166 = pneg %p165
    // Predicated region
    $region33: #{gcn_forward.4} parent=5 // pred_check
      _
    $region34: #{gcn_forward.4} parent=5 // pred_check_branch
      %168 = sbr.rel (%p165) target = $region36
    $region35: #{gcn_forward.4} parent=5 // pred_region
      %s169 = ssub.s32 %s10, 1
      %s170 = smul.u32 32, %s15
      %p171 = scmp.lt.s32.totalorder %s170, 63
      %s172 = scalar_select %p171, %s170, 63
      %s173 = smul.addr %s172, 4
      %s174 = smul.addr %s173, 4
      %s175 = scalar_lea.vmem %s0, %s174
      %p176 = pneg %p36
      %p177 = pneg %p33
      %p178 = pneg %p57
      %p179 = pneg %p54
      %p180 = pneg %p78
      %p181 = pneg %p75
      %p182 = pneg %p99
      %p183 = pneg %p96
      %p184 = pneg %p125
      %p185 = pneg %p122
      %s186 = smul.u32 32, %s15
      %p187 = scmp.lt.s32.totalorder %s186, 63
      %s188 = scalar_select %p187, %s186, 63
      %s189 = smul.addr %s188, 4
      %s190 = scalar_lea.vmem %s4, %s189
      %s191 = smul.u32 32, %s15
      %p192 = scmp.lt.s32.totalorder %s191, 63
      %s193 = scalar_select %p192, %s191, 63
      %s194 = smul.addr %s193, 4
      %s195 = smul.addr %s194, 4
      %s196 = scalar_lea.vmem %s0, %s195
      %s197 = smul.u32 32, %s15
      %s198 = smul.u32 32, %s15
      %p199 = scmp.lt.s32.totalorder %s198, 63
      %s200 = scalar_select %p199, %s198, 63
      %s201 = smul.addr %s200, 4
      %s202 = scalar_lea.vmem %s4, %s201
      %s203 = smul.u32 32, %s15
      %v205 = vld [vmem:[%s196] sm:$0xff]
      %v206 = vld [vmem:[%s196 + $0x8] sm:$0xff]
      %v207 = vld [vmem:[%s196 + $0x10] sm:$0xff]
      %v208 = vld [vmem:[%s196 + $0x18] sm:$0xff]
      %v209 = vld [vmem:[%s196 + $0x20] sm:$0xff]
      %v210 = vld [vmem:[%s196 + $0x28] sm:$0xff]
      %v211 = vld [vmem:[%s196 + $0x30] sm:$0xff]
      %v212 = vld [vmem:[%s196 + $0x38] sm:$0xff]
      %v213 = vld [vmem:[%s196 + $0x40] sm:$0xff]
      %v214 = vld [vmem:[%s196 + $0x48] sm:$0xff]
      %v215 = vld [vmem:[%s196 + $0x50] sm:$0xff]
      %v216 = vld [vmem:[%s196 + $0x58] sm:$0xff]
      %v217 = vld [vmem:[%s196 + $0x60] sm:$0xff]
      %v218 = vld [vmem:[%s196 + $0x68] sm:$0xff]
      %v219 = vld [vmem:[%s196 + $0x70] sm:$0xff]
      %v220 = vld [vmem:[%s196 + $0x78] sm:$0xff]
      %v221 = vld [vmem:[%s196 + $0x80] sm:$0xff]
      %v222 = vld [vmem:[%s196 + $0x88] sm:$0xff]
      %v223 = vld [vmem:[%s196 + $0x90] sm:$0xff]
      %v224 = vld [vmem:[%s196 + $0x98] sm:$0xff]
      %v225 = vld [vmem:[%s196 + $0xa0] sm:$0xff]
      %v226 = vld [vmem:[%s196 + $0xa8] sm:$0xff]
      %v227 = vld [vmem:[%s196 + $0xb0] sm:$0xff]
      %v228 = vld [vmem:[%s196 + $0xb8] sm:$0xff]
      %v229 = vld [vmem:[%s196 + $0xc0] sm:$0xff]
      %v230 = vld [vmem:[%s196 + $0xc8] sm:$0xff]
      %v231 = vld [vmem:[%s196 + $0xd0] sm:$0xff]
      %v232 = vld [vmem:[%s196 + $0xd8] sm:$0xff]
      %v233 = vld [vmem:[%s196 + $0xe0] sm:$0xff]
      %v234 = vld [vmem:[%s196 + $0xe8] sm:$0xff]
      %v235 = vld [vmem:[%s196 + $0xf0] sm:$0xff]
      %v236 = vld [vmem:[%s196 + $0xf8] sm:$0xff]
      %v237 = vld [vmem:[%s196 + $0x100] sm:$0xff]
      %v238 = vld [vmem:[%s196 + $0x108] sm:$0xff]
      %v239 = vld [vmem:[%s196 + $0x110] sm:$0xff]
      %v240 = vld [vmem:[%s196 + $0x118] sm:$0xff]
      %v241 = vld [vmem:[%s196 + $0x120] sm:$0xff]
      %v242 = vld [vmem:[%s196 + $0x128] sm:$0xff]
      %v243 = vld [vmem:[%s196 + $0x130] sm:$0xff]
      %v244 = vld [vmem:[%s196 + $0x138] sm:$0xff]
      %v245 = vld [vmem:[%s196 + $0x140] sm:$0xff]
      %v246 = vld [vmem:[%s196 + $0x148] sm:$0xff]
      %v247 = vld [vmem:[%s196 + $0x150] sm:$0xff]
      %v248 = vld [vmem:[%s196 + $0x158] sm:$0xff]
      %v249 = vld [vmem:[%s196 + $0x160] sm:$0xff]
      %v250 = vld [vmem:[%s196 + $0x168] sm:$0xff]
      %v251 = vld [vmem:[%s196 + $0x170] sm:$0xff]
      %v252 = vld [vmem:[%s196 + $0x178] sm:$0xff]
      %v253 = vld [vmem:[%s196 + $0x180] sm:$0xff]
      %v254 = vld [vmem:[%s196 + $0x188] sm:$0xff]
      %v255 = vld [vmem:[%s196 + $0x190] sm:$0xff]
      %v256 = vld [vmem:[%s196 + $0x198] sm:$0xff]
      %v257 = vld [vmem:[%s196 + $0x1a0] sm:$0xff]
      %v258 = vld [vmem:[%s196 + $0x1a8] sm:$0xff]
      %v259 = vld [vmem:[%s196 + $0x1b0] sm:$0xff]
      %v260 = vld [vmem:[%s196 + $0x1b8] sm:$0xff]
      %v261 = vld [vmem:[%s196 + $0x1c0] sm:$0xff]
      %v262 = vld [vmem:[%s196 + $0x1c8] sm:$0xff]
      %v263 = vld [vmem:[%s196 + $0x1d0] sm:$0xff]
      %v264 = vld [vmem:[%s196 + $0x1d8] sm:$0xff]
      %v265 = vld [vmem:[%s196 + $0x1e0] sm:$0xff]
      %v266 = vld [vmem:[%s196 + $0x1e8] sm:$0xff]
      %v267 = vld [vmem:[%s196 + $0x1f0] sm:$0xff]
      %v268 = vld [vmem:[%s196 + $0x1f8] sm:$0xff]
      %v269 = vld [vmem:[%s1] sm:$0xf]
      %v270 = vld [vmem:[%s1 + $0x4] sm:$0xf]
      %v271 = vld [vmem:[%s1 + $0x8] sm:$0xf]
      %v272 = vld [vmem:[%s1 + $0xc] sm:$0xf]
      %v273 = vld [vmem:[%s1 + $0x10] sm:$0xf]
      %v274 = vld [vmem:[%s1 + $0x14] sm:$0xf]
      %v275 = vld [vmem:[%s1 + $0x18] sm:$0xf]
      %v276 = vld [vmem:[%s1 + $0x1c] sm:$0xf]
      %v277 = vld [vmem:[%s1 + $0x20] sm:$0xf]
      %v278 = vld [vmem:[%s1 + $0x24] sm:$0xf]
      %v279 = vld [vmem:[%s1 + $0x28] sm:$0xf]
      %v280 = vld [vmem:[%s1 + $0x2c] sm:$0xf]
      %v281 = vld [vmem:[%s1 + $0x30] sm:$0xf]
      %v282 = vld [vmem:[%s1 + $0x34] sm:$0xf]
      %v283 = vld [vmem:[%s1 + $0x38] sm:$0xf]
      %v284 = vld [vmem:[%s1 + $0x3c] sm:$0xf]
      %v285 = vld [vmem:[%s1 + $0x40] sm:$0xf]
      %v286 = vld [vmem:[%s1 + $0x44] sm:$0xf]
      %v287 = vld [vmem:[%s1 + $0x48] sm:$0xf]
      %v288 = vld [vmem:[%s1 + $0x4c] sm:$0xf]
      %v289 = vld [vmem:[%s1 + $0x50] sm:$0xf]
      %v290 = vld [vmem:[%s1 + $0x54] sm:$0xf]
      %v291 = vld [vmem:[%s1 + $0x58] sm:$0xf]
      %v292 = vld [vmem:[%s1 + $0x5c] sm:$0xf]
      %v293 = vld [vmem:[%s1 + $0x60] sm:$0xf]
      %v294 = vld [vmem:[%s1 + $0x64] sm:$0xf]
      %v295 = vld [vmem:[%s1 + $0x68] sm:$0xf]
      %v296 = vld [vmem:[%s1 + $0x6c] sm:$0xf]
      %v297 = vld [vmem:[%s1 + $0x70] sm:$0xf]
      %v298 = vld [vmem:[%s1 + $0x74] sm:$0xf]
      %v299 = vld [vmem:[%s1 + $0x78] sm:$0xf]
      %v300 = vld [vmem:[%s1 + $0x7c] sm:$0xf]
      %v301 = vld [vmem:[%s1 + $0x80] sm:$0xf]
      %v302 = vld [vmem:[%s1 + $0x84] sm:$0xf]
      %v303 = vld [vmem:[%s1 + $0x88] sm:$0xf]
      %v304 = vld [vmem:[%s1 + $0x8c] sm:$0xf]
      %v305 = vld [vmem:[%s1 + $0x90] sm:$0xf]
      %v306 = vld [vmem:[%s1 + $0x94] sm:$0xf]
      %v307 = vld [vmem:[%s1 + $0x98] sm:$0xf]
      %v308 = vld [vmem:[%s1 + $0x9c] sm:$0xf]
      %v309 = vld [vmem:[%s1 + $0xa0] sm:$0xf]
      %v310 = vld [vmem:[%s1 + $0xa4] sm:$0xf]
      %v311 = vld [vmem:[%s1 + $0xa8] sm:$0xf]
      %v312 = vld [vmem:[%s1 + $0xac] sm:$0xf]
      %v313 = vld [vmem:[%s1 + $0xb0] sm:$0xf]
      %v314 = vld [vmem:[%s1 + $0xb4] sm:$0xf]
      %v315 = vld [vmem:[%s1 + $0xb8] sm:$0xf]
      %v316 = vld [vmem:[%s1 + $0xbc] sm:$0xf]
      %v317 = vld [vmem:[%s1 + $0xc0] sm:$0xf]
      %v318 = vld [vmem:[%s1 + $0xc4] sm:$0xf]
      %v319 = vld [vmem:[%s1 + $0xc8] sm:$0xf]
      %v320 = vld [vmem:[%s1 + $0xcc] sm:$0xf]
      %v321 = vld [vmem:[%s1 + $0xd0] sm:$0xf]
      %v322 = vld [vmem:[%s1 + $0xd4] sm:$0xf]
      %v323 = vld [vmem:[%s1 + $0xd8] sm:$0xf]
      %v324 = vld [vmem:[%s1 + $0xdc] sm:$0xf]
      %v325 = vld [vmem:[%s1 + $0xe0] sm:$0xf]
      %v326 = vld [vmem:[%s1 + $0xe4] sm:$0xf]
      %v327 = vld [vmem:[%s1 + $0xe8] sm:$0xf]
      %v328 = vld [vmem:[%s1 + $0xec] sm:$0xf]
      %v329 = vld [vmem:[%s1 + $0xf0] sm:$0xf]
      %v330 = vld [vmem:[%s1 + $0xf4] sm:$0xf]
      %v331 = vld [vmem:[%s1 + $0xf8] sm:$0xf]
      %v332 = vld [vmem:[%s1 + $0xfc] sm:$0xf]
      %v333 = vld [vmem:[%s3] sm:$0x1]
      %v335 = vlaneseq
      %v336 = vshrl.u32 %v335, 7
      %v337 = vsub.s32 0, %v336
      %v338 = vrot.slane %v333, %v337
      %v404 = vunpack.c.l.b16 %v205
      %v405 = vunpack.c.h.b16 %v205
      %v406 = vunpack.c.l.b16 %v206
      %v407 = vunpack.c.h.b16 %v206
      %v408 = vunpack.c.l.b16 %v207
      %v409 = vunpack.c.h.b16 %v207
      %v410 = vunpack.c.l.b16 %v208
      %v411 = vunpack.c.h.b16 %v208
      %v412 = vunpack.c.l.b16 %v209
      %v413 = vunpack.c.h.b16 %v209
      %v414 = vunpack.c.l.b16 %v210
      %v415 = vunpack.c.h.b16 %v210
      %v416 = vunpack.c.l.b16 %v211
      %v417 = vunpack.c.h.b16 %v211
      %v418 = vunpack.c.l.b16 %v212
      %v419 = vunpack.c.h.b16 %v212
      %v420 = vunpack.c.l.b16 %v213
      %v421 = vunpack.c.h.b16 %v213
      %v422 = vunpack.c.l.b16 %v214
      %v423 = vunpack.c.h.b16 %v214
      %v424 = vunpack.c.l.b16 %v215
      %v425 = vunpack.c.h.b16 %v215
      %v426 = vunpack.c.l.b16 %v216
      %v427 = vunpack.c.h.b16 %v216
      %v428 = vunpack.c.l.b16 %v217
      %v429 = vunpack.c.h.b16 %v217
      %v430 = vunpack.c.l.b16 %v218
      %v431 = vunpack.c.h.b16 %v218
      %v432 = vunpack.c.l.b16 %v219
      %v433 = vunpack.c.h.b16 %v219
      %v434 = vunpack.c.l.b16 %v220
      %v435 = vunpack.c.h.b16 %v220
      %v436 = vunpack.c.l.b16 %v221
      %v437 = vunpack.c.h.b16 %v221
      %v438 = vunpack.c.l.b16 %v222
      %v439 = vunpack.c.h.b16 %v222
      %v440 = vunpack.c.l.b16 %v223
      %v441 = vunpack.c.h.b16 %v223
      %v442 = vunpack.c.l.b16 %v224
      %v443 = vunpack.c.h.b16 %v224
      %v444 = vunpack.c.l.b16 %v225
      %v445 = vunpack.c.h.b16 %v225
      %v446 = vunpack.c.l.b16 %v226
      %v447 = vunpack.c.h.b16 %v226
      %v448 = vunpack.c.l.b16 %v227
      %v449 = vunpack.c.h.b16 %v227
      %v450 = vunpack.c.l.b16 %v228
      %v451 = vunpack.c.h.b16 %v228
      %v452 = vunpack.c.l.b16 %v229
      %v453 = vunpack.c.h.b16 %v229
      %v454 = vunpack.c.l.b16 %v230
      %v455 = vunpack.c.h.b16 %v230
      %v456 = vunpack.c.l.b16 %v231
      %v457 = vunpack.c.h.b16 %v231
      %v458 = vunpack.c.l.b16 %v232
      %v459 = vunpack.c.h.b16 %v232
      %v460 = vunpack.c.l.b16 %v233
      %v461 = vunpack.c.h.b16 %v233
      %v462 = vunpack.c.l.b16 %v234
      %v463 = vunpack.c.h.b16 %v234
      %v464 = vunpack.c.l.b16 %v235
      %v465 = vunpack.c.h.b16 %v235
      %v466 = vunpack.c.l.b16 %v236
      %v467 = vunpack.c.h.b16 %v236
      %v468 = vunpack.c.l.b16 %v237
      %v469 = vunpack.c.h.b16 %v237
      %v470 = vunpack.c.l.b16 %v238
      %v471 = vunpack.c.h.b16 %v238
      %v472 = vunpack.c.l.b16 %v239
      %v473 = vunpack.c.h.b16 %v239
      %v474 = vunpack.c.l.b16 %v240
      %v475 = vunpack.c.h.b16 %v240
      %v476 = vunpack.c.l.b16 %v241
      %v477 = vunpack.c.h.b16 %v241
      %v478 = vunpack.c.l.b16 %v242
      %v479 = vunpack.c.h.b16 %v242
      %v480 = vunpack.c.l.b16 %v243
      %v481 = vunpack.c.h.b16 %v243
      %v482 = vunpack.c.l.b16 %v244
      %v483 = vunpack.c.h.b16 %v244
      %v484 = vunpack.c.l.b16 %v245
      %v485 = vunpack.c.h.b16 %v245
      %v486 = vunpack.c.l.b16 %v246
      %v487 = vunpack.c.h.b16 %v246
      %v488 = vunpack.c.l.b16 %v247
      %v489 = vunpack.c.h.b16 %v247
      %v490 = vunpack.c.l.b16 %v248
      %v491 = vunpack.c.h.b16 %v248
      %v492 = vunpack.c.l.b16 %v249
      %v493 = vunpack.c.h.b16 %v249
      %v494 = vunpack.c.l.b16 %v250
      %v495 = vunpack.c.h.b16 %v250
      %v496 = vunpack.c.l.b16 %v251
      %v497 = vunpack.c.h.b16 %v251
      %v498 = vunpack.c.l.b16 %v252
      %v499 = vunpack.c.h.b16 %v252
      %v500 = vunpack.c.l.b16 %v253
      %v501 = vunpack.c.h.b16 %v253
      %v502 = vunpack.c.l.b16 %v254
      %v503 = vunpack.c.h.b16 %v254
      %v504 = vunpack.c.l.b16 %v255
      %v505 = vunpack.c.h.b16 %v255
      %v506 = vunpack.c.l.b16 %v256
      %v507 = vunpack.c.h.b16 %v256
      %v508 = vunpack.c.l.b16 %v257
      %v509 = vunpack.c.h.b16 %v257
      %v510 = vunpack.c.l.b16 %v258
      %v511 = vunpack.c.h.b16 %v258
      %v512 = vunpack.c.l.b16 %v259
      %v513 = vunpack.c.h.b16 %v259
      %v514 = vunpack.c.l.b16 %v260
      %v515 = vunpack.c.h.b16 %v260
      %v516 = vunpack.c.l.b16 %v261
      %v517 = vunpack.c.h.b16 %v261
      %v518 = vunpack.c.l.b16 %v262
      %v519 = vunpack.c.h.b16 %v262
      %v520 = vunpack.c.l.b16 %v263
      %v521 = vunpack.c.h.b16 %v263
      %v522 = vunpack.c.l.b16 %v264
      %v523 = vunpack.c.h.b16 %v264
      %v524 = vunpack.c.l.b16 %v265
      %v525 = vunpack.c.h.b16 %v265
      %v526 = vunpack.c.l.b16 %v266
      %v527 = vunpack.c.h.b16 %v266
      %v528 = vunpack.c.l.b16 %v267
      %v529 = vunpack.c.h.b16 %v267
      %v530 = vunpack.c.l.b16 %v268
      %v531 = vunpack.c.h.b16 %v268
      %v532 = vpack.c.b16 %v408, %v404
      %v533 = vpack.c.b16 %v409, %v405
      %v534 = vpack.c.b16 %v410, %v406
      %v535 = vpack.c.b16 %v411, %v407
      %v536 = vpack.c.b16 %v416, %v412
      %v537 = vpack.c.b16 %v417, %v413
      %v538 = vpack.c.b16 %v418, %v414
      %v539 = vpack.c.b16 %v419, %v415
      %v540 = vpack.c.b16 %v424, %v420
      %v541 = vpack.c.b16 %v425, %v421
      %v542 = vpack.c.b16 %v426, %v422
      %v543 = vpack.c.b16 %v427, %v423
      %v544 = vpack.c.b16 %v432, %v428
      %v545 = vpack.c.b16 %v433, %v429
      %v546 = vpack.c.b16 %v434, %v430
      %v547 = vpack.c.b16 %v435, %v431
      %v548 = vpack.c.b16 %v440, %v436
      %v549 = vpack.c.b16 %v441, %v437
      %v550 = vpack.c.b16 %v442, %v438
      %v551 = vpack.c.b16 %v443, %v439
      %v552 = vpack.c.b16 %v448, %v444
      %v553 = vpack.c.b16 %v449, %v445
      %v554 = vpack.c.b16 %v450, %v446
      %v555 = vpack.c.b16 %v451, %v447
      %v556 = vpack.c.b16 %v456, %v452
      %v557 = vpack.c.b16 %v457, %v453
      %v558 = vpack.c.b16 %v458, %v454
      %v559 = vpack.c.b16 %v459, %v455
      %v560 = vpack.c.b16 %v464, %v460
      %v561 = vpack.c.b16 %v465, %v461
      %v562 = vpack.c.b16 %v466, %v462
      %v563 = vpack.c.b16 %v467, %v463
      %v564 = vpack.c.b16 %v472, %v468
      %v565 = vpack.c.b16 %v473, %v469
      %v566 = vpack.c.b16 %v474, %v470
      %v567 = vpack.c.b16 %v475, %v471
      %v568 = vpack.c.b16 %v480, %v476
      %v569 = vpack.c.b16 %v481, %v477
      %v570 = vpack.c.b16 %v482, %v478
      %v571 = vpack.c.b16 %v483, %v479
      %v572 = vpack.c.b16 %v488, %v484
      %v573 = vpack.c.b16 %v489, %v485
      %v574 = vpack.c.b16 %v490, %v486
      %v575 = vpack.c.b16 %v491, %v487
      %v576 = vpack.c.b16 %v496, %v492
      %v577 = vpack.c.b16 %v497, %v493
      %v578 = vpack.c.b16 %v498, %v494
      %v579 = vpack.c.b16 %v499, %v495
      %v580 = vpack.c.b16 %v504, %v500
      %v581 = vpack.c.b16 %v505, %v501
      %v582 = vpack.c.b16 %v506, %v502
      %v583 = vpack.c.b16 %v507, %v503
      %v584 = vpack.c.b16 %v512, %v508
      %v585 = vpack.c.b16 %v513, %v509
      %v586 = vpack.c.b16 %v514, %v510
      %v587 = vpack.c.b16 %v515, %v511
      %v588 = vpack.c.b16 %v520, %v516
      %v589 = vpack.c.b16 %v521, %v517
      %v590 = vpack.c.b16 %v522, %v518
      %v591 = vpack.c.b16 %v523, %v519
      %v592 = vpack.c.b16 %v528, %v524
      %v593 = vpack.c.b16 %v529, %v525
      %v594 = vpack.c.b16 %v530, %v526
      %v595 = vpack.c.b16 %v531, %v527
      %v724 = vunpack.c.l.b16 %v269
      %v725 = vunpack.c.l.b16 %v270
      %v726 = vunpack.c.l.b16 %v271
      %v727 = vunpack.c.l.b16 %v272
      %v728 = vunpack.c.l.b16 %v273
      %v729 = vunpack.c.l.b16 %v274
      %v730 = vunpack.c.l.b16 %v275
      %v731 = vunpack.c.l.b16 %v276
      %v732 = vunpack.c.l.b16 %v277
      %v733 = vunpack.c.l.b16 %v278
      %v734 = vunpack.c.l.b16 %v279
      %v735 = vunpack.c.l.b16 %v280
      %v736 = vunpack.c.l.b16 %v281
      %v737 = vunpack.c.l.b16 %v282
      %v738 = vunpack.c.l.b16 %v283
      %v739 = vunpack.c.l.b16 %v284
      %v740 = vunpack.c.l.b16 %v285
      %v741 = vunpack.c.l.b16 %v286
      %v742 = vunpack.c.l.b16 %v287
      %v743 = vunpack.c.l.b16 %v288
      %v744 = vunpack.c.l.b16 %v289
      %v745 = vunpack.c.l.b16 %v290
      %v746 = vunpack.c.l.b16 %v291
      %v747 = vunpack.c.l.b16 %v292
      %v748 = vunpack.c.l.b16 %v293
      %v749 = vunpack.c.l.b16 %v294
      %v750 = vunpack.c.l.b16 %v295
      %v751 = vunpack.c.l.b16 %v296
      %v752 = vunpack.c.l.b16 %v297
      %v753 = vunpack.c.l.b16 %v298
      %v754 = vunpack.c.l.b16 %v299
      %v755 = vunpack.c.l.b16 %v300
      %v756 = vunpack.c.l.b16 %v301
      %v757 = vunpack.c.l.b16 %v302
      %v758 = vunpack.c.l.b16 %v303
      %v759 = vunpack.c.l.b16 %v304
      %v760 = vunpack.c.l.b16 %v305
      %v761 = vunpack.c.l.b16 %v306
      %v762 = vunpack.c.l.b16 %v307
      %v763 = vunpack.c.l.b16 %v308
      %v764 = vunpack.c.l.b16 %v309
      %v765 = vunpack.c.l.b16 %v310
      %v766 = vunpack.c.l.b16 %v311
      %v767 = vunpack.c.l.b16 %v312
      %v768 = vunpack.c.l.b16 %v313
      %v769 = vunpack.c.l.b16 %v314
      %v770 = vunpack.c.l.b16 %v315
      %v771 = vunpack.c.l.b16 %v316
      %v772 = vunpack.c.l.b16 %v317
      %v773 = vunpack.c.l.b16 %v318
      %v774 = vunpack.c.l.b16 %v319
      %v775 = vunpack.c.l.b16 %v320
      %v776 = vunpack.c.l.b16 %v321
      %v777 = vunpack.c.l.b16 %v322
      %v778 = vunpack.c.l.b16 %v323
      %v779 = vunpack.c.l.b16 %v324
      %v780 = vunpack.c.l.b16 %v325
      %v781 = vunpack.c.l.b16 %v326
      %v782 = vunpack.c.l.b16 %v327
      %v783 = vunpack.c.l.b16 %v328
      %v784 = vunpack.c.l.b16 %v329
      %v785 = vunpack.c.l.b16 %v330
      %v786 = vunpack.c.l.b16 %v331
      %v787 = vunpack.c.l.b16 %v332
      %v788 = vpack.c.b16 %v725, %v724
      %v789 = vpack.c.b16 %v727, %v726
      %v790 = vpack.c.b16 %v729, %v728
      %v791 = vpack.c.b16 %v731, %v730
      %v792 = vpack.c.b16 %v733, %v732
      %v793 = vpack.c.b16 %v735, %v734
      %v794 = vpack.c.b16 %v737, %v736
      %v795 = vpack.c.b16 %v739, %v738
      %v796 = vpack.c.b16 %v741, %v740
      %v797 = vpack.c.b16 %v743, %v742
      %v798 = vpack.c.b16 %v745, %v744
      %v799 = vpack.c.b16 %v747, %v746
      %v800 = vpack.c.b16 %v749, %v748
      %v801 = vpack.c.b16 %v751, %v750
      %v802 = vpack.c.b16 %v753, %v752
      %v803 = vpack.c.b16 %v755, %v754
      %v804 = vpack.c.b16 %v757, %v756
      %v805 = vpack.c.b16 %v759, %v758
      %v806 = vpack.c.b16 %v761, %v760
      %v807 = vpack.c.b16 %v763, %v762
      %v808 = vpack.c.b16 %v765, %v764
      %v809 = vpack.c.b16 %v767, %v766
      %v810 = vpack.c.b16 %v769, %v768
      %v811 = vpack.c.b16 %v771, %v770
      %v812 = vpack.c.b16 %v773, %v772
      %v813 = vpack.c.b16 %v775, %v774
      %v814 = vpack.c.b16 %v777, %v776
      %v815 = vpack.c.b16 %v779, %v778
      %v816 = vpack.c.b16 %v781, %v780
      %v817 = vpack.c.b16 %v783, %v782
      %v818 = vpack.c.b16 %v785, %v784
      %v819 = vpack.c.b16 %v787, %v786
      %852 = vmatprep.subr.bf16.mxu0 0
      %853 = vmatpush1.bf16.msra.mxu0 %v788
      %854 = vmatprep.subr.bf16.mxu0 0
      %855 = vmatpush1.bf16.msra.mxu0 %v789
      %856 = vmatprep.subr.bf16.mxu0 0
      %857 = vmatpush1.bf16.msra.mxu0 %v790
      %858 = vmatprep.subr.bf16.mxu0 0
      %859 = vmatpush1.bf16.msra.mxu0 %v791
      %860 = vmatprep.subr.bf16.mxu0 0
      %861 = vmatpush1.bf16.msra.mxu0 %v792
      %862 = vmatprep.subr.bf16.mxu0 0
      %863 = vmatpush1.bf16.msra.mxu0 %v793
      %864 = vmatprep.subr.bf16.mxu0 0
      %865 = vmatpush1.bf16.msra.mxu0 %v794
      %866 = vmatprep.subr.bf16.mxu0 0
      %867 = vmatpush1.bf16.msra.mxu0 %v795
      %868 = vmatprep.subr.bf16.mxu0 0
      %869 = vmatpush1.bf16.msra.mxu0 %v796
      %870 = vmatprep.subr.bf16.mxu0 0
      %871 = vmatpush1.bf16.msra.mxu0 %v797
      %872 = vmatprep.subr.bf16.mxu0 0
      %873 = vmatpush1.bf16.msra.mxu0 %v798
      %874 = vmatprep.subr.bf16.mxu0 0
      %875 = vmatpush1.bf16.msra.mxu0 %v799
      %876 = vmatprep.subr.bf16.mxu0 0
      %877 = vmatpush1.bf16.msra.mxu0 %v800
      %878 = vmatprep.subr.bf16.mxu0 0
      %879 = vmatpush1.bf16.msra.mxu0 %v801
      %880 = vmatprep.subr.bf16.mxu0 0
      %881 = vmatpush1.bf16.msra.mxu0 %v802
      %882 = vmatprep.subr.bf16.mxu0 0
      %883 = vmatpush1.bf16.msra.mxu0 %v803
      %884 = vmatprep.mubr.bf16.mxu0 %v533
      %885 = vmatmul.mubr.bf16.gmra.mrb[0].mxu0 %v532
      %v886 = vpop.f32.mrb[0].mxu0
      %v887 = vadd.f32 %v338, %v886
      %v888 = vpop.f32.mrb[0].mxu0
      %v889 = vpop.f32.mrb[0].mxu0
      %v890 = vadd.f32 %v338, %v889
      %v891 = vpop.f32.mrb[0].mxu0
      %892 = vmatprep.mubr.bf16.mxu0 %v537
      %893 = vmatmul.mubr.bf16.gmra.mrb[0].mxu0 %v536
      %v894 = vpop.f32.mrb[0].mxu0
      %v895 = vadd.f32 %v338, %v894
      %v896 = vpop.f32.mrb[0].mxu0
      %v897 = vpop.f32.mrb[0].mxu0
      %v898 = vadd.f32 %v338, %v897
      %v899 = vpop.f32.mrb[0].mxu0
      %900 = vmatprep.mubr.bf16.mxu0 %v541
      %901 = vmatmul.mubr.bf16.gmra.mrb[0].mxu0 %v540
      %v902 = vpop.f32.mrb[0].mxu0
      %v903 = vadd.f32 %v338, %v902
      %v904 = vpop.f32.mrb[0].mxu0
      %v905 = vpop.f32.mrb[0].mxu0
      %v906 = vadd.f32 %v338, %v905
      %v907 = vpop.f32.mrb[0].mxu0
      %908 = vmatprep.mubr.bf16.mxu0 %v545
      %909 = vmatmul.mubr.bf16.gmra.mrb[0].mxu0 %v544
      %v910 = vpop.f32.mrb[0].mxu0
      %v911 = vadd.f32 %v338, %v910
      %v912 = vpop.f32.mrb[0].mxu0
      %v913 = vpop.f32.mrb[0].mxu0
      %v914 = vadd.f32 %v338, %v913
      %v915 = vpop.f32.mrb[0].mxu0
      %916 = vmatprep.mubr.bf16.mxu0 %v549
      %917 = vmatmul.mubr.bf16.gmra.mrb[0].mxu0 %v548
      %v918 = vpop.f32.mrb[0].mxu0
      %v919 = vadd.f32 %v338, %v918
      %v920 = vpop.f32.mrb[0].mxu0
      %v921 = vpop.f32.mrb[0].mxu0
      %v922 = vadd.f32 %v338, %v921
      %v923 = vpop.f32.mrb[0].mxu0
      %924 = vmatprep.mubr.bf16.mxu0 %v553
      %925 = vmatmul.mubr.bf16.gmra.mrb[0].mxu0 %v552
      %v926 = vpop.f32.mrb[0].mxu0
      %v927 = vadd.f32 %v338, %v926
      %v928 = vpop.f32.mrb[0].mxu0
      %v929 = vpop.f32.mrb[0].mxu0
      %v930 = vadd.f32 %v338, %v929
      %v931 = vpop.f32.mrb[0].mxu0
      %932 = vmatprep.mubr.bf16.mxu0 %v557
      %933 = vmatmul.mubr.bf16.gmra.mrb[0].mxu0 %v556
      %v934 = vpop.f32.mrb[0].mxu0
      %v935 = vadd.f32 %v338, %v934
      %v936 = vpop.f32.mrb[0].mxu0
      %v937 = vpop.f32.mrb[0].mxu0
      %v938 = vadd.f32 %v338, %v937
      %v939 = vpop.f32.mrb[0].mxu0
      %940 = vmatprep.mubr.bf16.mxu0 %v561
      %941 = vmatmul.mubr.bf16.gmra.mrb[0].mxu0 %v560
      %v942 = vpop.f32.mrb[0].mxu0
      %v943 = vadd.f32 %v338, %v942
      %v944 = vpop.f32.mrb[0].mxu0
      %v945 = vpop.f32.mrb[0].mxu0
      %v946 = vadd.f32 %v338, %v945
      %v947 = vpop.f32.mrb[0].mxu0
      %948 = vmatprep.mubr.bf16.mxu0 %v565
      %949 = vmatmul.mubr.bf16.gmra.mrb[0].mxu0 %v564
      %v950 = vpop.f32.mrb[0].mxu0
      %v951 = vadd.f32 %v338, %v950
      %v952 = vpop.f32.mrb[0].mxu0
      %v953 = vpop.f32.mrb[0].mxu0
      %v954 = vadd.f32 %v338, %v953
      %v955 = vpop.f32.mrb[0].mxu0
      %956 = vmatprep.mubr.bf16.mxu0 %v569
      %957 = vmatmul.mubr.bf16.gmra.mrb[0].mxu0 %v568
      %v958 = vpop.f32.mrb[0].mxu0
      %v959 = vadd.f32 %v338, %v958
      %v960 = vpop.f32.mrb[0].mxu0
      %v961 = vpop.f32.mrb[0].mxu0
      %v962 = vadd.f32 %v338, %v961
      %v963 = vpop.f32.mrb[0].mxu0
      %964 = vmatprep.mubr.bf16.mxu0 %v573
      %965 = vmatmul.mubr.bf16.gmra.mrb[0].mxu0 %v572
      %v966 = vpop.f32.mrb[0].mxu0
      %v967 = vadd.f32 %v338, %v966
      %v968 = vpop.f32.mrb[0].mxu0
      %v969 = vpop.f32.mrb[0].mxu0
      %v970 = vadd.f32 %v338, %v969
      %v971 = vpop.f32.mrb[0].mxu0
      %972 = vmatprep.mubr.bf16.mxu0 %v577
      %973 = vmatmul.mubr.bf16.gmra.mrb[0].mxu0 %v576
      %v974 = vpop.f32.mrb[0].mxu0
      %v975 = vadd.f32 %v338, %v974
      %v976 = vpop.f32.mrb[0].mxu0
      %v977 = vpop.f32.mrb[0].mxu0
      %v978 = vadd.f32 %v338, %v977
      %v979 = vpop.f32.mrb[0].mxu0
      %980 = vmatprep.mubr.bf16.mxu0 %v581
      %981 = vmatmul.mubr.bf16.gmra.mrb[0].mxu0 %v580
      %v982 = vpop.f32.mrb[0].mxu0
      %v983 = vadd.f32 %v338, %v982
      %v984 = vpop.f32.mrb[0].mxu0
      %v985 = vpop.f32.mrb[0].mxu0
      %v986 = vadd.f32 %v338, %v985
      %v987 = vpop.f32.mrb[0].mxu0
      %988 = vmatprep.mubr.bf16.mxu0 %v585
      %989 = vmatmul.mubr.bf16.gmra.mrb[0].mxu0 %v584
      %v990 = vpop.f32.mrb[0].mxu0
      %v991 = vadd.f32 %v338, %v990
      %v992 = vpop.f32.mrb[0].mxu0
      %v993 = vpop.f32.mrb[0].mxu0
      %v994 = vadd.f32 %v338, %v993
      %v995 = vpop.f32.mrb[0].mxu0
      %996 = vmatprep.mubr.bf16.mxu0 %v589
      %997 = vmatmul.mubr.bf16.gmra.mrb[0].mxu0 %v588
      %v998 = vpop.f32.mrb[0].mxu0
      %v999 = vadd.f32 %v338, %v998
      %v1000 = vpop.f32.mrb[0].mxu0
      %v1001 = vpop.f32.mrb[0].mxu0
      %v1002 = vadd.f32 %v338, %v1001
      %v1003 = vpop.f32.mrb[0].mxu0
      %1004 = vmatprep.mubr.bf16.mxu0 %v593
      %1005 = vmatmul.mubr.bf16.gmra.mrb[0].mxu0 %v592
      %v1006 = vpop.f32.mrb[0].mxu0
      %v1007 = vadd.f32 %v338, %v1006
      %v1008 = vpop.f32.mrb[0].mxu0
      %v1009 = vpop.f32.mrb[0].mxu0
      %v1010 = vadd.f32 %v338, %v1009
      %v1011 = vpop.f32.mrb[0].mxu0
      %1012 = vdwg.mxu0
      %1013 = vmatprep.subr.bf16.mxu0 0
      %1014 = vmatpush1.bf16.msra.mxu0 %v804
      %1015 = vmatprep.subr.bf16.mxu0 0
      %1016 = vmatpush1.bf16.msra.mxu0 %v805
      %1017 = vmatprep.subr.bf16.mxu0 0
      %1018 = vmatpush1.bf16.msra.mxu0 %v806
      %1019 = vmatprep.subr.bf16.mxu0 0
      %1020 = vmatpush1.bf16.msra.mxu0 %v807
      %1021 = vmatprep.subr.bf16.mxu0 0
      %1022 = vmatpush1.bf16.msra.mxu0 %v808
      %1023 = vmatprep.subr.bf16.mxu0 0
      %1024 = vmatpush1.bf16.msra.mxu0 %v809
      %1025 = vmatprep.subr.bf16.mxu0 0
      %1026 = vmatpush1.bf16.msra.mxu0 %v810
      %1027 = vmatprep.subr.bf16.mxu0 0
      %1028 = vmatpush1.bf16.msra.mxu0 %v811
      %1029 = vmatprep.subr.bf16.mxu0 0
      %1030 = vmatpush1.bf16.msra.mxu0 %v812
      %1031 = vmatprep.subr.bf16.mxu0 0
      %1032 = vmatpush1.bf16.msra.mxu0 %v813
      %1033 = vmatprep.subr.bf16.mxu0 0
      %1034 = vmatpush1.bf16.msra.mxu0 %v814
      %1035 = vmatprep.subr.bf16.mxu0 0
      %1036 = vmatpush1.bf16.msra.mxu0 %v815
      %1037 = vmatprep.subr.bf16.mxu0 0
      %1038 = vmatpush1.bf16.msra.mxu0 %v816
      %1039 = vmatprep.subr.bf16.mxu0 0
      %1040 = vmatpush1.bf16.msra.mxu0 %v817
      %1041 = vmatprep.subr.bf16.mxu0 0
      %1042 = vmatpush1.bf16.msra.mxu0 %v818
      %1043 = vmatprep.subr.bf16.mxu0 0
      %1044 = vmatpush1.bf16.msra.mxu0 %v819
      %1045 = vmatprep.mubr.bf16.mxu0 %v535
      %1046 = vmatmul.mubr.bf16.gmra.mrb[0].mxu0 %v534
      %v1047 = vpop.f32.mrb[0].mxu0
      %v1048 = vadd.f32 %v887, %v1047
      %v1049 = vpop.f32.mrb[0].mxu0
      %v1050 = vpop.f32.mrb[0].mxu0
      %v1051 = vadd.f32 %v890, %v1050
      %v1052 = vpop.f32.mrb[0].mxu0
      %1053 = vmatprep.mubr.bf16.mxu0 %v539
      %1054 = vmatmul.mubr.bf16.gmra.mrb[0].mxu0 %v538
      %v1055 = vpop.f32.mrb[0].mxu0
      %v1056 = vadd.f32 %v895, %v1055
      %v1057 = vpop.f32.mrb[0].mxu0
      %v1058 = vpop.f32.mrb[0].mxu0
      %v1059 = vadd.f32 %v898, %v1058
      %v1060 = vpop.f32.mrb[0].mxu0
      %1061 = vmatprep.mubr.bf16.mxu0 %v543
      %1062 = vmatmul.mubr.bf16.gmra.mrb[0].mxu0 %v542
      %v1063 = vpop.f32.mrb[0].mxu0
      %v1064 = vadd.f32 %v903, %v1063
      %v1065 = vpop.f32.mrb[0].mxu0
      %v1066 = vpop.f32.mrb[0].mxu0
      %v1067 = vadd.f32 %v906, %v1066
      %v1068 = vpop.f32.mrb[0].mxu0
      %1069 = vmatprep.mubr.bf16.mxu0 %v547
      %1070 = vmatmul.mubr.bf16.gmra.mrb[0].mxu0 %v546
      %v1071 = vpop.f32.mrb[0].mxu0
      %v1072 = vadd.f32 %v911, %v1071
      %v1073 = vpop.f32.mrb[0].mxu0
      %v1074 = vpop.f32.mrb[0].mxu0
      %v1075 = vadd.f32 %v914, %v1074
      %v1076 = vpop.f32.mrb[0].mxu0
      %1077 = vmatprep.mubr.bf16.mxu0 %v551
      %1078 = vmatmul.mubr.bf16.gmra.mrb[0].mxu0 %v550
      %v1079 = vpop.f32.mrb[0].mxu0
      %v1080 = vadd.f32 %v919, %v1079
      %v1081 = vpop.f32.mrb[0].mxu0
      %v1082 = vpop.f32.mrb[0].mxu0
      %v1083 = vadd.f32 %v922, %v1082
      %v1084 = vpop.f32.mrb[0].mxu0
      %1085 = vmatprep.mubr.bf16.mxu0 %v555
      %1086 = vmatmul.mubr.bf16.gmra.mrb[0].mxu0 %v554
      %v1087 = vpop.f32.mrb[0].mxu0
      %v1088 = vadd.f32 %v927, %v1087
      %v1089 = vpop.f32.mrb[0].mxu0
      %v1090 = vpop.f32.mrb[0].mxu0
      %v1091 = vadd.f32 %v930, %v1090
      %v1092 = vpop.f32.mrb[0].mxu0
      %1093 = vmatprep.mubr.bf16.mxu0 %v559
      %1094 = vmatmul.mubr.bf16.gmra.mrb[0].mxu0 %v558
      %v1095 = vpop.f32.mrb[0].mxu0
      %v1096 = vadd.f32 %v935, %v1095
      %v1097 = vpop.f32.mrb[0].mxu0
      %v1098 = vpop.f32.mrb[0].mxu0
      %v1099 = vadd.f32 %v938, %v1098
      %v1100 = vpop.f32.mrb[0].mxu0
      %1101 = vmatprep.mubr.bf16.mxu0 %v563
      %1102 = vmatmul.mubr.bf16.gmra.mrb[0].mxu0 %v562
      %v1103 = vpop.f32.mrb[0].mxu0
      %v1104 = vadd.f32 %v943, %v1103
      %v1105 = vpop.f32.mrb[0].mxu0
      %v1106 = vpop.f32.mrb[0].mxu0
      %v1107 = vadd.f32 %v946, %v1106
      %v1108 = vpop.f32.mrb[0].mxu0
      %1109 = vmatprep.mubr.bf16.mxu0 %v567
      %1110 = vmatmul.mubr.bf16.gmra.mrb[0].mxu0 %v566
      %v1111 = vpop.f32.mrb[0].mxu0
      %v1112 = vadd.f32 %v951, %v1111
      %v1113 = vpop.f32.mrb[0].mxu0
      %v1114 = vpop.f32.mrb[0].mxu0
      %v1115 = vadd.f32 %v954, %v1114
      %v1116 = vpop.f32.mrb[0].mxu0
      %1117 = vmatprep.mubr.bf16.mxu0 %v571
      %1118 = vmatmul.mubr.bf16.gmra.mrb[0].mxu0 %v570
      %v1119 = vpop.f32.mrb[0].mxu0
      %v1120 = vadd.f32 %v959, %v1119
      %v1121 = vpop.f32.mrb[0].mxu0
      %v1122 = vpop.f32.mrb[0].mxu0
      %v1123 = vadd.f32 %v962, %v1122
      %v1124 = vpop.f32.mrb[0].mxu0
      %1125 = vmatprep.mubr.bf16.mxu0 %v575
      %1126 = vmatmul.mubr.bf16.gmra.mrb[0].mxu0 %v574
      %v1127 = vpop.f32.mrb[0].mxu0
      %v1128 = vadd.f32 %v967, %v1127
      %v1129 = vpop.f32.mrb[0].mxu0
      %v1130 = vpop.f32.mrb[0].mxu0
      %v1131 = vadd.f32 %v970, %v1130
      %v1132 = vpop.f32.mrb[0].mxu0
      %1133 = vmatprep.mubr.bf16.mxu0 %v579
      %1134 = vmatmul.mubr.bf16.gmra.mrb[0].mxu0 %v578
      %v1135 = vpop.f32.mrb[0].mxu0
      %v1136 = vadd.f32 %v975, %v1135
      %v1137 = vpop.f32.mrb[0].mxu0
      %v1138 = vpop.f32.mrb[0].mxu0
      %v1139 = vadd.f32 %v978, %v1138
      %v1140 = vpop.f32.mrb[0].mxu0
      %1141 = vmatprep.mubr.bf16.mxu0 %v583
      %1142 = vmatmul.mubr.bf16.gmra.mrb[0].mxu0 %v582
      %v1143 = vpop.f32.mrb[0].mxu0
      %v1144 = vadd.f32 %v983, %v1143
      %v1145 = vpop.f32.mrb[0].mxu0
      %v1146 = vpop.f32.mrb[0].mxu0
      %v1147 = vadd.f32 %v986, %v1146
      %v1148 = vpop.f32.mrb[0].mxu0
      %1149 = vmatprep.mubr.bf16.mxu0 %v587
      %1150 = vmatmul.mubr.bf16.gmra.mrb[0].mxu0 %v586
      %v1151 = vpop.f32.mrb[0].mxu0
      %v1152 = vadd.f32 %v991, %v1151
      %v1153 = vpop.f32.mrb[0].mxu0
      %v1154 = vpop.f32.mrb[0].mxu0
      %v1155 = vadd.f32 %v994, %v1154
      %v1156 = vpop.f32.mrb[0].mxu0
      %1157 = vmatprep.mubr.bf16.mxu0 %v591
      %1158 = vmatmul.mubr.bf16.gmra.mrb[0].mxu0 %v590
      %v1159 = vpop.f32.mrb[0].mxu0
      %v1160 = vadd.f32 %v999, %v1159
      %v1161 = vpop.f32.mrb[0].mxu0
      %v1162 = vpop.f32.mrb[0].mxu0
      %v1163 = vadd.f32 %v1002, %v1162
      %v1164 = vpop.f32.mrb[0].mxu0
      %1165 = vmatprep.mubr.bf16.mxu0 %v595
      %1166 = vmatmul.mubr.bf16.gmra.mrb[0].mxu0 %v594
      %v1167 = vpop.f32.mrb[0].mxu0
      %v1168 = vadd.f32 %v1007, %v1167
      %v1169 = vpop.f32.mrb[0].mxu0
      %v1170 = vpop.f32.mrb[0].mxu0
      %v1171 = vadd.f32 %v1010, %v1170
      %v1172 = vpop.f32.mrb[0].mxu0
      %1173 = vdwg.mxu0
      %v1174 = vmax.f32 %v1048, 0.0
      %v1175 = vmax.f32 %v1051, 0.0
      %v1176 = vmax.f32 %v1056, 0.0
      %v1177 = vmax.f32 %v1059, 0.0
      %v1178 = vmax.f32 %v1064, 0.0
      %v1179 = vmax.f32 %v1067, 0.0
      %v1180 = vmax.f32 %v1072, 0.0
      %v1181 = vmax.f32 %v1075, 0.0
      %v1182 = vmax.f32 %v1080, 0.0
      %v1183 = vmax.f32 %v1083, 0.0
      %v1184 = vmax.f32 %v1088, 0.0
      %v1185 = vmax.f32 %v1091, 0.0
      %v1186 = vmax.f32 %v1096, 0.0
      %v1187 = vmax.f32 %v1099, 0.0
      %v1188 = vmax.f32 %v1104, 0.0
      %v1189 = vmax.f32 %v1107, 0.0
      %v1190 = vmax.f32 %v1112, 0.0
      %v1191 = vmax.f32 %v1115, 0.0
      %v1192 = vmax.f32 %v1120, 0.0
      %v1193 = vmax.f32 %v1123, 0.0
      %v1194 = vmax.f32 %v1128, 0.0
      %v1195 = vmax.f32 %v1131, 0.0
      %v1196 = vmax.f32 %v1136, 0.0
      %v1197 = vmax.f32 %v1139, 0.0
      %v1198 = vmax.f32 %v1144, 0.0
      %v1199 = vmax.f32 %v1147, 0.0
      %v1200 = vmax.f32 %v1152, 0.0
      %v1201 = vmax.f32 %v1155, 0.0
      %v1202 = vmax.f32 %v1160, 0.0
      %v1203 = vmax.f32 %v1163, 0.0
      %v1204 = vmax.f32 %v1168, 0.0
      %v1205 = vmax.f32 %v1171, 0.0
      %v1206 = vpack.c.bf16 %v1175, %v1174
      %v1207 = vpack.c.bf16 %v1177, %v1176
      %v1208 = vpack.c.bf16 %v1179, %v1178
      %v1209 = vpack.c.bf16 %v1181, %v1180
      %v1210 = vpack.c.bf16 %v1183, %v1182
      %v1211 = vpack.c.bf16 %v1185, %v1184
      %v1212 = vpack.c.bf16 %v1187, %v1186
      %v1213 = vpack.c.bf16 %v1189, %v1188
      %v1214 = vpack.c.bf16 %v1191, %v1190
      %v1215 = vpack.c.bf16 %v1193, %v1192
      %v1216 = vpack.c.bf16 %v1195, %v1194
      %v1217 = vpack.c.bf16 %v1197, %v1196
      %v1218 = vpack.c.bf16 %v1199, %v1198
      %v1219 = vpack.c.bf16 %v1201, %v1200
      %v1220 = vpack.c.bf16 %v1203, %v1202
      %v1221 = vpack.c.bf16 %v1205, %v1204
      %v1222 = vld [vmem:[%s2] sm:$0xf]
      %v1223 = vld [vmem:[%s2 + $0x4] sm:$0xf]
      %v1224 = vld [vmem:[%s2 + $0x8] sm:$0xf]
      %v1225 = vld [vmem:[%s2 + $0xc] sm:$0xf]
      %v1226 = vld [vmem:[%s2 + $0x10] sm:$0xf]
      %v1227 = vld [vmem:[%s2 + $0x14] sm:$0xf]
      %v1228 = vld [vmem:[%s2 + $0x18] sm:$0xf]
      %v1229 = vld [vmem:[%s2 + $0x1c] sm:$0xf]
      %v1230 = vld [vmem:[%s2 + $0x20] sm:$0xf]
      %v1231 = vld [vmem:[%s2 + $0x24] sm:$0xf]
      %v1232 = vld [vmem:[%s2 + $0x28] sm:$0xf]
      %v1233 = vld [vmem:[%s2 + $0x2c] sm:$0xf]
      %v1234 = vld [vmem:[%s2 + $0x30] sm:$0xf]
      %v1235 = vld [vmem:[%s2 + $0x34] sm:$0xf]
      %v1236 = vld [vmem:[%s2 + $0x38] sm:$0xf]
      %v1237 = vld [vmem:[%s2 + $0x3c] sm:$0xf]
      %v1254 = vunpack.c.l.b16 %v1222
      %v1255 = vunpack.c.l.b16 %v1223
      %v1256 = vunpack.c.l.b16 %v1224
      %v1257 = vunpack.c.l.b16 %v1225
      %v1258 = vunpack.c.l.b16 %v1226
      %v1259 = vunpack.c.l.b16 %v1227
      %v1260 = vunpack.c.l.b16 %v1228
      %v1261 = vunpack.c.l.b16 %v1229
      %v1262 = vunpack.c.l.b16 %v1230
      %v1263 = vunpack.c.l.b16 %v1231
      %v1264 = vunpack.c.l.b16 %v1232
      %v1265 = vunpack.c.l.b16 %v1233
      %v1266 = vunpack.c.l.b16 %v1234
      %v1267 = vunpack.c.l.b16 %v1235
      %v1268 = vunpack.c.l.b16 %v1236
      %v1269 = vunpack.c.l.b16 %v1237
      %v1270 = vpack.c.b16 %v1255, %v1254
      %v1271 = vpack.c.b16 %v1257, %v1256
      %v1272 = vpack.c.b16 %v1259, %v1258
      %v1273 = vpack.c.b16 %v1261, %v1260
      %v1274 = vpack.c.b16 %v1263, %v1262
      %v1275 = vpack.c.b16 %v1265, %v1264
      %v1276 = vpack.c.b16 %v1267, %v1266
      %v1277 = vpack.c.b16 %v1269, %v1268
      %1286 = vmatprep.subr.bf16.mxu0 0
      %1287 = vmatpush1.bf16.msra.mxu0 %v1270
      %1288 = vmatprep.subr.bf16.mxu0 0
      %1289 = vmatpush1.bf16.msra.mxu0 %v1271
      %1290 = vmatprep.subr.bf16.mxu0 0
      %1291 = vmatpush1.bf16.msra.mxu0 %v1272
      %1292 = vmatprep.subr.bf16.mxu0 0
      %1293 = vmatpush1.bf16.msra.mxu0 %v1273
      %1294 = vmatprep.subr.bf16.mxu0 0
      %1295 = vmatpush1.bf16.msra.mxu0 %v1274
      %1296 = vmatprep.subr.bf16.mxu0 0
      %1297 = vmatpush1.bf16.msra.mxu0 %v1275
      %1298 = vmatprep.subr.bf16.mxu0 0
      %1299 = vmatpush1.bf16.msra.mxu0 %v1276
      %1300 = vmatprep.subr.bf16.mxu0 0
      %1301 = vmatpush1.bf16.msra.mxu0 %v1277
      %1302 = vmatprep.subr.bf16.mxu0 0
      %1303 = vmatpush1.bf16.msra.mxu0 0
      %1304 = vmatprep.subr.bf16.mxu0 0
      %1305 = vmatpush1.bf16.msra.mxu0 0
      %1306 = vmatprep.subr.bf16.mxu0 0
      %1307 = vmatpush1.bf16.msra.mxu0 0
      %1308 = vmatprep.subr.bf16.mxu0 0
      %1309 = vmatpush1.bf16.msra.mxu0 0
      %1310 = vmatprep.subr.bf16.mxu0 0
      %1311 = vmatpush1.bf16.msra.mxu0 0
      %1312 = vmatprep.subr.bf16.mxu0 0
      %1313 = vmatpush1.bf16.msra.mxu0 0
      %1314 = vmatprep.subr.bf16.mxu0 0
      %1315 = vmatpush1.bf16.msra.mxu0 0
      %1316 = vmatprep.subr.bf16.mxu0 0
      %1317 = vmatpush1.bf16.msra.mxu0 0
      %1318 = vmatprep.mubr.bf16.mxu0 0
      %1319 = vmatmul.mubr.bf16.gmra.mrb[0].mxu0 %v1206
      %v1320 = vpop.f32.mrb[0].mxu0
      %v1321 = vadd.f32 0.0, %v1320
      %v1322 = vpop.f32.mrb[0].mxu0
      %v1323 = vpop.f32.mrb[0].mxu0
      %v1324 = vadd.f32 0.0, %v1323
      %v1325 = vpop.f32.mrb[0].mxu0
      %1326 = vmatprep.mubr.bf16.mxu0 0
      %1327 = vmatmul.mubr.bf16.gmra.mrb[0].mxu0 %v1207
      %v1328 = vpop.f32.mrb[0].mxu0
      %v1329 = vadd.f32 0.0, %v1328
      %v1330 = vpop.f32.mrb[0].mxu0
      %v1331 = vpop.f32.mrb[0].mxu0
      %v1332 = vadd.f32 0.0, %v1331
      %v1333 = vpop.f32.mrb[0].mxu0
      %1334 = vmatprep.mubr.bf16.mxu0 0
      %1335 = vmatmul.mubr.bf16.gmra.mrb[0].mxu0 %v1208
      %v1336 = vpop.f32.mrb[0].mxu0
      %v1337 = vadd.f32 0.0, %v1336
      %v1338 = vpop.f32.mrb[0].mxu0
      %v1339 = vpop.f32.mrb[0].mxu0
      %v1340 = vadd.f32 0.0, %v1339
      %v1341 = vpop.f32.mrb[0].mxu0
      %1342 = vmatprep.mubr.bf16.mxu0 0
      %1343 = vmatmul.mubr.bf16.gmra.mrb[0].mxu0 %v1209
      %v1344 = vpop.f32.mrb[0].mxu0
      %v1345 = vadd.f32 0.0, %v1344
      %v1346 = vpop.f32.mrb[0].mxu0
      %v1347 = vpop.f32.mrb[0].mxu0
      %v1348 = vadd.f32 0.0, %v1347
      %v1349 = vpop.f32.mrb[0].mxu0
      %1350 = vmatprep.mubr.bf16.mxu0 0
      %1351 = vmatmul.mubr.bf16.gmra.mrb[0].mxu0 %v1210
      %v1352 = vpop.f32.mrb[0].mxu0
      %v1353 = vadd.f32 0.0, %v1352
      %v1354 = vpop.f32.mrb[0].mxu0
      %v1355 = vpop.f32.mrb[0].mxu0
      %v1356 = vadd.f32 0.0, %v1355
      %v1357 = vpop.f32.mrb[0].mxu0
      %1358 = vmatprep.mubr.bf16.mxu0 0
      %1359 = vmatmul.mubr.bf16.gmra.mrb[0].mxu0 %v1211
      %v1360 = vpop.f32.mrb[0].mxu0
      %v1361 = vadd.f32 0.0, %v1360
      %v1362 = vpop.f32.mrb[0].mxu0
      %v1363 = vpop.f32.mrb[0].mxu0
      %v1364 = vadd.f32 0.0, %v1363
      %v1365 = vpop.f32.mrb[0].mxu0
      %1366 = vmatprep.mubr.bf16.mxu0 0
      %1367 = vmatmul.mubr.bf16.gmra.mrb[0].mxu0 %v1212
      %v1368 = vpop.f32.mrb[0].mxu0
      %v1369 = vadd.f32 0.0, %v1368
      %v1370 = vpop.f32.mrb[0].mxu0
      %v1371 = vpop.f32.mrb[0].mxu0
      %v1372 = vadd.f32 0.0, %v1371
      %v1373 = vpop.f32.mrb[0].mxu0
      %1374 = vmatprep.mubr.bf16.mxu0 0
      %1375 = vmatmul.mubr.bf16.gmra.mrb[0].mxu0 %v1213
      %v1376 = vpop.f32.mrb[0].mxu0
      %v1377 = vadd.f32 0.0, %v1376
      %v1378 = vpop.f32.mrb[0].mxu0
      %v1379 = vpop.f32.mrb[0].mxu0
      %v1380 = vadd.f32 0.0, %v1379
      %v1381 = vpop.f32.mrb[0].mxu0
      %1382 = vmatprep.mubr.bf16.mxu0 0
      %1383 = vmatmul.mubr.bf16.gmra.mrb[0].mxu0 %v1214
      %v1384 = vpop.f32.mrb[0].mxu0
      %v1385 = vadd.f32 0.0, %v1384
      %v1386 = vpop.f32.mrb[0].mxu0
      %v1387 = vpop.f32.mrb[0].mxu0
      %v1388 = vadd.f32 0.0, %v1387
      %v1389 = vpop.f32.mrb[0].mxu0
      %1390 = vmatprep.mubr.bf16.mxu0 0
      %1391 = vmatmul.mubr.bf16.gmra.mrb[0].mxu0 %v1215
      %v1392 = vpop.f32.mrb[0].mxu0
      %v1393 = vadd.f32 0.0, %v1392
      %v1394 = vpop.f32.mrb[0].mxu0
      %v1395 = vpop.f32.mrb[0].mxu0
      %v1396 = vadd.f32 0.0, %v1395
      %v1397 = vpop.f32.mrb[0].mxu0
      %1398 = vmatprep.mubr.bf16.mxu0 0
      %1399 = vmatmul.mubr.bf16.gmra.mrb[0].mxu0 %v1216
      %v1400 = vpop.f32.mrb[0].mxu0
      %v1401 = vadd.f32 0.0, %v1400
      %v1402 = vpop.f32.mrb[0].mxu0
      %v1403 = vpop.f32.mrb[0].mxu0
      %v1404 = vadd.f32 0.0, %v1403
      %v1405 = vpop.f32.mrb[0].mxu0
      %1406 = vmatprep.mubr.bf16.mxu0 0
      %1407 = vmatmul.mubr.bf16.gmra.mrb[0].mxu0 %v1217
      %v1408 = vpop.f32.mrb[0].mxu0
      %v1409 = vadd.f32 0.0, %v1408
      %v1410 = vpop.f32.mrb[0].mxu0
      %v1411 = vpop.f32.mrb[0].mxu0
      %v1412 = vadd.f32 0.0, %v1411
      %v1413 = vpop.f32.mrb[0].mxu0
      %1414 = vmatprep.mubr.bf16.mxu0 0
      %1415 = vmatmul.mubr.bf16.gmra.mrb[0].mxu0 %v1218
      %v1416 = vpop.f32.mrb[0].mxu0
      %v1417 = vadd.f32 0.0, %v1416
      %v1418 = vpop.f32.mrb[0].mxu0
      %v1419 = vpop.f32.mrb[0].mxu0
      %v1420 = vadd.f32 0.0, %v1419
      %v1421 = vpop.f32.mrb[0].mxu0
      %1422 = vmatprep.mubr.bf16.mxu0 0
      %1423 = vmatmul.mubr.bf16.gmra.mrb[0].mxu0 %v1219
      %v1424 = vpop.f32.mrb[0].mxu0
      %v1425 = vadd.f32 0.0, %v1424
      %v1426 = vpop.f32.mrb[0].mxu0
      %v1427 = vpop.f32.mrb[0].mxu0
      %v1428 = vadd.f32 0.0, %v1427
      %v1429 = vpop.f32.mrb[0].mxu0
      %1430 = vmatprep.mubr.bf16.mxu0 0
      %1431 = vmatmul.mubr.bf16.gmra.mrb[0].mxu0 %v1220
      %v1432 = vpop.f32.mrb[0].mxu0
      %v1433 = vadd.f32 0.0, %v1432
      %v1434 = vpop.f32.mrb[0].mxu0
      %v1435 = vpop.f32.mrb[0].mxu0
      %v1436 = vadd.f32 0.0, %v1435
      %v1437 = vpop.f32.mrb[0].mxu0
      %1438 = vmatprep.mubr.bf16.mxu0 0
      %1439 = vmatmul.mubr.bf16.gmra.mrb[0].mxu0 %v1221
      %v1440 = vpop.f32.mrb[0].mxu0
      %v1441 = vadd.f32 0.0, %v1440
      %v1442 = vpop.f32.mrb[0].mxu0
      %v1443 = vpop.f32.mrb[0].mxu0
      %v1444 = vadd.f32 0.0, %v1443
      %v1445 = vpop.f32.mrb[0].mxu0
      %1446 = vdwg.mxu0
      %v1447 = vpack.c.bf16 %v1324, %v1321
      %v1448 = vpack.c.bf16 %v1332, %v1329
      %v1449 = vpack.c.bf16 %v1340, %v1337
      %v1450 = vpack.c.bf16 %v1348, %v1345
      %v1451 = vpack.c.bf16 %v1356, %v1353
      %v1452 = vpack.c.bf16 %v1364, %v1361
      %v1453 = vpack.c.bf16 %v1372, %v1369
      %v1454 = vpack.c.bf16 %v1380, %v1377
      %v1455 = vpack.c.bf16 %v1388, %v1385
      %v1456 = vpack.c.bf16 %v1396, %v1393
      %v1457 = vpack.c.bf16 %v1404, %v1401
      %v1458 = vpack.c.bf16 %v1412, %v1409
      %v1459 = vpack.c.bf16 %v1420, %v1417
      %v1460 = vpack.c.bf16 %v1428, %v1425
      %v1461 = vpack.c.bf16 %v1436, %v1433
      %v1462 = vpack.c.bf16 %v1444, %v1441
      %v1479 = vunpack.c.l.b16 %v1447
      %v1480 = vunpack.c.h.b16 %v1447
      %v1481 = vunpack.c.l.b16 %v1448
      %v1482 = vunpack.c.h.b16 %v1448
      %v1483 = vunpack.c.l.b16 %v1449
      %v1484 = vunpack.c.h.b16 %v1449
      %v1485 = vunpack.c.l.b16 %v1450
      %v1486 = vunpack.c.h.b16 %v1450
      %v1487 = vunpack.c.l.b16 %v1451
      %v1488 = vunpack.c.h.b16 %v1451
      %v1489 = vunpack.c.l.b16 %v1452
      %v1490 = vunpack.c.h.b16 %v1452
      %v1491 = vunpack.c.l.b16 %v1453
      %v1492 = vunpack.c.h.b16 %v1453
      %v1493 = vunpack.c.l.b16 %v1454
      %v1494 = vunpack.c.h.b16 %v1454
      %v1495 = vunpack.c.l.b16 %v1455
      %v1496 = vunpack.c.h.b16 %v1455
      %v1497 = vunpack.c.l.b16 %v1456
      %v1498 = vunpack.c.h.b16 %v1456
      %v1499 = vunpack.c.l.b16 %v1457
      %v1500 = vunpack.c.h.b16 %v1457
      %v1501 = vunpack.c.l.b16 %v1458
      %v1502 = vunpack.c.h.b16 %v1458
      %v1503 = vunpack.c.l.b16 %v1459
      %v1504 = vunpack.c.h.b16 %v1459
      %v1505 = vunpack.c.l.b16 %v1460
      %v1506 = vunpack.c.h.b16 %v1460
      %v1507 = vunpack.c.l.b16 %v1461
      %v1508 = vunpack.c.h.b16 %v1461
      %v1509 = vunpack.c.l.b16 %v1462
      %v1510 = vunpack.c.h.b16 %v1462
      %v1511 = vpack.c.b16 %v1479, %v1479
      %v1512 = vpack.c.b16 %v1480, %v1480
      %v1513 = vpack.c.b16 %v1481, %v1481
      %v1514 = vpack.c.b16 %v1482, %v1482
      %v1515 = vpack.c.b16 %v1483, %v1483
      %v1516 = vpack.c.b16 %v1484, %v1484
      %v1517 = vpack.c.b16 %v1485, %v1485
      %v1518 = vpack.c.b16 %v1486, %v1486
      %v1519 = vpack.c.b16 %v1487, %v1487
      %v1520 = vpack.c.b16 %v1488, %v1488
      %v1521 = vpack.c.b16 %v1489, %v1489
      %v1522 = vpack.c.b16 %v1490, %v1490
      %v1523 = vpack.c.b16 %v1491, %v1491
      %v1524 = vpack.c.b16 %v1492, %v1492
      %v1525 = vpack.c.b16 %v1493, %v1493
      %v1526 = vpack.c.b16 %v1494, %v1494
      %v1527 = vpack.c.b16 %v1495, %v1495
      %v1528 = vpack.c.b16 %v1496, %v1496
      %v1529 = vpack.c.b16 %v1497, %v1497
      %v1530 = vpack.c.b16 %v1498, %v1498
      %v1531 = vpack.c.b16 %v1499, %v1499
      %v1532 = vpack.c.b16 %v1500, %v1500
      %v1533 = vpack.c.b16 %v1501, %v1501
      %v1534 = vpack.c.b16 %v1502, %v1502
      %v1535 = vpack.c.b16 %v1503, %v1503
      %v1536 = vpack.c.b16 %v1504, %v1504
      %v1537 = vpack.c.b16 %v1505, %v1505
      %v1538 = vpack.c.b16 %v1506, %v1506
      %v1539 = vpack.c.b16 %v1507, %v1507
      %v1540 = vpack.c.b16 %v1508, %v1508
      %v1541 = vpack.c.b16 %v1509, %v1509
      %v1542 = vpack.c.b16 %v1510, %v1510
      %1575 = vst [vmem:[%s202] sm:$0xf] %v1511
      %1576 = vst [vmem:[%s202 + $0x4] sm:$0xf] %v1512
      %1577 = vst [vmem:[%s202 + $0x8] sm:$0xf] %v1513
      %1578 = vst [vmem:[%s202 + $0xc] sm:$0xf] %v1514
      %1579 = vst [vmem:[%s202 + $0x10] sm:$0xf] %v1515
      %1580 = vst [vmem:[%s202 + $0x14] sm:$0xf] %v1516
      %1581 = vst [vmem:[%s202 + $0x18] sm:$0xf] %v1517
      %1582 = vst [vmem:[%s202 + $0x1c] sm:$0xf] %v1518
      %1583 = vst [vmem:[%s202 + $0x20] sm:$0xf] %v1519
      %1584 = vst [vmem:[%s202 + $0x24] sm:$0xf] %v1520
      %1585 = vst [vmem:[%s202 + $0x28] sm:$0xf] %v1521
      %1586 = vst [vmem:[%s202 + $0x2c] sm:$0xf] %v1522
      %1587 = vst [vmem:[%s202 + $0x30] sm:$0xf] %v1523
      %1588 = vst [vmem:[%s202 + $0x34] sm:$0xf] %v1524
      %1589 = vst [vmem:[%s202 + $0x38] sm:$0xf] %v1525
      %1590 = vst [vmem:[%s202 + $0x3c] sm:$0xf] %v1526
      %1591 = vst [vmem:[%s202 + $0x40] sm:$0xf] %v1527
      %1592 = vst [vmem:[%s202 + $0x44] sm:$0xf] %v1528
      %1593 = vst [vmem:[%s202 + $0x48] sm:$0xf] %v1529
      %1594 = vst [vmem:[%s202 + $0x4c] sm:$0xf] %v1530
      %1595 = vst [vmem:[%s202 + $0x50] sm:$0xf] %v1531
      %1596 = vst [vmem:[%s202 + $0x54] sm:$0xf] %v1532
      %1597 = vst [vmem:[%s202 + $0x58] sm:$0xf] %v1533
      %1598 = vst [vmem:[%s202 + $0x5c] sm:$0xf] %v1534
      %1599 = vst [vmem:[%s202 + $0x60] sm:$0xf] %v1535
      %1600 = vst [vmem:[%s202 + $0x64] sm:$0xf] %v1536
      %1601 = vst [vmem:[%s202 + $0x68] sm:$0xf] %v1537
      %1602 = vst [vmem:[%s202 + $0x6c] sm:$0xf] %v1538
      %1603 = vst [vmem:[%s202 + $0x70] sm:$0xf] %v1539
      %1604 = vst [vmem:[%s202 + $0x74] sm:$0xf] %v1540
      %1605 = vst [vmem:[%s202 + $0x78] sm:$0xf] %v1541
      %1606 = vst [vmem:[%s202 + $0x7c] sm:$0xf] %v1542
      %s1607 = smul.u32 32, %s15
      %p1608 = scmp.lt.s32.totalorder %s1607, 63
      %s1609 = scalar_select %p1608, %s1607, 63
      %s1610 = smul.addr %s1609, 4
      %s1611 = scalar_lea.vmem %s4, %s1610
      // Predicated region
      $region37: #{gcn_forward.4} parent=35 // pred_check
        %p1612 = pneg %p122
      $region38: #{gcn_forward.4} parent=35 // pred_check_branch
        %1614 = sbr.rel (%p1612) target = $region40
      $region39: #{gcn_forward.4} parent=35 // pred_region
        %s1615 = smul.u32 32, %s15
      $region40: #{gcn_forward.4} parent=35 // pred_fallthru
        _
    $region36: #{gcn_forward.4} parent=5 // pred_fallthru
      _
    %p1616 = scmp.le.s32.totalorder 2, %s10
    // Predicated region
    $region41: #{gcn_forward.4} parent=5 // pred_check
      %p1617 = pneg %p1616
    $region42: #{gcn_forward.4} parent=5 // pred_check_branch
      %1619 = sbr.rel (%p1617) target = $region44
    $region43: #{gcn_forward.4} parent=5 // pred_region
      %s1620 = ssub.s32 %s10, 2
      // Predicated region
      $region45: #{gcn_forward.4} parent=43 // pred_check
        %p1621 = pneg %p128
      $region46: #{gcn_forward.4} parent=43 // pred_check_branch
        %1623 = sbr.rel (%p1621) target = $region48
      $region47: #{gcn_forward.4} parent=43 // pred_region
        %s1624 = smul.u32 32, %s16
        %p1625 = scmp.lt.s32.totalorder %s1624, 63
        %s1626 = scalar_select %p1625, %s1624, 63
        %s1627 = smul.addr %s1626, 4
        %s1628 = scalar_lea.vmem %s4, %s1627
      $region48: #{gcn_forward.4} parent=43 // pred_fallthru
        _
    $region44: #{gcn_forward.4} parent=5 // pred_fallthru
      _
  $region6: #{gcn_forward.4} parent=0 // loop_footer
    %s14 = sadd.s32 1, %s10
  $region7: #{gcn_forward.4} parent=0 // loop_footer_branch
    %9 = sbr.rel target = $region3
  $region8: #{gcn_forward.4} parent=0 // loop_exit
    _

</llo_original>
